<compile_context>
chip_gen: v6e
topology: v6e:2x2x1
jax: 0.10.0
libtpu: 0.0.40
codegen_flags: <defaults>
</compile_context>

<pallas_src>
import jax
import jax.numpy as jnp
import numpy as np
from jax import lax
from jax.experimental import pallas as pl
from jax.experimental.pallas import tpu as pltpu

BLOCK_B = 16  # images processed per grid step


# ----------------------------------------------------------------------------
# Fused network kernel (one grid step = BLOCK_B images)
# ----------------------------------------------------------------------------

def _net_kernel(x_ref, w1_ref, b1_ref, w2_ref, b2_ref, wf1_ref, fb1_ref,
                fw2_ref, fb2_ref, fw3_ref, fb3_ref, out_ref):
    B = out_ref.shape[0]
    # xl: rows = (image_row y, image b), lanes = (image_col x, in_channel c)
    xl = x_ref[0]                                           # (32*B, 96) bf16

    # ---- conv1 (5x5, 3->6) + bias + ReLU --------------------------------------
    # 5 row-shifted banded matmuls accumulate the full conv:
    #   a1[(y,b), x*6+o] = sum_i  xl[(y+i,b), :] @ w1s[i]
    a1 = jnp.dot(xl[0:28 * B, :], w1_ref[0], preferred_element_type=jnp.float32)
    for i in range(1, 5):
        a1 = a1 + jnp.dot(xl[i * B:(i + 28) * B, :], w1_ref[i],
                          preferred_element_type=jnp.float32)
    a1 = jnp.maximum(a1 + b1_ref[...], 0.0)                 # (28*B, 168) f32

    # ---- 2x2 max pool #1 -------------------------------------------------------
    # y-direction: pair adjacent row-groups (pure vreg regrouping + elementwise max)
    a1 = a1.reshape(14, 2 * B, 168)
    a1 = jnp.maximum(a1[:, :B, :], a1[:, B:, :]).reshape(14 * B, 168)
    # x-direction: 6-lane shifted max; odd-x lane groups become don't-cares that
    # are multiplied by exact-zero rows of w2s in the next matmul.
    p1 = jnp.maximum(a1[:, :-6], a1[:, 6:]).astype(jnp.bfloat16)   # (14*B, 162)

    # ---- conv2 (5x5, 6->16) + bias + ReLU --------------------------------------
    a2 = jnp.dot(p1[0:10 * B, :], w2_ref[0], preferred_element_type=jnp.float32)
    for i in range(1, 5):
        a2 = a2 + jnp.dot(p1[i * B:(i + 10) * B, :], w2_ref[i],
                          preferred_element_type=jnp.float32)
    a2 = jnp.maximum(a2 + b2_ref[...], 0.0)                 # (10*B, 160) f32

    # ---- 2x2 max pool #2 -------------------------------------------------------
    a2 = a2.reshape(5, 2 * B, 160)
    a2 = jnp.maximum(a2[:, :B, :], a2[:, B:, :]).reshape(5 * B, 160)
    p2 = jnp.maximum(a2[:, :-16], a2[:, 16:]).astype(jnp.bfloat16)  # (5*B, 144)

    # ---- fc1 (400->120): contraction over (pooled row u, lanes) as 5 dots -------
    h = jnp.dot(p2[0:B, :], wf1_ref[0], preferred_element_type=jnp.float32)
    for u in range(1, 5):
        h = h + jnp.dot(p2[u * B:(u + 1) * B, :], wf1_ref[u],
                        preferred_element_type=jnp.float32)
    h = jnp.maximum(h + fb1_ref[...], 0.0)                  # (B, 120)

    # ---- fc2 / fc3 ---------------------------------------------------------------
    h = jnp.maximum(jnp.dot(h.astype(jnp.bfloat16), fw2_ref[...],
                            preferred_element_type=jnp.float32) + fb2_ref[...], 0.0)
    h = jnp.dot(h.astype(jnp.bfloat16), fw3_ref[...],
                preferred_element_type=jnp.float32) + fb3_ref[...]
    out_ref[...] = h.astype(out_ref.dtype)


def _run_net(xl, prep):
    nb, rows, _ = xl.shape
    B = rows // 32
    return pl.pallas_call(
        _net_kernel,
        out_shape=jax.ShapeDtypeStruct((nb * B, 10), jnp.float32),
        grid=(nb,),
        in_specs=[
            pl.BlockSpec((1, 32 * B, 96), lambda i: (i, 0, 0)),
            pl.BlockSpec((5, 96, 168), lambda i: (0, 0, 0)),
            pl.BlockSpec((1, 168), lambda i: (0, 0)),
            pl.BlockSpec((5, 162, 160), lambda i: (0, 0, 0)),
            pl.BlockSpec((1, 160), lambda i: (0, 0)),
            pl.BlockSpec((5, 144, 120), lambda i: (0, 0, 0)),
            pl.BlockSpec((1, 120), lambda i: (0, 0)),
            pl.BlockSpec((120, 84), lambda i: (0, 0)),
            pl.BlockSpec((1, 84), lambda i: (0, 0)),
            pl.BlockSpec((84, 10), lambda i: (0, 0)),
            pl.BlockSpec((1, 10), lambda i: (0, 0)),
        ],
        out_specs=pl.BlockSpec((B, 10), lambda i: (i, 0)),
        compiler_params=pltpu.CompilerParams(
            dimension_semantics=("parallel",)),
    )(xl, prep["w1s"], prep["b1"], prep["w2s"], prep["b2"],
      prep["wf1s"], prep["fb1"], prep["fw2"], prep["fb2"],
      prep["fw3"], prep["fb3"])


# ----------------------------------------------------------------------------
# Parameter construction / one-time banded re-layout, forward wrapper
# ----------------------------------------------------------------------------

def init_params(key):
    """Deterministic init mirroring PyTorch default U(-1/sqrt(fan_in), +...)."""
    def uniform(k, shape, fan_in):
        bound = 1.0 / jnp.sqrt(jnp.float32(fan_in))
        return jax.random.uniform(k, shape, jnp.float32, -bound, bound)

    ks = jax.random.split(key, 10)
    return {
        "conv1_w": uniform(ks[0], (6, 3, 5, 5), 3 * 5 * 5),
        "conv1_b": uniform(ks[1], (6,), 3 * 5 * 5),
        "conv2_w": uniform(ks[2], (16, 6, 5, 5), 6 * 5 * 5),
        "conv2_b": uniform(ks[3], (16,), 6 * 5 * 5),
        "fc1_w": uniform(ks[4], (120, 400), 400),
        "fc1_b": uniform(ks[5], (120,), 400),
        "fc2_w": uniform(ks[6], (84, 120), 120),
        "fc2_b": uniform(ks[7], (84,), 120),
        "fc3_w": uniform(ks[8], (10, 84), 84),
        "fc3_b": uniform(ks[9], (10,), 84),
    }


def prepare_params(p):
    """Build the banded (block-Toeplitz) bf16 matmul weights used by the kernel."""
    c1w = np.asarray(p["conv1_w"], np.float32)    # (o=6,  cin=3, kh=5, kw=5)
    c1b = np.asarray(p["conv1_b"], np.float32)
    c2w = np.asarray(p["conv2_w"], np.float32)    # (o=16, c=6,   kh=5, kw=5)
    c2b = np.asarray(p["conv2_b"], np.float32)
    f1w = np.asarray(p["fc1_w"], np.float32)      # (120, 400)
    f1b = np.asarray(p["fc1_b"], np.float32)
    f2w = np.asarray(p["fc2_w"], np.float32)      # (84, 120)
    f2b = np.asarray(p["fc2_b"], np.float32)
    f3w = np.asarray(p["fc3_w"], np.float32)      # (10, 84)
    f3b = np.asarray(p["fc3_b"], np.float32)

    # conv1: w1s[i, x'*3 + cin, x*6 + o] = c1w[o, cin, i, x'-x]   (0 <= x'-x <= 4)
    w1s = np.zeros((5, 96, 168), np.float32)
    for i in range(5):
        for x in range(28):
            for j in range(5):
                xs = x + j
                w1s[i, xs * 3:xs * 3 + 3, x * 6:x * 6 + 6] = c1w[:, :, i, j].T
    # conv2: rows follow pool1's (x', c) lane layout (stride 12); the 6 "odd-x"
    # leftover lanes per group stay exactly zero (implements the deferred x-pool).
    w2s = np.zeros((5, 162, 160), np.float32)
    for i in range(5):
        for x in range(10):
            for j in range(5):
                xs = x + j
                w2s[i, xs * 12:xs * 12 + 6, x * 16:x * 16 + 16] = c2w[:, :, i, j].T
    # fc1: rows follow pool2's (v, o) lane layout (stride 32, odd-x lanes zero);
    # columns follow torch's (C, H, W) flatten order.
    f1w4 = f1w.reshape(120, 16, 5, 5)             # (f, o, u, v)
    wf1s = np.zeros((5, 144, 120), np.float32)
    for u in range(5):
        for v in range(5):
            wf1s[u, 32 * v:32 * v + 16, :] = f1w4[:, :, u, v].T

    bf16 = jnp.bfloat16
    return {
        "w1s": jnp.asarray(w1s, bf16),
        "b1": jnp.asarray(np.tile(c1b, 28)[None, :], jnp.float32),   # (1, 168)
        "w2s": jnp.asarray(w2s, bf16),
        "b2": jnp.asarray(np.tile(c2b, 10)[None, :], jnp.float32),   # (1, 160)
        "wf1s": jnp.asarray(wf1s, bf16),
        "fb1": jnp.asarray(f1b[None, :], jnp.float32),
        "fw2": jnp.asarray(f2w.T, bf16),
        "fb2": jnp.asarray(f2b[None, :], jnp.float32),
        "fw3": jnp.asarray(f3w.T, bf16),
        "fb3": jnp.asarray(f3b[None, :], jnp.float32),
    }


@jax.jit
def net_forward(x_nchw, prep):
    n = x_nchw.shape[0]
    b = BLOCK_B
    n_pad = ((n + b - 1) // b) * b
    x = jnp.transpose(x_nchw, (0, 2, 3, 1)).astype(jnp.float32)      # NHWC
    if n_pad != n:
        x = jnp.pad(x, ((0, n_pad - n), (0, 0), (0, 0), (0, 0)))
    nb = n_pad // b
    # Per-block layout: rows = (image_row y, image b), lanes = (image_col x, cin):
    #   xl[blk, y*b + i, x*3 + c] = image[blk*b + i, y, x, c]
    xl = (x.reshape(nb, b, 32, 32, 3)
           .transpose(0, 2, 1, 3, 4)
           .reshape(nb, 32 * b, 96)
           .astype(jnp.bfloat16))
    logits = _run_net(xl, prep)
    return logits[:n]


# ------------------------------ pure-JAX reference --------------------------
# Mirrors the torch module; matmul/conv operands are cast to bf16 at the same
# points as the kernel (f32 accumulation), so agreement is tight.

@jax.jit
def reference_forward(x_nchw, p):
    x = jnp.transpose(x_nchw, (0, 2, 3, 1)).astype(jnp.float32)
    dn = ("NHWC", "HWIO", "NHWC")

    def conv(inp, w, b):
        return lax.conv_general_dilated(
            inp.astype(jnp.bfloat16),
            jnp.transpose(w, (2, 3, 1, 0)).astype(jnp.bfloat16),
            (1, 1), "VALID", dimension_numbers=dn,
            preferred_element_type=jnp.float32) + b

    def fc(h, w, b):
        return jnp.dot(h.astype(jnp.bfloat16), w.T.astype(jnp.bfloat16),
                       preferred_element_type=jnp.float32) + b

    y = jnp.maximum(conv(x, p["conv1_w"], p["conv1_b"]), 0.0)
    y = lax.reduce_window(y, -jnp.inf, lax.max, (1, 2, 2, 1), (1, 2, 2, 1), "VALID")
    y = jnp.maximum(conv(y, p["conv2_w"], p["conv2_b"]), 0.0)
    y = lax.reduce_window(y, -jnp.inf, lax.max, (1, 2, 2, 1), (1, 2, 2, 1), "VALID")
    flat = jnp.transpose(y, (0, 3, 1, 2)).reshape(y.shape[0], -1)   # torch flatten
    h = jnp.maximum(fc(flat, p["fc1_w"], p["fc1_b"]), 0.0)
    h = jnp.maximum(fc(h, p["fc2_w"], p["fc2_b"]), 0.0)
    return fc(h, p["fc3_w"], p["fc3_b"])


if __name__ == "__main__":
    key = jax.random.PRNGKey(0)
    pkey, xkey = jax.random.split(key)
    params = init_params(pkey)
    prep = prepare_params(params)
    # fc1 (16*5*5 inputs) fixes spatial size to 32x32; small batch of 2.
    x = jax.random.normal(xkey, (2, 3, 32, 32), jnp.float32)

    out = jax.block_until_ready(net_forward(x, prep))
    assert out.shape == (2, 10) and out.dtype == jnp.float32

    ref = jax.block_until_ready(reference_forward(x, params))
    np.testing.assert_allclose(np.asarray(out), np.asarray(ref),
                               atol=2e-2, rtol=2e-2)
    print("KERNEL_OK")
</pallas_src>

<mosaic_0001>
module attributes {stable_mosaic.version = 11 : i64} {
  func.func @_net_kernel(%arg0: i32, %arg1: memref<1x512x96xbf16, #tpu.memory_space<vmem>>, %arg2: memref<5x96x168xbf16, #tpu.memory_space<vmem>>, %arg3: memref<1x168xf32, #tpu.memory_space<vmem>>, %arg4: memref<5x162x160xbf16, #tpu.memory_space<vmem>>, %arg5: memref<1x160xf32, #tpu.memory_space<vmem>>, %arg6: memref<5x144x120xbf16, #tpu.memory_space<vmem>>, %arg7: memref<1x120xf32, #tpu.memory_space<vmem>>, %arg8: memref<120x84xbf16, #tpu.memory_space<vmem>>, %arg9: memref<1x84xf32, #tpu.memory_space<vmem>>, %arg10: memref<84x10xbf16, #tpu.memory_space<vmem>>, %arg11: memref<1x10xf32, #tpu.memory_space<vmem>>, %arg12: memref<16x10xf32, #tpu.memory_space<vmem>>) attributes {dimension_semantics = [#tpu.dimension_semantics<parallel>], iteration_bounds = array<i64: 1>, scalar_prefetch = 0 : i64, scratch_operands = 0 : i64, tpu.core_type = #tpu.core_type<tc>, window_params = [{transform_indices = @transform_0, window_bounds = array<i64: 1, 512, 96>}, {pipeline_mode = #tpu.pipeline_mode<synchronous>, transform_indices = @transform_1, window_bounds = array<i64: 5, 96, 168>}, {pipeline_mode = #tpu.pipeline_mode<synchronous>, transform_indices = @transform_2, window_bounds = array<i64: 1, 168>}, {pipeline_mode = #tpu.pipeline_mode<synchronous>, transform_indices = @transform_3, window_bounds = array<i64: 5, 162, 160>}, {pipeline_mode = #tpu.pipeline_mode<synchronous>, transform_indices = @transform_4, window_bounds = array<i64: 1, 160>}, {pipeline_mode = #tpu.pipeline_mode<synchronous>, transform_indices = @transform_5, window_bounds = array<i64: 5, 144, 120>}, {pipeline_mode = #tpu.pipeline_mode<synchronous>, transform_indices = @transform_6, window_bounds = array<i64: 1, 120>}, {pipeline_mode = #tpu.pipeline_mode<synchronous>, transform_indices = @transform_7, window_bounds = array<i64: 120, 84>}, {pipeline_mode = #tpu.pipeline_mode<synchronous>, transform_indices = @transform_8, window_bounds = array<i64: 1, 84>}, {pipeline_mode = #tpu.pipeline_mode<synchronous>, transform_indices = @transform_9, window_bounds = array<i64: 84, 10>}, {pipeline_mode = #tpu.pipeline_mode<synchronous>, transform_indices = @transform_10, window_bounds = array<i64: 1, 10>}, {transform_indices = @transform_11, window_bounds = array<i64: 16, 10>}]} {
    %c0 = arith.constant 0 : index
    %c0_0 = arith.constant 0 : index
    %c0_1 = arith.constant 0 : index
    %0 = vector.load %arg1[%c0, %c0_0, %c0_1] : memref<1x512x96xbf16, #tpu.memory_space<vmem>>, vector<1x512x96xbf16>
    %1 = vector.shape_cast %0 : vector<1x512x96xbf16> to vector<512x96xbf16>
    %2 = vector.extract_strided_slice %1 {offsets = [0, 0], sizes = [448, 96], strides = [1, 1]} : vector<512x96xbf16> to vector<448x96xbf16>
    %c0_2 = arith.constant 0 : index
    %c0_3 = arith.constant 0 : index
    %c0_4 = arith.constant 0 : index
    %3 = vector.load %arg2[%c0_2, %c0_3, %c0_4] : memref<5x96x168xbf16, #tpu.memory_space<vmem>>, vector<1x96x168xbf16>
    %4 = vector.shape_cast %3 : vector<1x96x168xbf16> to vector<96x168xbf16>
    %cst = arith.constant dense<0.000000e+00> : vector<448x168xf32>
    %5 = tpu.matmul %2, %4, %cst {dimension_numbers = #tpu.dot_dimension_numbers<[1], [0], [0], [1], [0, 0, 1, 1], [], []>} : vector<448x96xbf16>, vector<96x168xbf16>, vector<448x168xf32> -> vector<448x168xf32>
    %6 = vector.extract_strided_slice %1 {offsets = [16, 0], sizes = [448, 96], strides = [1, 1]} : vector<512x96xbf16> to vector<448x96xbf16>
    %c1 = arith.constant 1 : index
    %c0_5 = arith.constant 0 : index
    %c0_6 = arith.constant 0 : index
    %7 = vector.load %arg2[%c1, %c0_5, %c0_6] : memref<5x96x168xbf16, #tpu.memory_space<vmem>>, vector<1x96x168xbf16>
    %8 = vector.shape_cast %7 : vector<1x96x168xbf16> to vector<96x168xbf16>
    %cst_7 = arith.constant dense<0.000000e+00> : vector<448x168xf32>
    %9 = tpu.matmul %6, %8, %cst_7 {dimension_numbers = #tpu.dot_dimension_numbers<[1], [0], [0], [1], [0, 0, 1, 1], [], []>} : vector<448x96xbf16>, vector<96x168xbf16>, vector<448x168xf32> -> vector<448x168xf32>
    %10 = arith.addf %5, %9 : vector<448x168xf32>
    %11 = vector.extract_strided_slice %1 {offsets = [32, 0], sizes = [448, 96], strides = [1, 1]} : vector<512x96xbf16> to vector<448x96xbf16>
    %c2 = arith.constant 2 : index
    %c0_8 = arith.constant 0 : index
    %c0_9 = arith.constant 0 : index
    %12 = vector.load %arg2[%c2, %c0_8, %c0_9] : memref<5x96x168xbf16, #tpu.memory_space<vmem>>, vector<1x96x168xbf16>
    %13 = vector.shape_cast %12 : vector<1x96x168xbf16> to vector<96x168xbf16>
    %cst_10 = arith.constant dense<0.000000e+00> : vector<448x168xf32>
    %14 = tpu.matmul %11, %13, %cst_10 {dimension_numbers = #tpu.dot_dimension_numbers<[1], [0], [0], [1], [0, 0, 1, 1], [], []>} : vector<448x96xbf16>, vector<96x168xbf16>, vector<448x168xf32> -> vector<448x168xf32>
    %15 = arith.addf %10, %14 : vector<448x168xf32>
    %16 = vector.extract_strided_slice %1 {offsets = [48, 0], sizes = [448, 96], strides = [1, 1]} : vector<512x96xbf16> to vector<448x96xbf16>
    %c3 = arith.constant 3 : index
    %c0_11 = arith.constant 0 : index
    %c0_12 = arith.constant 0 : index
    %17 = vector.load %arg2[%c3, %c0_11, %c0_12] : memref<5x96x168xbf16, #tpu.memory_space<vmem>>, vector<1x96x168xbf16>
    %18 = vector.shape_cast %17 : vector<1x96x168xbf16> to vector<96x168xbf16>
    %cst_13 = arith.constant dense<0.000000e+00> : vector<448x168xf32>
    %19 = tpu.matmul %16, %18, %cst_13 {dimension_numbers = #tpu.dot_dimension_numbers<[1], [0], [0], [1], [0, 0, 1, 1], [], []>} : vector<448x96xbf16>, vector<96x168xbf16>, vector<448x168xf32> -> vector<448x168xf32>
    %20 = arith.addf %15, %19 : vector<448x168xf32>
    %21 = vector.extract_strided_slice %1 {offsets = [64, 0], sizes = [448, 96], strides = [1, 1]} : vector<512x96xbf16> to vector<448x96xbf16>
    %c4 = arith.constant 4 : index
    %c0_14 = arith.constant 0 : index
    %c0_15 = arith.constant 0 : index
    %22 = vector.load %arg2[%c4, %c0_14, %c0_15] : memref<5x96x168xbf16, #tpu.memory_space<vmem>>, vector<1x96x168xbf16>
    %23 = vector.shape_cast %22 : vector<1x96x168xbf16> to vector<96x168xbf16>
    %cst_16 = arith.constant dense<0.000000e+00> : vector<448x168xf32>
    %24 = tpu.matmul %21, %23, %cst_16 {dimension_numbers = #tpu.dot_dimension_numbers<[1], [0], [0], [1], [0, 0, 1, 1], [], []>} : vector<448x96xbf16>, vector<96x168xbf16>, vector<448x168xf32> -> vector<448x168xf32>
    %25 = arith.addf %20, %24 : vector<448x168xf32>
    %c0_17 = arith.constant 0 : index
    %c0_18 = arith.constant 0 : index
    %26 = vector.load %arg3[%c0_17, %c0_18] : memref<1x168xf32, #tpu.memory_space<vmem>>, vector<1x168xf32>
    %27 = vector.broadcast %26 : vector<1x168xf32> to vector<448x168xf32>
    %28 = arith.addf %25, %27 : vector<448x168xf32>
    %cst_19 = arith.constant 0.000000e+00 : f32
    %29 = vector.broadcast %cst_19 : f32 to vector<448x168xf32>
    %30 = arith.maximumf %28, %29 : vector<448x168xf32>
    %31 = vector.shape_cast %30 : vector<448x168xf32> to vector<14x32x168xf32>
    %32 = vector.extract_strided_slice %31 {offsets = [0, 0, 0], sizes = [14, 16, 168], strides = [1, 1, 1]} : vector<14x32x168xf32> to vector<14x16x168xf32>
    %33 = vector.extract_strided_slice %31 {offsets = [0, 16, 0], sizes = [14, 16, 168], strides = [1, 1, 1]} : vector<14x32x168xf32> to vector<14x16x168xf32>
    %34 = arith.maximumf %32, %33 : vector<14x16x168xf32>
    %35 = vector.shape_cast %34 : vector<14x16x168xf32> to vector<224x168xf32>
    %36 = vector.extract_strided_slice %35 {offsets = [0, 0], sizes = [224, 162], strides = [1, 1]} : vector<224x168xf32> to vector<224x162xf32>
    %37 = vector.extract_strided_slice %35 {offsets = [0, 6], sizes = [224, 162], strides = [1, 1]} : vector<224x168xf32> to vector<224x162xf32>
    %38 = arith.maximumf %36, %37 : vector<224x162xf32>
    %39 = arith.truncf %38 : vector<224x162xf32> to vector<224x162xbf16>
    %40 = vector.extract_strided_slice %39 {offsets = [0, 0], sizes = [160, 162], strides = [1, 1]} : vector<224x162xbf16> to vector<160x162xbf16>
    %c0_20 = arith.constant 0 : index
    %c0_21 = arith.constant 0 : index
    %c0_22 = arith.constant 0 : index
    %41 = vector.load %arg4[%c0_20, %c0_21, %c0_22] : memref<5x162x160xbf16, #tpu.memory_space<vmem>>, vector<1x162x160xbf16>
    %42 = vector.shape_cast %41 : vector<1x162x160xbf16> to vector<162x160xbf16>
    %cst_23 = arith.constant dense<0.000000e+00> : vector<160x160xf32>
    %43 = tpu.matmul %40, %42, %cst_23 {dimension_numbers = #tpu.dot_dimension_numbers<[1], [0], [0], [1], [0, 0, 1, 1], [], []>} : vector<160x162xbf16>, vector<162x160xbf16>, vector<160x160xf32> -> vector<160x160xf32>
    %44 = vector.extract_strided_slice %39 {offsets = [16, 0], sizes = [160, 162], strides = [1, 1]} : vector<224x162xbf16> to vector<160x162xbf16>
    %c1_24 = arith.constant 1 : index
    %c0_25 = arith.constant 0 : index
    %c0_26 = arith.constant 0 : index
    %45 = vector.load %arg4[%c1_24, %c0_25, %c0_26] : memref<5x162x160xbf16, #tpu.memory_space<vmem>>, vector<1x162x160xbf16>
    %46 = vector.shape_cast %45 : vector<1x162x160xbf16> to vector<162x160xbf16>
    %cst_27 = arith.constant dense<0.000000e+00> : vector<160x160xf32>
    %47 = tpu.matmul %44, %46, %cst_27 {dimension_numbers = #tpu.dot_dimension_numbers<[1], [0], [0], [1], [0, 0, 1, 1], [], []>} : vector<160x162xbf16>, vector<162x160xbf16>, vector<160x160xf32> -> vector<160x160xf32>
    %48 = arith.addf %43, %47 : vector<160x160xf32>
    %49 = vector.extract_strided_slice %39 {offsets = [32, 0], sizes = [160, 162], strides = [1, 1]} : vector<224x162xbf16> to vector<160x162xbf16>
    %c2_28 = arith.constant 2 : index
    %c0_29 = arith.constant 0 : index
    %c0_30 = arith.constant 0 : index
    %50 = vector.load %arg4[%c2_28, %c0_29, %c0_30] : memref<5x162x160xbf16, #tpu.memory_space<vmem>>, vector<1x162x160xbf16>
    %51 = vector.shape_cast %50 : vector<1x162x160xbf16> to vector<162x160xbf16>
    %cst_31 = arith.constant dense<0.000000e+00> : vector<160x160xf32>
    %52 = tpu.matmul %49, %51, %cst_31 {dimension_numbers = #tpu.dot_dimension_numbers<[1], [0], [0], [1], [0, 0, 1, 1], [], []>} : vector<160x162xbf16>, vector<162x160xbf16>, vector<160x160xf32> -> vector<160x160xf32>
    %53 = arith.addf %48, %52 : vector<160x160xf32>
    %54 = vector.extract_strided_slice %39 {offsets = [48, 0], sizes = [160, 162], strides = [1, 1]} : vector<224x162xbf16> to vector<160x162xbf16>
    %c3_32 = arith.constant 3 : index
    %c0_33 = arith.constant 0 : index
    %c0_34 = arith.constant 0 : index
    %55 = vector.load %arg4[%c3_32, %c0_33, %c0_34] : memref<5x162x160xbf16, #tpu.memory_space<vmem>>, vector<1x162x160xbf16>
    %56 = vector.shape_cast %55 : vector<1x162x160xbf16> to vector<162x160xbf16>
    %cst_35 = arith.constant dense<0.000000e+00> : vector<160x160xf32>
    %57 = tpu.matmul %54, %56, %cst_35 {dimension_numbers = #tpu.dot_dimension_numbers<[1], [0], [0], [1], [0, 0, 1, 1], [], []>} : vector<160x162xbf16>, vector<162x160xbf16>, vector<160x160xf32> -> vector<160x160xf32>
    %58 = arith.addf %53, %57 : vector<160x160xf32>
    %59 = vector.extract_strided_slice %39 {offsets = [64, 0], sizes = [160, 162], strides = [1, 1]} : vector<224x162xbf16> to vector<160x162xbf16>
    %c4_36 = arith.constant 4 : index
    %c0_37 = arith.constant 0 : index
    %c0_38 = arith.constant 0 : index
    %60 = vector.load %arg4[%c4_36, %c0_37, %c0_38] : memref<5x162x160xbf16, #tpu.memory_space<vmem>>, vector<1x162x160xbf16>
    %61 = vector.shape_cast %60 : vector<1x162x160xbf16> to vector<162x160xbf16>
    %cst_39 = arith.constant dense<0.000000e+00> : vector<160x160xf32>
    %62 = tpu.matmul %59, %61, %cst_39 {dimension_numbers = #tpu.dot_dimension_numbers<[1], [0], [0], [1], [0, 0, 1, 1], [], []>} : vector<160x162xbf16>, vector<162x160xbf16>, vector<160x160xf32> -> vector<160x160xf32>
    %63 = arith.addf %58, %62 : vector<160x160xf32>
    %c0_40 = arith.constant 0 : index
    %c0_41 = arith.constant 0 : index
    %64 = vector.load %arg5[%c0_40, %c0_41] : memref<1x160xf32, #tpu.memory_space<vmem>>, vector<1x160xf32>
    %65 = vector.broadcast %64 : vector<1x160xf32> to vector<160x160xf32>
    %66 = arith.addf %63, %65 : vector<160x160xf32>
    %cst_42 = arith.constant 0.000000e+00 : f32
    %67 = vector.broadcast %cst_42 : f32 to vector<160x160xf32>
    %68 = arith.maximumf %66, %67 : vector<160x160xf32>
    %69 = vector.shape_cast %68 : vector<160x160xf32> to vector<5x32x160xf32>
    %70 = vector.extract_strided_slice %69 {offsets = [0, 0, 0], sizes = [5, 16, 160], strides = [1, 1, 1]} : vector<5x32x160xf32> to vector<5x16x160xf32>
    %71 = vector.extract_strided_slice %69 {offsets = [0, 16, 0], sizes = [5, 16, 160], strides = [1, 1, 1]} : vector<5x32x160xf32> to vector<5x16x160xf32>
    %72 = arith.maximumf %70, %71 : vector<5x16x160xf32>
    %73 = vector.shape_cast %72 : vector<5x16x160xf32> to vector<80x160xf32>
    %74 = vector.extract_strided_slice %73 {offsets = [0, 0], sizes = [80, 144], strides = [1, 1]} : vector<80x160xf32> to vector<80x144xf32>
    %75 = vector.extract_strided_slice %73 {offsets = [0, 16], sizes = [80, 144], strides = [1, 1]} : vector<80x160xf32> to vector<80x144xf32>
    %76 = arith.maximumf %74, %75 : vector<80x144xf32>
    %77 = arith.truncf %76 : vector<80x144xf32> to vector<80x144xbf16>
    %78 = vector.extract_strided_slice %77 {offsets = [0, 0], sizes = [16, 144], strides = [1, 1]} : vector<80x144xbf16> to vector<16x144xbf16>
    %c0_43 = arith.constant 0 : index
    %c0_44 = arith.constant 0 : index
    %c0_45 = arith.constant 0 : index
    %79 = vector.load %arg6[%c0_43, %c0_44, %c0_45] : memref<5x144x120xbf16, #tpu.memory_space<vmem>>, vector<1x144x120xbf16>
    %80 = vector.shape_cast %79 : vector<1x144x120xbf16> to vector<144x120xbf16>
    %cst_46 = arith.constant dense<0.000000e+00> : vector<16x120xf32>
    %81 = tpu.matmul %78, %80, %cst_46 {dimension_numbers = #tpu.dot_dimension_numbers<[1], [0], [0], [1], [0, 0, 1, 1], [], []>} : vector<16x144xbf16>, vector<144x120xbf16>, vector<16x120xf32> -> vector<16x120xf32>
    %82 = vector.extract_strided_slice %77 {offsets = [16, 0], sizes = [16, 144], strides = [1, 1]} : vector<80x144xbf16> to vector<16x144xbf16>
    %c1_47 = arith.constant 1 : index
    %c0_48 = arith.constant 0 : index
    %c0_49 = arith.constant 0 : index
    %83 = vector.load %arg6[%c1_47, %c0_48, %c0_49] : memref<5x144x120xbf16, #tpu.memory_space<vmem>>, vector<1x144x120xbf16>
    %84 = vector.shape_cast %83 : vector<1x144x120xbf16> to vector<144x120xbf16>
    %cst_50 = arith.constant dense<0.000000e+00> : vector<16x120xf32>
    %85 = tpu.matmul %82, %84, %cst_50 {dimension_numbers = #tpu.dot_dimension_numbers<[1], [0], [0], [1], [0, 0, 1, 1], [], []>} : vector<16x144xbf16>, vector<144x120xbf16>, vector<16x120xf32> -> vector<16x120xf32>
    %86 = arith.addf %81, %85 : vector<16x120xf32>
    %87 = vector.extract_strided_slice %77 {offsets = [32, 0], sizes = [16, 144], strides = [1, 1]} : vector<80x144xbf16> to vector<16x144xbf16>
    %c2_51 = arith.constant 2 : index
    %c0_52 = arith.constant 0 : index
    %c0_53 = arith.constant 0 : index
    %88 = vector.load %arg6[%c2_51, %c0_52, %c0_53] : memref<5x144x120xbf16, #tpu.memory_space<vmem>>, vector<1x144x120xbf16>
    %89 = vector.shape_cast %88 : vector<1x144x120xbf16> to vector<144x120xbf16>
    %cst_54 = arith.constant dense<0.000000e+00> : vector<16x120xf32>
    %90 = tpu.matmul %87, %89, %cst_54 {dimension_numbers = #tpu.dot_dimension_numbers<[1], [0], [0], [1], [0, 0, 1, 1], [], []>} : vector<16x144xbf16>, vector<144x120xbf16>, vector<16x120xf32> -> vector<16x120xf32>
    %91 = arith.addf %86, %90 : vector<16x120xf32>
    %92 = vector.extract_strided_slice %77 {offsets = [48, 0], sizes = [16, 144], strides = [1, 1]} : vector<80x144xbf16> to vector<16x144xbf16>
    %c3_55 = arith.constant 3 : index
    %c0_56 = arith.constant 0 : index
    %c0_57 = arith.constant 0 : index
    %93 = vector.load %arg6[%c3_55, %c0_56, %c0_57] : memref<5x144x120xbf16, #tpu.memory_space<vmem>>, vector<1x144x120xbf16>
    %94 = vector.shape_cast %93 : vector<1x144x120xbf16> to vector<144x120xbf16>
    %cst_58 = arith.constant dense<0.000000e+00> : vector<16x120xf32>
    %95 = tpu.matmul %92, %94, %cst_58 {dimension_numbers = #tpu.dot_dimension_numbers<[1], [0], [0], [1], [0, 0, 1, 1], [], []>} : vector<16x144xbf16>, vector<144x120xbf16>, vector<16x120xf32> -> vector<16x120xf32>
    %96 = arith.addf %91, %95 : vector<16x120xf32>
    %97 = vector.extract_strided_slice %77 {offsets = [64, 0], sizes = [16, 144], strides = [1, 1]} : vector<80x144xbf16> to vector<16x144xbf16>
    %c4_59 = arith.constant 4 : index
    %c0_60 = arith.constant 0 : index
    %c0_61 = arith.constant 0 : index
    %98 = vector.load %arg6[%c4_59, %c0_60, %c0_61] : memref<5x144x120xbf16, #tpu.memory_space<vmem>>, vector<1x144x120xbf16>
    %99 = vector.shape_cast %98 : vector<1x144x120xbf16> to vector<144x120xbf16>
    %cst_62 = arith.constant dense<0.000000e+00> : vector<16x120xf32>
    %100 = tpu.matmul %97, %99, %cst_62 {dimension_numbers = #tpu.dot_dimension_numbers<[1], [0], [0], [1], [0, 0, 1, 1], [], []>} : vector<16x144xbf16>, vector<144x120xbf16>, vector<16x120xf32> -> vector<16x120xf32>
    %101 = arith.addf %96, %100 : vector<16x120xf32>
    %c0_63 = arith.constant 0 : index
    %c0_64 = arith.constant 0 : index
    %102 = vector.load %arg7[%c0_63, %c0_64] : memref<1x120xf32, #tpu.memory_space<vmem>>, vector<1x120xf32>
    %103 = vector.broadcast %102 : vector<1x120xf32> to vector<16x120xf32>
    %104 = arith.addf %101, %103 : vector<16x120xf32>
    %cst_65 = arith.constant 0.000000e+00 : f32
    %105 = vector.broadcast %cst_65 : f32 to vector<16x120xf32>
    %106 = arith.maximumf %104, %105 : vector<16x120xf32>
    %107 = arith.truncf %106 : vector<16x120xf32> to vector<16x120xbf16>
    %c0_66 = arith.constant 0 : index
    %c0_67 = arith.constant 0 : index
    %108 = vector.load %arg8[%c0_66, %c0_67] : memref<120x84xbf16, #tpu.memory_space<vmem>>, vector<120x84xbf16>
    %cst_68 = arith.constant dense<0.000000e+00> : vector<16x84xf32>
    %109 = tpu.matmul %107, %108, %cst_68 {dimension_numbers = #tpu.dot_dimension_numbers<[1], [0], [0], [1], [0, 0, 1, 1], [], []>} : vector<16x120xbf16>, vector<120x84xbf16>, vector<16x84xf32> -> vector<16x84xf32>
    %c0_69 = arith.constant 0 : index
    %c0_70 = arith.constant 0 : index
    %110 = vector.load %arg9[%c0_69, %c0_70] : memref<1x84xf32, #tpu.memory_space<vmem>>, vector<1x84xf32>
    %111 = vector.broadcast %110 : vector<1x84xf32> to vector<16x84xf32>
    %112 = arith.addf %109, %111 : vector<16x84xf32>
    %cst_71 = arith.constant 0.000000e+00 : f32
    %113 = vector.broadcast %cst_71 : f32 to vector<16x84xf32>
    %114 = arith.maximumf %112, %113 : vector<16x84xf32>
    %115 = arith.truncf %114 : vector<16x84xf32> to vector<16x84xbf16>
    %c0_72 = arith.constant 0 : index
    %c0_73 = arith.constant 0 : index
    %116 = vector.load %arg10[%c0_72, %c0_73] : memref<84x10xbf16, #tpu.memory_space<vmem>>, vector<84x10xbf16>
    %cst_74 = arith.constant dense<0.000000e+00> : vector<16x10xf32>
    %117 = tpu.matmul %115, %116, %cst_74 {dimension_numbers = #tpu.dot_dimension_numbers<[1], [0], [0], [1], [0, 0, 1, 1], [], []>} : vector<16x84xbf16>, vector<84x10xbf16>, vector<16x10xf32> -> vector<16x10xf32>
    %c0_75 = arith.constant 0 : index
    %c0_76 = arith.constant 0 : index
    %118 = vector.load %arg11[%c0_75, %c0_76] : memref<1x10xf32, #tpu.memory_space<vmem>>, vector<1x10xf32>
    %119 = vector.broadcast %118 : vector<1x10xf32> to vector<16x10xf32>
    %120 = arith.addf %117, %119 : vector<16x10xf32>
    %c0_77 = arith.constant 0 : index
    %c0_78 = arith.constant 0 : index
    %121 = vector.load %arg12[%c0_77, %c0_78] : memref<16x10xf32, #tpu.memory_space<vmem>>, vector<16x10xf32>
    tpu.vector_store %arg12[%c0_77, %c0_78], %120 {strides = array<i32>} : memref<16x10xf32, #tpu.memory_space<vmem>>, vector<16x10xf32>,
    return
  }
  func.func @transform_0(%arg0: i32) -> (i32, i32, i32) {
    %c0_i32 = arith.constant 0 : i32
    %c0_i32_0 = arith.constant 0 : i32
    %c0_i32_1 = arith.constant 0 : i32
    return %arg0, %c0_i32, %c0_i32_0 : i32, i32, i32
  }
  func.func @transform_1(%arg0: i32) -> (i32, i32, i32) {
    %c0_i32 = arith.constant 0 : i32
    %c0_i32_0 = arith.constant 0 : i32
    %c0_i32_1 = arith.constant 0 : i32
    %c0_i32_2 = arith.constant 0 : i32
    return %c0_i32, %c0_i32_0, %c0_i32_1 : i32, i32, i32
  }
  func.func @transform_2(%arg0: i32) -> (i32, i32) {
    %c0_i32 = arith.constant 0 : i32
    %c0_i32_0 = arith.constant 0 : i32
    %c0_i32_1 = arith.constant 0 : i32
    return %c0_i32, %c0_i32_0 : i32, i32
  }
  func.func @transform_3(%arg0: i32) -> (i32, i32, i32) {
    %c0_i32 = arith.constant 0 : i32
    %c0_i32_0 = arith.constant 0 : i32
    %c0_i32_1 = arith.constant 0 : i32
    %c0_i32_2 = arith.constant 0 : i32
    return %c0_i32, %c0_i32_0, %c0_i32_1 : i32, i32, i32
  }
  func.func @transform_4(%arg0: i32) -> (i32, i32) {
    %c0_i32 = arith.constant 0 : i32
    %c0_i32_0 = arith.constant 0 : i32
    %c0_i32_1 = arith.constant 0 : i32
    return %c0_i32, %c0_i32_0 : i32, i32
  }
  func.func @transform_5(%arg0: i32) -> (i32, i32, i32) {
    %c0_i32 = arith.constant 0 : i32
    %c0_i32_0 = arith.constant 0 : i32
    %c0_i32_1 = arith.constant 0 : i32
    %c0_i32_2 = arith.constant 0 : i32
    return %c0_i32, %c0_i32_0, %c0_i32_1 : i32, i32, i32
  }
  func.func @transform_6(%arg0: i32) -> (i32, i32) {
    %c0_i32 = arith.constant 0 : i32
    %c0_i32_0 = arith.constant 0 : i32
    %c0_i32_1 = arith.constant 0 : i32
    return %c0_i32, %c0_i32_0 : i32, i32
  }
  func.func @transform_7(%arg0: i32) -> (i32, i32) {
    %c0_i32 = arith.constant 0 : i32
    %c0_i32_0 = arith.constant 0 : i32
    %c0_i32_1 = arith.constant 0 : i32
    return %c0_i32, %c0_i32_0 : i32, i32
  }
  func.func @transform_8(%arg0: i32) -> (i32, i32) {
    %c0_i32 = arith.constant 0 : i32
    %c0_i32_0 = arith.constant 0 : i32
    %c0_i32_1 = arith.constant 0 : i32
    return %c0_i32, %c0_i32_0 : i32, i32
  }
  func.func @transform_9(%arg0: i32) -> (i32, i32) {
    %c0_i32 = arith.constant 0 : i32
    %c0_i32_0 = arith.constant 0 : i32
    %c0_i32_1 = arith.constant 0 : i32
    return %c0_i32, %c0_i32_0 : i32, i32
  }
  func.func @transform_10(%arg0: i32) -> (i32, i32) {
    %c0_i32 = arith.constant 0 : i32
    %c0_i32_0 = arith.constant 0 : i32
    %c0_i32_1 = arith.constant 0 : i32
    return %c0_i32, %c0_i32_0 : i32, i32
  }
  func.func @transform_11(%arg0: i32) -> (i32, i32) {
    %c0_i32 = arith.constant 0 : i32
    %c0_i32_0 = arith.constant 0 : i32
    return %arg0, %c0_i32 : i32, i32
  }
}

</mosaic_0001>

<llo_original>
// kernel: net_forward.1
$region0: #{net_forward.1}
  #allocation0 [shape = 'u32[]', space=smem, size = 0x4, offset = 0x4, fixed_abs, tag = 'smem constant byte address 0x4 - core index']
  #allocation1 [shape = 'u32[144,128]{1,0:T(1,128)}', space=vmem, size = 0x12000, scoped, tag = 'internal scratch']
  %s0 = inlined_call_operand.vmem [shape: bf16[1,512,96], index: 0, kind: input, shape index: {}]
  %s1 = inlined_call_operand.vmem [shape: bf16[5,96,168], index: 1, kind: input, shape index: {}]
  %s2 = inlined_call_operand.vmem [shape: f32[1,168], index: 2, kind: input, shape index: {}]
  %s3 = inlined_call_operand.vmem [shape: bf16[5,162,160], index: 3, kind: input, shape index: {}]
  %s4 = inlined_call_operand.vmem [shape: f32[1,160], index: 4, kind: input, shape index: {}]
  %s5 = inlined_call_operand.vmem [shape: bf16[5,144,120], index: 5, kind: input, shape index: {}]
  %s6 = inlined_call_operand.vmem [shape: f32[1,120], index: 6, kind: input, shape index: {}]
  %s7 = inlined_call_operand.vmem [shape: bf16[120,84], index: 7, kind: input, shape index: {}]
  %s8 = inlined_call_operand.vmem [shape: f32[1,84], index: 8, kind: input, shape index: {}]
  %s9 = inlined_call_operand.vmem [shape: bf16[84,10], index: 9, kind: input, shape index: {}]
  %s10 = inlined_call_operand.vmem [shape: f32[1,10], index: 10, kind: input, shape index: {}]
  %s11 = inlined_call_operand.vmem [shape: f32[16,10], index: 11, kind: output, shape index: {}]
  %s12 = sld [smem:[#allocation0]]
  $region54: #{net_forward.1} parent=0
    _
  %s14 = ssub.s32 1, %s12
  %s15 = scalar_select 0, %s14, %s12
  // Predicated region
  $region2: #{net_forward.1} parent=0 // pred_check
    _
  $region3: #{net_forward.1} parent=0 // pred_check_branch
    %17 = sbr.rel (0) target = $region5
  $region4: #{net_forward.1} parent=0 // pred_region
    _
  $region5: #{net_forward.1} parent=0 // pred_fallthru
    _
  // Predicated region
  $region6: #{net_forward.1} parent=0 // pred_check
    _
  $region7: #{net_forward.1} parent=0 // pred_check_branch
    %19 = sbr.rel (0) target = $region9
  $region8: #{net_forward.1} parent=0 // pred_region
    _
  $region9: #{net_forward.1} parent=0 // pred_fallthru
    _
  // Predicated region
  $region10: #{net_forward.1} parent=0 // pred_check
    _
  $region11: #{net_forward.1} parent=0 // pred_check_branch
    %21 = sbr.rel (0) target = $region13
  $region12: #{net_forward.1} parent=0 // pred_region
    _
  $region13: #{net_forward.1} parent=0 // pred_fallthru
    _
  // Predicated region
  $region14: #{net_forward.1} parent=0 // pred_check
    _
  $region15: #{net_forward.1} parent=0 // pred_check_branch
    %23 = sbr.rel (0) target = $region17
  $region16: #{net_forward.1} parent=0 // pred_region
    _
  $region17: #{net_forward.1} parent=0 // pred_fallthru
    _
  // Predicated region
  $region18: #{net_forward.1} parent=0 // pred_check
    _
  $region19: #{net_forward.1} parent=0 // pred_check_branch
    %25 = sbr.rel (0) target = $region21
  $region20: #{net_forward.1} parent=0 // pred_region
    _
  $region21: #{net_forward.1} parent=0 // pred_fallthru
    _
  // Predicated region
  $region22: #{net_forward.1} parent=0 // pred_check
    _
  $region23: #{net_forward.1} parent=0 // pred_check_branch
    %27 = sbr.rel (0) target = $region25
  $region24: #{net_forward.1} parent=0 // pred_region
    _
  $region25: #{net_forward.1} parent=0 // pred_fallthru
    _
  // Predicated region
  $region26: #{net_forward.1} parent=0 // pred_check
    _
  $region27: #{net_forward.1} parent=0 // pred_check_branch
    %29 = sbr.rel (0) target = $region29
  $region28: #{net_forward.1} parent=0 // pred_region
    _
  $region29: #{net_forward.1} parent=0 // pred_fallthru
    _
  // Predicated region
  $region30: #{net_forward.1} parent=0 // pred_check
    _
  $region31: #{net_forward.1} parent=0 // pred_check_branch
    %31 = sbr.rel (0) target = $region33
  $region32: #{net_forward.1} parent=0 // pred_region
    _
  $region33: #{net_forward.1} parent=0 // pred_fallthru
    _
  // Predicated region
  $region34: #{net_forward.1} parent=0 // pred_check
    _
  $region35: #{net_forward.1} parent=0 // pred_check_branch
    %33 = sbr.rel (0) target = $region37
  $region36: #{net_forward.1} parent=0 // pred_region
    _
  $region37: #{net_forward.1} parent=0 // pred_fallthru
    _
  // Predicated region
  $region38: #{net_forward.1} parent=0 // pred_check
    _
  $region39: #{net_forward.1} parent=0 // pred_check_branch
    %35 = sbr.rel (0) target = $region41
  $region40: #{net_forward.1} parent=0 // pred_region
    _
  $region41: #{net_forward.1} parent=0 // pred_fallthru
    _
  // Predicated region
  $region42: #{net_forward.1} parent=0 // pred_check
    _
  $region43: #{net_forward.1} parent=0 // pred_check_branch
    %37 = sbr.rel (0) target = $region45
  $region44: #{net_forward.1} parent=0 // pred_region
    _
  $region45: #{net_forward.1} parent=0 // pred_fallthru
    _
  %v39 = vld [vmem:[%s0] sm:$0xf]
  %v40 = vld [vmem:[%s0 + $0x4] sm:$0xf]
  %v41 = vld [vmem:[%s0 + $0x8] sm:$0xf]
  %v42 = vld [vmem:[%s0 + $0xc] sm:$0xf]
  %v43 = vld [vmem:[%s0 + $0x10] sm:$0xf]
  %v44 = vld [vmem:[%s0 + $0x14] sm:$0xf]
  %v45 = vld [vmem:[%s0 + $0x18] sm:$0xf]
  %v46 = vld [vmem:[%s0 + $0x1c] sm:$0xf]
  %v47 = vld [vmem:[%s0 + $0x20] sm:$0xf]
  %v48 = vld [vmem:[%s0 + $0x24] sm:$0xf]
  %v49 = vld [vmem:[%s0 + $0x28] sm:$0xf]
  %v50 = vld [vmem:[%s0 + $0x2c] sm:$0xf]
  %v51 = vld [vmem:[%s0 + $0x30] sm:$0xf]
  %v52 = vld [vmem:[%s0 + $0x34] sm:$0xf]
  %v53 = vld [vmem:[%s0 + $0x38] sm:$0xf]
  %v54 = vld [vmem:[%s0 + $0x3c] sm:$0xf]
  %v55 = vld [vmem:[%s0 + $0x40] sm:$0xf]
  %v56 = vld [vmem:[%s0 + $0x44] sm:$0xf]
  %v57 = vld [vmem:[%s0 + $0x48] sm:$0xf]
  %v58 = vld [vmem:[%s0 + $0x4c] sm:$0xf]
  %v59 = vld [vmem:[%s0 + $0x50] sm:$0xf]
  %v60 = vld [vmem:[%s0 + $0x54] sm:$0xf]
  %v61 = vld [vmem:[%s0 + $0x58] sm:$0xf]
  %v62 = vld [vmem:[%s0 + $0x5c] sm:$0xf]
  %v63 = vld [vmem:[%s0 + $0x60] sm:$0xf]
  %v64 = vld [vmem:[%s0 + $0x64] sm:$0xf]
  %v65 = vld [vmem:[%s0 + $0x68] sm:$0xf]
  %v66 = vld [vmem:[%s0 + $0x6c] sm:$0xf]
  %v67 = vld [vmem:[%s0 + $0x70] sm:$0xf]
  %v68 = vld [vmem:[%s0 + $0x74] sm:$0xf]
  %v69 = vld [vmem:[%s0 + $0x78] sm:$0xf]
  %v70 = vld [vmem:[%s0 + $0x7c] sm:$0xf]
  %v71 = vld [vmem:[%s0 + $0x80] sm:$0xf]
  %v72 = vld [vmem:[%s0 + $0x84] sm:$0xf]
  %v73 = vld [vmem:[%s0 + $0x88] sm:$0xf]
  %v74 = vld [vmem:[%s0 + $0x8c] sm:$0xf]
  %v75 = vld [vmem:[%s0 + $0x90] sm:$0xf]
  %v76 = vld [vmem:[%s0 + $0x94] sm:$0xf]
  %v77 = vld [vmem:[%s0 + $0x98] sm:$0xf]
  %v78 = vld [vmem:[%s0 + $0x9c] sm:$0xf]
  %v79 = vld [vmem:[%s0 + $0xa0] sm:$0xf]
  %v80 = vld [vmem:[%s0 + $0xa4] sm:$0xf]
  %v81 = vld [vmem:[%s0 + $0xa8] sm:$0xf]
  %v82 = vld [vmem:[%s0 + $0xac] sm:$0xf]
  %v83 = vld [vmem:[%s0 + $0xb0] sm:$0xf]
  %v84 = vld [vmem:[%s0 + $0xb4] sm:$0xf]
  %v85 = vld [vmem:[%s0 + $0xb8] sm:$0xf]
  %v86 = vld [vmem:[%s0 + $0xbc] sm:$0xf]
  %v87 = vld [vmem:[%s0 + $0xc0] sm:$0xf]
  %v88 = vld [vmem:[%s0 + $0xc4] sm:$0xf]
  %v89 = vld [vmem:[%s0 + $0xc8] sm:$0xf]
  %v90 = vld [vmem:[%s0 + $0xcc] sm:$0xf]
  %v91 = vld [vmem:[%s0 + $0xd0] sm:$0xf]
  %v92 = vld [vmem:[%s0 + $0xd4] sm:$0xf]
  %v93 = vld [vmem:[%s0 + $0xd8] sm:$0xf]
  %v94 = vld [vmem:[%s0 + $0xdc] sm:$0xf]
  %v95 = vld [vmem:[%s0 + $0xe0] sm:$0xf]
  %v96 = vld [vmem:[%s0 + $0xe4] sm:$0xf]
  %v97 = vld [vmem:[%s0 + $0xe8] sm:$0xf]
  %v98 = vld [vmem:[%s0 + $0xec] sm:$0xf]
  %v99 = vld [vmem:[%s0 + $0xf0] sm:$0xf]
  %v100 = vld [vmem:[%s0 + $0xf4] sm:$0xf]
  %v101 = vld [vmem:[%s0 + $0xf8] sm:$0xf]
  %v102 = vld [vmem:[%s0 + $0xfc] sm:$0xf]
  %v103 = vld [vmem:[%s1] sm:$0xff]
  %v104 = vld [vmem:[%s1 + $0x8] sm:$0xff]
  %v105 = vld [vmem:[%s1 + $0x10] sm:$0xff]
  %v106 = vld [vmem:[%s1 + $0x18] sm:$0xff]
  %v107 = vld [vmem:[%s1 + $0x20] sm:$0xff]
  %v108 = vld [vmem:[%s1 + $0x28] sm:$0xff]
  %v109 = vld [vmem:[%s1 + $0x30] sm:$0xff]
  %v110 = vld [vmem:[%s1 + $0x38] sm:$0xff]
  %v111 = vld [vmem:[%s1 + $0x40] sm:$0xff]
  %v112 = vld [vmem:[%s1 + $0x48] sm:$0xff]
  %v113 = vld [vmem:[%s1 + $0x50] sm:$0xff]
  %v114 = vld [vmem:[%s1 + $0x58] sm:$0xff]
  %s115 = scalar_lea.vmem %s1, 96
  %v116 = vld [vmem:[%s115] sm:$0xff]
  %v117 = vld [vmem:[%s115 + $0x8] sm:$0xff]
  %v118 = vld [vmem:[%s115 + $0x10] sm:$0xff]
  %v119 = vld [vmem:[%s115 + $0x18] sm:$0xff]
  %v120 = vld [vmem:[%s115 + $0x20] sm:$0xff]
  %v121 = vld [vmem:[%s115 + $0x28] sm:$0xff]
  %v122 = vld [vmem:[%s115 + $0x30] sm:$0xff]
  %v123 = vld [vmem:[%s115 + $0x38] sm:$0xff]
  %v124 = vld [vmem:[%s115 + $0x40] sm:$0xff]
  %v125 = vld [vmem:[%s115 + $0x48] sm:$0xff]
  %v126 = vld [vmem:[%s115 + $0x50] sm:$0xff]
  %v127 = vld [vmem:[%s115 + $0x58] sm:$0xff]
  %v184 = vunpack.c.l.b16 %v41
  %v185 = vunpack.c.l.b16 %v42
  %v186 = vunpack.c.l.b16 %v43
  %v187 = vunpack.c.l.b16 %v44
  %v188 = vunpack.c.l.b16 %v45
  %v189 = vunpack.c.l.b16 %v46
  %v190 = vunpack.c.l.b16 %v47
  %v191 = vunpack.c.l.b16 %v48
  %v192 = vunpack.c.l.b16 %v49
  %v193 = vunpack.c.l.b16 %v50
  %v194 = vunpack.c.l.b16 %v51
  %v195 = vunpack.c.l.b16 %v52
  %v196 = vunpack.c.l.b16 %v53
  %v197 = vunpack.c.l.b16 %v54
  %v198 = vunpack.c.l.b16 %v55
  %v199 = vunpack.c.l.b16 %v56
  %v200 = vunpack.c.l.b16 %v57
  %v201 = vunpack.c.l.b16 %v58
  %v202 = vunpack.c.l.b16 %v59
  %v203 = vunpack.c.l.b16 %v60
  %v204 = vunpack.c.l.b16 %v61
  %v205 = vunpack.c.l.b16 %v62
  %v206 = vunpack.c.l.b16 %v63
  %v207 = vunpack.c.l.b16 %v64
  %v208 = vunpack.c.l.b16 %v65
  %v209 = vunpack.c.l.b16 %v66
  %v210 = vunpack.c.l.b16 %v67
  %v211 = vunpack.c.l.b16 %v68
  %v212 = vunpack.c.l.b16 %v69
  %v213 = vunpack.c.l.b16 %v70
  %v214 = vunpack.c.l.b16 %v71
  %v215 = vunpack.c.l.b16 %v72
  %v216 = vunpack.c.l.b16 %v73
  %v217 = vunpack.c.l.b16 %v74
  %v218 = vunpack.c.l.b16 %v75
  %v219 = vunpack.c.l.b16 %v76
  %v220 = vunpack.c.l.b16 %v77
  %v221 = vunpack.c.l.b16 %v78
  %v222 = vunpack.c.l.b16 %v79
  %v223 = vunpack.c.l.b16 %v80
  %v224 = vunpack.c.l.b16 %v81
  %v225 = vunpack.c.l.b16 %v82
  %v226 = vunpack.c.l.b16 %v83
  %v227 = vunpack.c.l.b16 %v84
  %v228 = vunpack.c.l.b16 %v85
  %v229 = vunpack.c.l.b16 %v86
  %v230 = vunpack.c.l.b16 %v87
  %v231 = vunpack.c.l.b16 %v88
  %v232 = vunpack.c.l.b16 %v89
  %v233 = vunpack.c.l.b16 %v90
  %v234 = vunpack.c.l.b16 %v91
  %v235 = vunpack.c.l.b16 %v92
  %v236 = vunpack.c.l.b16 %v93
  %v237 = vunpack.c.l.b16 %v94
  %v238 = vunpack.c.l.b16 %v95
  %v239 = vunpack.c.l.b16 %v96
  %v240 = vpack.c.b16 %v185, %v184
  %v241 = vpack.c.b16 %v187, %v186
  %v242 = vpack.c.b16 %v189, %v188
  %v243 = vpack.c.b16 %v191, %v190
  %v244 = vpack.c.b16 %v193, %v192
  %v245 = vpack.c.b16 %v195, %v194
  %v246 = vpack.c.b16 %v197, %v196
  %v247 = vpack.c.b16 %v199, %v198
  %v248 = vpack.c.b16 %v201, %v200
  %v249 = vpack.c.b16 %v203, %v202
  %v250 = vpack.c.b16 %v205, %v204
  %v251 = vpack.c.b16 %v207, %v206
  %v252 = vpack.c.b16 %v209, %v208
  %v253 = vpack.c.b16 %v211, %v210
  %v254 = vpack.c.b16 %v213, %v212
  %v255 = vpack.c.b16 %v215, %v214
  %v256 = vpack.c.b16 %v217, %v216
  %v257 = vpack.c.b16 %v219, %v218
  %v258 = vpack.c.b16 %v221, %v220
  %v259 = vpack.c.b16 %v223, %v222
  %v260 = vpack.c.b16 %v225, %v224
  %v261 = vpack.c.b16 %v227, %v226
  %v262 = vpack.c.b16 %v229, %v228
  %v263 = vpack.c.b16 %v231, %v230
  %v264 = vpack.c.b16 %v233, %v232
  %v265 = vpack.c.b16 %v235, %v234
  %v266 = vpack.c.b16 %v237, %v236
  %v267 = vpack.c.b16 %v239, %v238
  %v280 = vunpack.c.l.b16 %v116
  %v281 = vunpack.c.h.b16 %v116
  %v282 = vunpack.c.l.b16 %v117
  %v283 = vunpack.c.h.b16 %v117
  %v284 = vunpack.c.l.b16 %v118
  %v285 = vunpack.c.h.b16 %v118
  %v286 = vunpack.c.l.b16 %v119
  %v287 = vunpack.c.h.b16 %v119
  %v288 = vunpack.c.l.b16 %v120
  %v289 = vunpack.c.h.b16 %v120
  %v290 = vunpack.c.l.b16 %v121
  %v291 = vunpack.c.h.b16 %v121
  %v292 = vunpack.c.l.b16 %v122
  %v293 = vunpack.c.h.b16 %v122
  %v294 = vunpack.c.l.b16 %v123
  %v295 = vunpack.c.h.b16 %v123
  %v296 = vunpack.c.l.b16 %v124
  %v297 = vunpack.c.h.b16 %v124
  %v298 = vunpack.c.l.b16 %v125
  %v299 = vunpack.c.h.b16 %v125
  %v300 = vunpack.c.l.b16 %v126
  %v301 = vunpack.c.h.b16 %v126
  %v302 = vunpack.c.l.b16 %v127
  %v303 = vunpack.c.h.b16 %v127
  %v304 = vpack.c.b16 %v282, %v280
  %v305 = vpack.c.b16 %v283, %v281
  %v306 = vpack.c.b16 %v286, %v284
  %v307 = vpack.c.b16 %v287, %v285
  %v308 = vpack.c.b16 %v290, %v288
  %v309 = vpack.c.b16 %v291, %v289
  %v310 = vpack.c.b16 %v294, %v292
  %v311 = vpack.c.b16 %v295, %v293
  %v312 = vpack.c.b16 %v298, %v296
  %v313 = vpack.c.b16 %v299, %v297
  %v314 = vpack.c.b16 %v302, %v300
  %v315 = vpack.c.b16 %v303, %v301
  %vm328 = vcmask 785408
  %v330 = vsel %vm328, %v240, 0
  %v333 = vsel %vm328, %v241, 0
  %v336 = vsel %vm328, %v242, 0
  %v339 = vsel %vm328, %v243, 0
  %v342 = vsel %vm328, %v244, 0
  %v345 = vsel %vm328, %v245, 0
  %v348 = vsel %vm328, %v246, 0
  %v351 = vsel %vm328, %v247, 0
  %v354 = vsel %vm328, %v248, 0
  %v357 = vsel %vm328, %v249, 0
  %v360 = vsel %vm328, %v250, 0
  %v363 = vsel %vm328, %v251, 0
  %v366 = vsel %vm328, %v252, 0
  %v369 = vsel %vm328, %v253, 0
  %v372 = vsel %vm328, %v254, 0
  %v375 = vsel %vm328, %v255, 0
  %v378 = vsel %vm328, %v256, 0
  %v381 = vsel %vm328, %v257, 0
  %v384 = vsel %vm328, %v258, 0
  %v387 = vsel %vm328, %v259, 0
  %v390 = vsel %vm328, %v260, 0
  %v393 = vsel %vm328, %v261, 0
  %v396 = vsel %vm328, %v262, 0
  %v399 = vsel %vm328, %v263, 0
  %v402 = vsel %vm328, %v264, 0
  %v405 = vsel %vm328, %v265, 0
  %v408 = vsel %vm328, %v266, 0
  %v411 = vsel %vm328, %v267, 0
  %413 = vmatprep.subr.bf16.mxu0 0
  %414 = vmatpush1.bf16.msra.mxu0 0
  %415 = vmatprep.subr.bf16.mxu0 0
  %416 = vmatpush1.bf16.msra.mxu0 0
  %417 = vmatprep.subr.bf16.mxu0 %v315
  %418 = vmatpush1.bf16.msra.mxu0 %v314
  %419 = vmatprep.subr.bf16.mxu0 %v313
  %420 = vmatpush1.bf16.msra.mxu0 %v312
  %421 = vmatprep.subr.bf16.mxu0 %v311
  %422 = vmatpush1.bf16.msra.mxu0 %v310
  %423 = vmatprep.subr.bf16.mxu0 %v309
  %424 = vmatpush1.bf16.msra.mxu0 %v308
  %425 = vmatprep.subr.bf16.mxu0 %v307
  %426 = vmatpush1.bf16.msra.mxu0 %v306
  %427 = vmatprep.subr.bf16.mxu0 %v305
  %428 = vmatpush1.bf16.msra.mxu0 %v304
  %429 = vmatprep.subr.bf16.mxu0 0
  %430 = vmatpush2.bf16.msra.mxu0 0
  %431 = vmatprep.subr.bf16.mxu0 0
  %432 = vmatpush2.bf16.msra.mxu0 0
  %433 = vmatprep.subr.bf16.mxu0 0
  %434 = vmatpush2.bf16.msra.mxu0 0
  %435 = vmatprep.subr.bf16.mxu0 0
  %436 = vmatpush2.bf16.msra.mxu0 0
  %437 = vmatprep.subr.bf16.mxu0 0
  %438 = vmatpush2.bf16.msra.mxu0 0
  %439 = vmatprep.subr.bf16.mxu0 0
  %440 = vmatpush2.bf16.msra.mxu0 0
  %441 = vmatprep.subr.bf16.mxu0 0
  %442 = vmatpush2.bf16.msra.mxu0 0
  %443 = vmatprep.subr.bf16.mxu0 0
  %444 = vmatpush2.bf16.msra.mxu0 0
  %445 = vmatprep.mubr.bf16.mxu0 0
  %446 = vmatmul.mubr.bf16.gmra.mxu0 %v330
  %v447 = vpop.f32.mrf.mxu0
  %v448 = vadd.f32 0.0, %v447
  %v449 = vpop.f32.mrf.mxu0
  %v450 = vadd.f32 0.0, %v449
  %v451 = vpop.f32.mrf.mxu0
  %v452 = vadd.f32 0.0, %v451
  %v453 = vpop.f32.mrf.mxu0
  %v454 = vadd.f32 0.0, %v453
  %455 = vmatprep.mubr.bf16.mxu0 0
  %456 = vmatmul.mubr.bf16.gmra.mxu0 %v333
  %v457 = vpop.f32.mrf.mxu0
  %v458 = vadd.f32 0.0, %v457
  %v459 = vpop.f32.mrf.mxu0
  %v460 = vadd.f32 0.0, %v459
  %v461 = vpop.f32.mrf.mxu0
  %v462 = vadd.f32 0.0, %v461
  %v463 = vpop.f32.mrf.mxu0
  %v464 = vadd.f32 0.0, %v463
  %465 = vmatprep.mubr.bf16.mxu0 0
  %466 = vmatmul.mubr.bf16.gmra.mxu0 %v336
  %v467 = vpop.f32.mrf.mxu0
  %v468 = vadd.f32 0.0, %v467
  %v469 = vpop.f32.mrf.mxu0
  %v470 = vadd.f32 0.0, %v469
  %v471 = vpop.f32.mrf.mxu0
  %v472 = vadd.f32 0.0, %v471
  %v473 = vpop.f32.mrf.mxu0
  %v474 = vadd.f32 0.0, %v473
  %475 = vmatprep.mubr.bf16.mxu0 0
  %476 = vmatmul.mubr.bf16.gmra.mxu0 %v339
  %v477 = vpop.f32.mrf.mxu0
  %v478 = vadd.f32 0.0, %v477
  %v479 = vpop.f32.mrf.mxu0
  %v480 = vadd.f32 0.0, %v479
  %v481 = vpop.f32.mrf.mxu0
  %v482 = vadd.f32 0.0, %v481
  %v483 = vpop.f32.mrf.mxu0
  %v484 = vadd.f32 0.0, %v483
  %485 = vmatprep.mubr.bf16.mxu0 0
  %486 = vmatmul.mubr.bf16.gmra.mxu0 %v342
  %v487 = vpop.f32.mrf.mxu0
  %v488 = vadd.f32 0.0, %v487
  %v489 = vpop.f32.mrf.mxu0
  %v490 = vadd.f32 0.0, %v489
  %v491 = vpop.f32.mrf.mxu0
  %v492 = vadd.f32 0.0, %v491
  %v493 = vpop.f32.mrf.mxu0
  %v494 = vadd.f32 0.0, %v493
  %495 = vmatprep.mubr.bf16.mxu0 0
  %496 = vmatmul.mubr.bf16.gmra.mxu0 %v345
  %v497 = vpop.f32.mrf.mxu0
  %v498 = vadd.f32 0.0, %v497
  %v499 = vpop.f32.mrf.mxu0
  %v500 = vadd.f32 0.0, %v499
  %v501 = vpop.f32.mrf.mxu0
  %v502 = vadd.f32 0.0, %v501
  %v503 = vpop.f32.mrf.mxu0
  %v504 = vadd.f32 0.0, %v503
  %505 = vmatprep.mubr.bf16.mxu0 0
  %506 = vmatmul.mubr.bf16.gmra.mxu0 %v348
  %v507 = vpop.f32.mrf.mxu0
  %v508 = vadd.f32 0.0, %v507
  %v509 = vpop.f32.mrf.mxu0
  %v510 = vadd.f32 0.0, %v509
  %v511 = vpop.f32.mrf.mxu0
  %v512 = vadd.f32 0.0, %v511
  %v513 = vpop.f32.mrf.mxu0
  %v514 = vadd.f32 0.0, %v513
  %515 = vmatprep.mubr.bf16.mxu0 0
  %516 = vmatmul.mubr.bf16.gmra.mxu0 %v351
  %v517 = vpop.f32.mrf.mxu0
  %v518 = vadd.f32 0.0, %v517
  %v519 = vpop.f32.mrf.mxu0
  %v520 = vadd.f32 0.0, %v519
  %v521 = vpop.f32.mrf.mxu0
  %v522 = vadd.f32 0.0, %v521
  %v523 = vpop.f32.mrf.mxu0
  %v524 = vadd.f32 0.0, %v523
  %525 = vmatprep.mubr.bf16.mxu0 0
  %526 = vmatmul.mubr.bf16.gmra.mxu0 %v354
  %v527 = vpop.f32.mrf.mxu0
  %v528 = vadd.f32 0.0, %v527
  %v529 = vpop.f32.mrf.mxu0
  %v530 = vadd.f32 0.0, %v529
  %v531 = vpop.f32.mrf.mxu0
  %v532 = vadd.f32 0.0, %v531
  %v533 = vpop.f32.mrf.mxu0
  %v534 = vadd.f32 0.0, %v533
  %535 = vmatprep.mubr.bf16.mxu0 0
  %536 = vmatmul.mubr.bf16.gmra.mxu0 %v357
  %v537 = vpop.f32.mrf.mxu0
  %v538 = vadd.f32 0.0, %v537
  %v539 = vpop.f32.mrf.mxu0
  %v540 = vadd.f32 0.0, %v539
  %v541 = vpop.f32.mrf.mxu0
  %v542 = vadd.f32 0.0, %v541
  %v543 = vpop.f32.mrf.mxu0
  %v544 = vadd.f32 0.0, %v543
  %545 = vmatprep.mubr.bf16.mxu0 0
  %546 = vmatmul.mubr.bf16.gmra.mxu0 %v360
  %v547 = vpop.f32.mrf.mxu0
  %v548 = vadd.f32 0.0, %v547
  %v549 = vpop.f32.mrf.mxu0
  %v550 = vadd.f32 0.0, %v549
  %v551 = vpop.f32.mrf.mxu0
  %v552 = vadd.f32 0.0, %v551
  %v553 = vpop.f32.mrf.mxu0
  %v554 = vadd.f32 0.0, %v553
  %555 = vmatprep.mubr.bf16.mxu0 0
  %556 = vmatmul.mubr.bf16.gmra.mxu0 %v363
  %v557 = vpop.f32.mrf.mxu0
  %v558 = vadd.f32 0.0, %v557
  %v559 = vpop.f32.mrf.mxu0
  %v560 = vadd.f32 0.0, %v559
  %v561 = vpop.f32.mrf.mxu0
  %v562 = vadd.f32 0.0, %v561
  %v563 = vpop.f32.mrf.mxu0
  %v564 = vadd.f32 0.0, %v563
  %565 = vmatprep.mubr.bf16.mxu0 0
  %566 = vmatmul.mubr.bf16.gmra.mxu0 %v366
  %v567 = vpop.f32.mrf.mxu0
  %v568 = vadd.f32 0.0, %v567
  %v569 = vpop.f32.mrf.mxu0
  %v570 = vadd.f32 0.0, %v569
  %v571 = vpop.f32.mrf.mxu0
  %v572 = vadd.f32 0.0, %v571
  %v573 = vpop.f32.mrf.mxu0
  %v574 = vadd.f32 0.0, %v573
  %575 = vmatprep.mubr.bf16.mxu0 0
  %576 = vmatmul.mubr.bf16.gmra.mxu0 %v369
  %v577 = vpop.f32.mrf.mxu0
  %v578 = vadd.f32 0.0, %v577
  %v579 = vpop.f32.mrf.mxu0
  %v580 = vadd.f32 0.0, %v579
  %v581 = vpop.f32.mrf.mxu0
  %v582 = vadd.f32 0.0, %v581
  %v583 = vpop.f32.mrf.mxu0
  %v584 = vadd.f32 0.0, %v583
  %585 = vmatprep.mubr.bf16.mxu0 0
  %586 = vmatmul.mubr.bf16.gmra.mxu0 %v372
  %v587 = vpop.f32.mrf.mxu0
  %v588 = vadd.f32 0.0, %v587
  %v589 = vpop.f32.mrf.mxu0
  %v590 = vadd.f32 0.0, %v589
  %v591 = vpop.f32.mrf.mxu0
  %v592 = vadd.f32 0.0, %v591
  %v593 = vpop.f32.mrf.mxu0
  %v594 = vadd.f32 0.0, %v593
  %595 = vmatprep.mubr.bf16.mxu0 0
  %596 = vmatmul.mubr.bf16.gmra.mxu0 %v375
  %v597 = vpop.f32.mrf.mxu0
  %v598 = vadd.f32 0.0, %v597
  %v599 = vpop.f32.mrf.mxu0
  %v600 = vadd.f32 0.0, %v599
  %v601 = vpop.f32.mrf.mxu0
  %v602 = vadd.f32 0.0, %v601
  %v603 = vpop.f32.mrf.mxu0
  %v604 = vadd.f32 0.0, %v603
  %605 = vmatprep.mubr.bf16.mxu0 0
  %606 = vmatmul.mubr.bf16.gmra.mxu0 %v378
  %v607 = vpop.f32.mrf.mxu0
  %v608 = vadd.f32 0.0, %v607
  %v609 = vpop.f32.mrf.mxu0
  %v610 = vadd.f32 0.0, %v609
  %v611 = vpop.f32.mrf.mxu0
  %v612 = vadd.f32 0.0, %v611
  %v613 = vpop.f32.mrf.mxu0
  %v614 = vadd.f32 0.0, %v613
  %615 = vmatprep.mubr.bf16.mxu0 0
  %616 = vmatmul.mubr.bf16.gmra.mxu0 %v381
  %v617 = vpop.f32.mrf.mxu0
  %v618 = vadd.f32 0.0, %v617
  %v619 = vpop.f32.mrf.mxu0
  %v620 = vadd.f32 0.0, %v619
  %v621 = vpop.f32.mrf.mxu0
  %v622 = vadd.f32 0.0, %v621
  %v623 = vpop.f32.mrf.mxu0
  %v624 = vadd.f32 0.0, %v623
  %625 = vmatprep.mubr.bf16.mxu0 0
  %626 = vmatmul.mubr.bf16.gmra.mxu0 %v384
  %v627 = vpop.f32.mrf.mxu0
  %v628 = vadd.f32 0.0, %v627
  %v629 = vpop.f32.mrf.mxu0
  %v630 = vadd.f32 0.0, %v629
  %v631 = vpop.f32.mrf.mxu0
  %v632 = vadd.f32 0.0, %v631
  %v633 = vpop.f32.mrf.mxu0
  %v634 = vadd.f32 0.0, %v633
  %635 = vmatprep.mubr.bf16.mxu0 0
  %636 = vmatmul.mubr.bf16.gmra.mxu0 %v387
  %v637 = vpop.f32.mrf.mxu0
  %v638 = vadd.f32 0.0, %v637
  %v639 = vpop.f32.mrf.mxu0
  %v640 = vadd.f32 0.0, %v639
  %v641 = vpop.f32.mrf.mxu0
  %v642 = vadd.f32 0.0, %v641
  %v643 = vpop.f32.mrf.mxu0
  %v644 = vadd.f32 0.0, %v643
  %645 = vmatprep.mubr.bf16.mxu0 0
  %646 = vmatmul.mubr.bf16.gmra.mxu0 %v390
  %v647 = vpop.f32.mrf.mxu0
  %v648 = vadd.f32 0.0, %v647
  %v649 = vpop.f32.mrf.mxu0
  %v650 = vadd.f32 0.0, %v649
  %v651 = vpop.f32.mrf.mxu0
  %v652 = vadd.f32 0.0, %v651
  %v653 = vpop.f32.mrf.mxu0
  %v654 = vadd.f32 0.0, %v653
  %655 = vmatprep.mubr.bf16.mxu0 0
  %656 = vmatmul.mubr.bf16.gmra.mxu0 %v393
  %v657 = vpop.f32.mrf.mxu0
  %v658 = vadd.f32 0.0, %v657
  %v659 = vpop.f32.mrf.mxu0
  %v660 = vadd.f32 0.0, %v659
  %v661 = vpop.f32.mrf.mxu0
  %v662 = vadd.f32 0.0, %v661
  %v663 = vpop.f32.mrf.mxu0
  %v664 = vadd.f32 0.0, %v663
  %665 = vmatprep.mubr.bf16.mxu0 0
  %666 = vmatmul.mubr.bf16.gmra.mxu0 %v396
  %v667 = vpop.f32.mrf.mxu0
  %v668 = vadd.f32 0.0, %v667
  %v669 = vpop.f32.mrf.mxu0
  %v670 = vadd.f32 0.0, %v669
  %v671 = vpop.f32.mrf.mxu0
  %v672 = vadd.f32 0.0, %v671
  %v673 = vpop.f32.mrf.mxu0
  %v674 = vadd.f32 0.0, %v673
  %675 = vmatprep.mubr.bf16.mxu0 0
  %676 = vmatmul.mubr.bf16.gmra.mxu0 %v399
  %v677 = vpop.f32.mrf.mxu0
  %v678 = vadd.f32 0.0, %v677
  %v679 = vpop.f32.mrf.mxu0
  %v680 = vadd.f32 0.0, %v679
  %v681 = vpop.f32.mrf.mxu0
  %v682 = vadd.f32 0.0, %v681
  %v683 = vpop.f32.mrf.mxu0
  %v684 = vadd.f32 0.0, %v683
  %685 = vmatprep.mubr.bf16.mxu0 0
  %686 = vmatmul.mubr.bf16.gmra.mxu0 %v402
  %v687 = vpop.f32.mrf.mxu0
  %v688 = vadd.f32 0.0, %v687
  %v689 = vpop.f32.mrf.mxu0
  %v690 = vadd.f32 0.0, %v689
  %v691 = vpop.f32.mrf.mxu0
  %v692 = vadd.f32 0.0, %v691
  %v693 = vpop.f32.mrf.mxu0
  %v694 = vadd.f32 0.0, %v693
  %695 = vmatprep.mubr.bf16.mxu0 0
  %696 = vmatmul.mubr.bf16.gmra.mxu0 %v405
  %v697 = vpop.f32.mrf.mxu0
  %v698 = vadd.f32 0.0, %v697
  %v699 = vpop.f32.mrf.mxu0
  %v700 = vadd.f32 0.0, %v699
  %v701 = vpop.f32.mrf.mxu0
  %v702 = vadd.f32 0.0, %v701
  %v703 = vpop.f32.mrf.mxu0
  %v704 = vadd.f32 0.0, %v703
  %705 = vmatprep.mubr.bf16.mxu0 0
  %706 = vmatmul.mubr.bf16.gmra.mxu0 %v408
  %v707 = vpop.f32.mrf.mxu0
  %v708 = vadd.f32 0.0, %v707
  %v709 = vpop.f32.mrf.mxu0
  %v710 = vadd.f32 0.0, %v709
  %v711 = vpop.f32.mrf.mxu0
  %v712 = vadd.f32 0.0, %v711
  %v713 = vpop.f32.mrf.mxu0
  %v714 = vadd.f32 0.0, %v713
  %715 = vmatprep.mubr.bf16.mxu0 0
  %716 = vmatmul.mubr.bf16.gmra.mxu0 %v411
  %v717 = vpop.f32.mrf.mxu0
  %v718 = vadd.f32 0.0, %v717
  %v719 = vpop.f32.mrf.mxu0
  %v720 = vadd.f32 0.0, %v719
  %v721 = vpop.f32.mrf.mxu0
  %v722 = vadd.f32 0.0, %v721
  %v723 = vpop.f32.mrf.mxu0
  %v724 = vadd.f32 0.0, %v723
  %725 = vdwg.mxu0
  %v728 = vunpack.c.l.b16 %v39
  %v729 = vunpack.c.l.b16 %v40
  %v730 = vpack.c.b16 %v729, %v728
  %v743 = vunpack.c.l.b16 %v103
  %v744 = vunpack.c.h.b16 %v103
  %v745 = vunpack.c.l.b16 %v104
  %v746 = vunpack.c.h.b16 %v104
  %v747 = vunpack.c.l.b16 %v105
  %v748 = vunpack.c.h.b16 %v105
  %v749 = vunpack.c.l.b16 %v106
  %v750 = vunpack.c.h.b16 %v106
  %v751 = vunpack.c.l.b16 %v107
  %v752 = vunpack.c.h.b16 %v107
  %v753 = vunpack.c.l.b16 %v108
  %v754 = vunpack.c.h.b16 %v108
  %v755 = vunpack.c.l.b16 %v109
  %v756 = vunpack.c.h.b16 %v109
  %v757 = vunpack.c.l.b16 %v110
  %v758 = vunpack.c.h.b16 %v110
  %v759 = vunpack.c.l.b16 %v111
  %v760 = vunpack.c.h.b16 %v111
  %v761 = vunpack.c.l.b16 %v112
  %v762 = vunpack.c.h.b16 %v112
  %v763 = vunpack.c.l.b16 %v113
  %v764 = vunpack.c.h.b16 %v113
  %v765 = vunpack.c.l.b16 %v114
  %v766 = vunpack.c.h.b16 %v114
  %v767 = vpack.c.b16 %v745, %v743
  %v768 = vpack.c.b16 %v746, %v744
  %v769 = vpack.c.b16 %v749, %v747
  %v770 = vpack.c.b16 %v750, %v748
  %v771 = vpack.c.b16 %v753, %v751
  %v772 = vpack.c.b16 %v754, %v752
  %v773 = vpack.c.b16 %v757, %v755
  %v774 = vpack.c.b16 %v758, %v756
  %v775 = vpack.c.b16 %v761, %v759
  %v776 = vpack.c.b16 %v762, %v760
  %v777 = vpack.c.b16 %v765, %v763
  %v778 = vpack.c.b16 %v766, %v764
  %v792 = vsel %vm328, %v730, 0
  %794 = vmatprep.subr.bf16.mxu0 0
  %795 = vmatpush1.bf16.msra.mxu0 0
  %796 = vmatprep.subr.bf16.mxu0 0
  %797 = vmatpush1.bf16.msra.mxu0 0
  %798 = vmatprep.subr.bf16.mxu0 %v778
  %799 = vmatpush1.bf16.msra.mxu0 %v777
  %800 = vmatprep.subr.bf16.mxu0 %v776
  %801 = vmatpush1.bf16.msra.mxu0 %v775
  %802 = vmatprep.subr.bf16.mxu0 %v774
  %803 = vmatpush1.bf16.msra.mxu0 %v773
  %804 = vmatprep.subr.bf16.mxu0 %v772
  %805 = vmatpush1.bf16.msra.mxu0 %v771
  %806 = vmatprep.subr.bf16.mxu0 %v770
  %807 = vmatpush1.bf16.msra.mxu0 %v769
  %808 = vmatprep.subr.bf16.mxu0 %v768
  %809 = vmatpush1.bf16.msra.mxu0 %v767
  %810 = vmatprep.subr.bf16.mxu0 0
  %811 = vmatpush2.bf16.msra.mxu0 0
  %812 = vmatprep.subr.bf16.mxu0 0
  %813 = vmatpush2.bf16.msra.mxu0 0
  %814 = vmatprep.subr.bf16.mxu0 0
  %815 = vmatpush2.bf16.msra.mxu0 0
  %816 = vmatprep.subr.bf16.mxu0 0
  %817 = vmatpush2.bf16.msra.mxu0 0
  %818 = vmatprep.subr.bf16.mxu0 0
  %819 = vmatpush2.bf16.msra.mxu0 0
  %820 = vmatprep.subr.bf16.mxu0 0
  %821 = vmatpush2.bf16.msra.mxu0 0
  %822 = vmatprep.subr.bf16.mxu0 0
  %823 = vmatpush2.bf16.msra.mxu0 0
  %824 = vmatprep.subr.bf16.mxu0 0
  %825 = vmatpush2.bf16.msra.mxu0 0
  %826 = vmatprep.mubr.bf16.mxu0 0
  %827 = vmatmul.mubr.bf16.gmra.mxu0 %v792
  %v828 = vpop.f32.mrf.mxu0
  %v829 = vadd.f32 %v448, %v828
  %v830 = vpop.f32.mrf.mxu0
  %v831 = vadd.f32 %v450, %v830
  %v832 = vpop.f32.mrf.mxu0
  %v833 = vadd.f32 %v452, %v832
  %v834 = vpop.f32.mrf.mxu0
  %v835 = vadd.f32 %v454, %v834
  %836 = vmatprep.mubr.bf16.mxu0 0
  %837 = vmatmul.mubr.bf16.gmra.mxu0 %v330
  %v838 = vpop.f32.mrf.mxu0
  %v839 = vadd.f32 %v458, %v838
  %v840 = vpop.f32.mrf.mxu0
  %v841 = vadd.f32 %v460, %v840
  %v842 = vpop.f32.mrf.mxu0
  %v843 = vadd.f32 %v462, %v842
  %v844 = vpop.f32.mrf.mxu0
  %v845 = vadd.f32 %v464, %v844
  %846 = vmatprep.mubr.bf16.mxu0 0
  %847 = vmatmul.mubr.bf16.gmra.mxu0 %v333
  %v848 = vpop.f32.mrf.mxu0
  %v849 = vadd.f32 %v468, %v848
  %v850 = vpop.f32.mrf.mxu0
  %v851 = vadd.f32 %v470, %v850
  %v852 = vpop.f32.mrf.mxu0
  %v853 = vadd.f32 %v472, %v852
  %v854 = vpop.f32.mrf.mxu0
  %v855 = vadd.f32 %v474, %v854
  %856 = vmatprep.mubr.bf16.mxu0 0
  %857 = vmatmul.mubr.bf16.gmra.mxu0 %v336
  %v858 = vpop.f32.mrf.mxu0
  %v859 = vadd.f32 %v478, %v858
  %v860 = vpop.f32.mrf.mxu0
  %v861 = vadd.f32 %v480, %v860
  %v862 = vpop.f32.mrf.mxu0
  %v863 = vadd.f32 %v482, %v862
  %v864 = vpop.f32.mrf.mxu0
  %v865 = vadd.f32 %v484, %v864
  %866 = vmatprep.mubr.bf16.mxu0 0
  %867 = vmatmul.mubr.bf16.gmra.mxu0 %v339
  %v868 = vpop.f32.mrf.mxu0
  %v869 = vadd.f32 %v488, %v868
  %v870 = vpop.f32.mrf.mxu0
  %v871 = vadd.f32 %v490, %v870
  %v872 = vpop.f32.mrf.mxu0
  %v873 = vadd.f32 %v492, %v872
  %v874 = vpop.f32.mrf.mxu0
  %v875 = vadd.f32 %v494, %v874
  %876 = vmatprep.mubr.bf16.mxu0 0
  %877 = vmatmul.mubr.bf16.gmra.mxu0 %v342
  %v878 = vpop.f32.mrf.mxu0
  %v879 = vadd.f32 %v498, %v878
  %v880 = vpop.f32.mrf.mxu0
  %v881 = vadd.f32 %v500, %v880
  %v882 = vpop.f32.mrf.mxu0
  %v883 = vadd.f32 %v502, %v882
  %v884 = vpop.f32.mrf.mxu0
  %v885 = vadd.f32 %v504, %v884
  %886 = vmatprep.mubr.bf16.mxu0 0
  %887 = vmatmul.mubr.bf16.gmra.mxu0 %v345
  %v888 = vpop.f32.mrf.mxu0
  %v889 = vadd.f32 %v508, %v888
  %v890 = vpop.f32.mrf.mxu0
  %v891 = vadd.f32 %v510, %v890
  %v892 = vpop.f32.mrf.mxu0
  %v893 = vadd.f32 %v512, %v892
  %v894 = vpop.f32.mrf.mxu0
  %v895 = vadd.f32 %v514, %v894
  %896 = vmatprep.mubr.bf16.mxu0 0
  %897 = vmatmul.mubr.bf16.gmra.mxu0 %v348
  %v898 = vpop.f32.mrf.mxu0
  %v899 = vadd.f32 %v518, %v898
  %v900 = vpop.f32.mrf.mxu0
  %v901 = vadd.f32 %v520, %v900
  %v902 = vpop.f32.mrf.mxu0
  %v903 = vadd.f32 %v522, %v902
  %v904 = vpop.f32.mrf.mxu0
  %v905 = vadd.f32 %v524, %v904
  %906 = vmatprep.mubr.bf16.mxu0 0
  %907 = vmatmul.mubr.bf16.gmra.mxu0 %v351
  %v908 = vpop.f32.mrf.mxu0
  %v909 = vadd.f32 %v528, %v908
  %v910 = vpop.f32.mrf.mxu0
  %v911 = vadd.f32 %v530, %v910
  %v912 = vpop.f32.mrf.mxu0
  %v913 = vadd.f32 %v532, %v912
  %v914 = vpop.f32.mrf.mxu0
  %v915 = vadd.f32 %v534, %v914
  %916 = vmatprep.mubr.bf16.mxu0 0
  %917 = vmatmul.mubr.bf16.gmra.mxu0 %v354
  %v918 = vpop.f32.mrf.mxu0
  %v919 = vadd.f32 %v538, %v918
  %v920 = vpop.f32.mrf.mxu0
  %v921 = vadd.f32 %v540, %v920
  %v922 = vpop.f32.mrf.mxu0
  %v923 = vadd.f32 %v542, %v922
  %v924 = vpop.f32.mrf.mxu0
  %v925 = vadd.f32 %v544, %v924
  %926 = vmatprep.mubr.bf16.mxu0 0
  %927 = vmatmul.mubr.bf16.gmra.mxu0 %v357
  %v928 = vpop.f32.mrf.mxu0
  %v929 = vadd.f32 %v548, %v928
  %v930 = vpop.f32.mrf.mxu0
  %v931 = vadd.f32 %v550, %v930
  %v932 = vpop.f32.mrf.mxu0
  %v933 = vadd.f32 %v552, %v932
  %v934 = vpop.f32.mrf.mxu0
  %v935 = vadd.f32 %v554, %v934
  %936 = vmatprep.mubr.bf16.mxu0 0
  %937 = vmatmul.mubr.bf16.gmra.mxu0 %v360
  %v938 = vpop.f32.mrf.mxu0
  %v939 = vadd.f32 %v558, %v938
  %v940 = vpop.f32.mrf.mxu0
  %v941 = vadd.f32 %v560, %v940
  %v942 = vpop.f32.mrf.mxu0
  %v943 = vadd.f32 %v562, %v942
  %v944 = vpop.f32.mrf.mxu0
  %v945 = vadd.f32 %v564, %v944
  %946 = vmatprep.mubr.bf16.mxu0 0
  %947 = vmatmul.mubr.bf16.gmra.mxu0 %v363
  %v948 = vpop.f32.mrf.mxu0
  %v949 = vadd.f32 %v568, %v948
  %v950 = vpop.f32.mrf.mxu0
  %v951 = vadd.f32 %v570, %v950
  %v952 = vpop.f32.mrf.mxu0
  %v953 = vadd.f32 %v572, %v952
  %v954 = vpop.f32.mrf.mxu0
  %v955 = vadd.f32 %v574, %v954
  %956 = vmatprep.mubr.bf16.mxu0 0
  %957 = vmatmul.mubr.bf16.gmra.mxu0 %v366
  %v958 = vpop.f32.mrf.mxu0
  %v959 = vadd.f32 %v578, %v958
  %v960 = vpop.f32.mrf.mxu0
  %v961 = vadd.f32 %v580, %v960
  %v962 = vpop.f32.mrf.mxu0
  %v963 = vadd.f32 %v582, %v962
  %v964 = vpop.f32.mrf.mxu0
  %v965 = vadd.f32 %v584, %v964
  %966 = vmatprep.mubr.bf16.mxu0 0
  %967 = vmatmul.mubr.bf16.gmra.mxu0 %v369
  %v968 = vpop.f32.mrf.mxu0
  %v969 = vadd.f32 %v588, %v968
  %v970 = vpop.f32.mrf.mxu0
  %v971 = vadd.f32 %v590, %v970
  %v972 = vpop.f32.mrf.mxu0
  %v973 = vadd.f32 %v592, %v972
  %v974 = vpop.f32.mrf.mxu0
  %v975 = vadd.f32 %v594, %v974
  %976 = vmatprep.mubr.bf16.mxu0 0
  %977 = vmatmul.mubr.bf16.gmra.mxu0 %v372
  %v978 = vpop.f32.mrf.mxu0
  %v979 = vadd.f32 %v598, %v978
  %v980 = vpop.f32.mrf.mxu0
  %v981 = vadd.f32 %v600, %v980
  %v982 = vpop.f32.mrf.mxu0
  %v983 = vadd.f32 %v602, %v982
  %v984 = vpop.f32.mrf.mxu0
  %v985 = vadd.f32 %v604, %v984
  %986 = vmatprep.mubr.bf16.mxu0 0
  %987 = vmatmul.mubr.bf16.gmra.mxu0 %v375
  %v988 = vpop.f32.mrf.mxu0
  %v989 = vadd.f32 %v608, %v988
  %v990 = vpop.f32.mrf.mxu0
  %v991 = vadd.f32 %v610, %v990
  %v992 = vpop.f32.mrf.mxu0
  %v993 = vadd.f32 %v612, %v992
  %v994 = vpop.f32.mrf.mxu0
  %v995 = vadd.f32 %v614, %v994
  %996 = vmatprep.mubr.bf16.mxu0 0
  %997 = vmatmul.mubr.bf16.gmra.mxu0 %v378
  %v998 = vpop.f32.mrf.mxu0
  %v999 = vadd.f32 %v618, %v998
  %v1000 = vpop.f32.mrf.mxu0
  %v1001 = vadd.f32 %v620, %v1000
  %v1002 = vpop.f32.mrf.mxu0
  %v1003 = vadd.f32 %v622, %v1002
  %v1004 = vpop.f32.mrf.mxu0
  %v1005 = vadd.f32 %v624, %v1004
  %1006 = vmatprep.mubr.bf16.mxu0 0
  %1007 = vmatmul.mubr.bf16.gmra.mxu0 %v381
  %v1008 = vpop.f32.mrf.mxu0
  %v1009 = vadd.f32 %v628, %v1008
  %v1010 = vpop.f32.mrf.mxu0
  %v1011 = vadd.f32 %v630, %v1010
  %v1012 = vpop.f32.mrf.mxu0
  %v1013 = vadd.f32 %v632, %v1012
  %v1014 = vpop.f32.mrf.mxu0
  %v1015 = vadd.f32 %v634, %v1014
  %1016 = vmatprep.mubr.bf16.mxu0 0
  %1017 = vmatmul.mubr.bf16.gmra.mxu0 %v384
  %v1018 = vpop.f32.mrf.mxu0
  %v1019 = vadd.f32 %v638, %v1018
  %v1020 = vpop.f32.mrf.mxu0
  %v1021 = vadd.f32 %v640, %v1020
  %v1022 = vpop.f32.mrf.mxu0
  %v1023 = vadd.f32 %v642, %v1022
  %v1024 = vpop.f32.mrf.mxu0
  %v1025 = vadd.f32 %v644, %v1024
  %1026 = vmatprep.mubr.bf16.mxu0 0
  %1027 = vmatmul.mubr.bf16.gmra.mxu0 %v387
  %v1028 = vpop.f32.mrf.mxu0
  %v1029 = vadd.f32 %v648, %v1028
  %v1030 = vpop.f32.mrf.mxu0
  %v1031 = vadd.f32 %v650, %v1030
  %v1032 = vpop.f32.mrf.mxu0
  %v1033 = vadd.f32 %v652, %v1032
  %v1034 = vpop.f32.mrf.mxu0
  %v1035 = vadd.f32 %v654, %v1034
  %1036 = vmatprep.mubr.bf16.mxu0 0
  %1037 = vmatmul.mubr.bf16.gmra.mxu0 %v390
  %v1038 = vpop.f32.mrf.mxu0
  %v1039 = vadd.f32 %v658, %v1038
  %v1040 = vpop.f32.mrf.mxu0
  %v1041 = vadd.f32 %v660, %v1040
  %v1042 = vpop.f32.mrf.mxu0
  %v1043 = vadd.f32 %v662, %v1042
  %v1044 = vpop.f32.mrf.mxu0
  %v1045 = vadd.f32 %v664, %v1044
  %1046 = vmatprep.mubr.bf16.mxu0 0
  %1047 = vmatmul.mubr.bf16.gmra.mxu0 %v393
  %v1048 = vpop.f32.mrf.mxu0
  %v1049 = vadd.f32 %v668, %v1048
  %v1050 = vpop.f32.mrf.mxu0
  %v1051 = vadd.f32 %v670, %v1050
  %v1052 = vpop.f32.mrf.mxu0
  %v1053 = vadd.f32 %v672, %v1052
  %v1054 = vpop.f32.mrf.mxu0
  %v1055 = vadd.f32 %v674, %v1054
  %1056 = vmatprep.mubr.bf16.mxu0 0
  %1057 = vmatmul.mubr.bf16.gmra.mxu0 %v396
  %v1058 = vpop.f32.mrf.mxu0
  %v1059 = vadd.f32 %v678, %v1058
  %v1060 = vpop.f32.mrf.mxu0
  %v1061 = vadd.f32 %v680, %v1060
  %v1062 = vpop.f32.mrf.mxu0
  %v1063 = vadd.f32 %v682, %v1062
  %v1064 = vpop.f32.mrf.mxu0
  %v1065 = vadd.f32 %v684, %v1064
  %1066 = vmatprep.mubr.bf16.mxu0 0
  %1067 = vmatmul.mubr.bf16.gmra.mxu0 %v399
  %v1068 = vpop.f32.mrf.mxu0
  %v1069 = vadd.f32 %v688, %v1068
  %v1070 = vpop.f32.mrf.mxu0
  %v1071 = vadd.f32 %v690, %v1070
  %v1072 = vpop.f32.mrf.mxu0
  %v1073 = vadd.f32 %v692, %v1072
  %v1074 = vpop.f32.mrf.mxu0
  %v1075 = vadd.f32 %v694, %v1074
  %1076 = vmatprep.mubr.bf16.mxu0 0
  %1077 = vmatmul.mubr.bf16.gmra.mxu0 %v402
  %v1078 = vpop.f32.mrf.mxu0
  %v1079 = vadd.f32 %v698, %v1078
  %v1080 = vpop.f32.mrf.mxu0
  %v1081 = vadd.f32 %v700, %v1080
  %v1082 = vpop.f32.mrf.mxu0
  %v1083 = vadd.f32 %v702, %v1082
  %v1084 = vpop.f32.mrf.mxu0
  %v1085 = vadd.f32 %v704, %v1084
  %1086 = vmatprep.mubr.bf16.mxu0 0
  %1087 = vmatmul.mubr.bf16.gmra.mxu0 %v405
  %v1088 = vpop.f32.mrf.mxu0
  %v1089 = vadd.f32 %v708, %v1088
  %v1090 = vpop.f32.mrf.mxu0
  %v1091 = vadd.f32 %v710, %v1090
  %v1092 = vpop.f32.mrf.mxu0
  %v1093 = vadd.f32 %v712, %v1092
  %v1094 = vpop.f32.mrf.mxu0
  %v1095 = vadd.f32 %v714, %v1094
  %1096 = vmatprep.mubr.bf16.mxu0 0
  %1097 = vmatmul.mubr.bf16.gmra.mxu0 %v408
  %v1098 = vpop.f32.mrf.mxu0
  %v1099 = vadd.f32 %v718, %v1098
  %v1100 = vpop.f32.mrf.mxu0
  %v1101 = vadd.f32 %v720, %v1100
  %v1102 = vpop.f32.mrf.mxu0
  %v1103 = vadd.f32 %v722, %v1102
  %v1104 = vpop.f32.mrf.mxu0
  %v1105 = vadd.f32 %v724, %v1104
  %1106 = vdwg.mxu0
  %s1107 = scalar_lea.vmem %s1, 192
  %v1108 = vld [vmem:[%s1107] sm:$0xff]
  %v1109 = vld [vmem:[%s1107 + $0x8] sm:$0xff]
  %v1110 = vld [vmem:[%s1107 + $0x10] sm:$0xff]
  %v1111 = vld [vmem:[%s1107 + $0x18] sm:$0xff]
  %v1112 = vld [vmem:[%s1107 + $0x20] sm:$0xff]
  %v1113 = vld [vmem:[%s1107 + $0x28] sm:$0xff]
  %v1114 = vld [vmem:[%s1107 + $0x30] sm:$0xff]
  %v1115 = vld [vmem:[%s1107 + $0x38] sm:$0xff]
  %v1116 = vld [vmem:[%s1107 + $0x40] sm:$0xff]
  %v1117 = vld [vmem:[%s1107 + $0x48] sm:$0xff]
  %v1118 = vld [vmem:[%s1107 + $0x50] sm:$0xff]
  %v1119 = vld [vmem:[%s1107 + $0x58] sm:$0xff]
  %v1122 = vunpack.c.l.b16 %v97
  %v1123 = vunpack.c.l.b16 %v98
  %v1124 = vpack.c.b16 %v1123, %v1122
  %v1137 = vunpack.c.l.b16 %v1108
  %v1138 = vunpack.c.h.b16 %v1108
  %v1139 = vunpack.c.l.b16 %v1109
  %v1140 = vunpack.c.h.b16 %v1109
  %v1141 = vunpack.c.l.b16 %v1110
  %v1142 = vunpack.c.h.b16 %v1110
  %v1143 = vunpack.c.l.b16 %v1111
  %v1144 = vunpack.c.h.b16 %v1111
  %v1145 = vunpack.c.l.b16 %v1112
  %v1146 = vunpack.c.h.b16 %v1112
  %v1147 = vunpack.c.l.b16 %v1113
  %v1148 = vunpack.c.h.b16 %v1113
  %v1149 = vunpack.c.l.b16 %v1114
  %v1150 = vunpack.c.h.b16 %v1114
  %v1151 = vunpack.c.l.b16 %v1115
  %v1152 = vunpack.c.h.b16 %v1115
  %v1153 = vunpack.c.l.b16 %v1116
  %v1154 = vunpack.c.h.b16 %v1116
  %v1155 = vunpack.c.l.b16 %v1117
  %v1156 = vunpack.c.h.b16 %v1117
  %v1157 = vunpack.c.l.b16 %v1118
  %v1158 = vunpack.c.h.b16 %v1118
  %v1159 = vunpack.c.l.b16 %v1119
  %v1160 = vunpack.c.h.b16 %v1119
  %v1161 = vpack.c.b16 %v1139, %v1137
  %v1162 = vpack.c.b16 %v1140, %v1138
  %v1163 = vpack.c.b16 %v1143, %v1141
  %v1164 = vpack.c.b16 %v1144, %v1142
  %v1165 = vpack.c.b16 %v1147, %v1145
  %v1166 = vpack.c.b16 %v1148, %v1146
  %v1167 = vpack.c.b16 %v1151, %v1149
  %v1168 = vpack.c.b16 %v1152, %v1150
  %v1169 = vpack.c.b16 %v1155, %v1153
  %v1170 = vpack.c.b16 %v1156, %v1154
  %v1171 = vpack.c.b16 %v1159, %v1157
  %v1172 = vpack.c.b16 %v1160, %v1158
  %v1186 = vsel %vm328, %v1124, 0
  %1188 = vmatprep.subr.bf16.mxu0 0
  %1189 = vmatpush1.bf16.msra.mxu0 0
  %1190 = vmatprep.subr.bf16.mxu0 0
  %1191 = vmatpush1.bf16.msra.mxu0 0
  %1192 = vmatprep.subr.bf16.mxu0 %v1172
  %1193 = vmatpush1.bf16.msra.mxu0 %v1171
  %1194 = vmatprep.subr.bf16.mxu0 %v1170
  %1195 = vmatpush1.bf16.msra.mxu0 %v1169
  %1196 = vmatprep.subr.bf16.mxu0 %v1168
  %1197 = vmatpush1.bf16.msra.mxu0 %v1167
  %1198 = vmatprep.subr.bf16.mxu0 %v1166
  %1199 = vmatpush1.bf16.msra.mxu0 %v1165
  %1200 = vmatprep.subr.bf16.mxu0 %v1164
  %1201 = vmatpush1.bf16.msra.mxu0 %v1163
  %1202 = vmatprep.subr.bf16.mxu0 %v1162
  %1203 = vmatpush1.bf16.msra.mxu0 %v1161
  %1204 = vmatprep.subr.bf16.mxu0 0
  %1205 = vmatpush2.bf16.msra.mxu0 0
  %1206 = vmatprep.subr.bf16.mxu0 0
  %1207 = vmatpush2.bf16.msra.mxu0 0
  %1208 = vmatprep.subr.bf16.mxu0 0
  %1209 = vmatpush2.bf16.msra.mxu0 0
  %1210 = vmatprep.subr.bf16.mxu0 0
  %1211 = vmatpush2.bf16.msra.mxu0 0
  %1212 = vmatprep.subr.bf16.mxu0 0
  %1213 = vmatpush2.bf16.msra.mxu0 0
  %1214 = vmatprep.subr.bf16.mxu0 0
  %1215 = vmatpush2.bf16.msra.mxu0 0
  %1216 = vmatprep.subr.bf16.mxu0 0
  %1217 = vmatpush2.bf16.msra.mxu0 0
  %1218 = vmatprep.subr.bf16.mxu0 0
  %1219 = vmatpush2.bf16.msra.mxu0 0
  %1220 = vmatprep.mubr.bf16.mxu0 0
  %1221 = vmatmul.mubr.bf16.gmra.mxu0 %v333
  %v1222 = vpop.f32.mrf.mxu0
  %v1223 = vadd.f32 0.0, %v1222
  %v1224 = vpop.f32.mrf.mxu0
  %v1225 = vadd.f32 0.0, %v1224
  %v1226 = vpop.f32.mrf.mxu0
  %v1227 = vadd.f32 0.0, %v1226
  %v1228 = vpop.f32.mrf.mxu0
  %v1229 = vadd.f32 0.0, %v1228
  %1230 = vmatprep.mubr.bf16.mxu0 0
  %1231 = vmatmul.mubr.bf16.gmra.mxu0 %v336
  %v1232 = vpop.f32.mrf.mxu0
  %v1233 = vadd.f32 0.0, %v1232
  %v1234 = vpop.f32.mrf.mxu0
  %v1235 = vadd.f32 0.0, %v1234
  %v1236 = vpop.f32.mrf.mxu0
  %v1237 = vadd.f32 0.0, %v1236
  %v1238 = vpop.f32.mrf.mxu0
  %v1239 = vadd.f32 0.0, %v1238
  %1240 = vmatprep.mubr.bf16.mxu0 0
  %1241 = vmatmul.mubr.bf16.gmra.mxu0 %v339
  %v1242 = vpop.f32.mrf.mxu0
  %v1243 = vadd.f32 0.0, %v1242
  %v1244 = vpop.f32.mrf.mxu0
  %v1245 = vadd.f32 0.0, %v1244
  %v1246 = vpop.f32.mrf.mxu0
  %v1247 = vadd.f32 0.0, %v1246
  %v1248 = vpop.f32.mrf.mxu0
  %v1249 = vadd.f32 0.0, %v1248
  %1250 = vmatprep.mubr.bf16.mxu0 0
  %1251 = vmatmul.mubr.bf16.gmra.mxu0 %v342
  %v1252 = vpop.f32.mrf.mxu0
  %v1253 = vadd.f32 0.0, %v1252
  %v1254 = vpop.f32.mrf.mxu0
  %v1255 = vadd.f32 0.0, %v1254
  %v1256 = vpop.f32.mrf.mxu0
  %v1257 = vadd.f32 0.0, %v1256
  %v1258 = vpop.f32.mrf.mxu0
  %v1259 = vadd.f32 0.0, %v1258
  %1260 = vmatprep.mubr.bf16.mxu0 0
  %1261 = vmatmul.mubr.bf16.gmra.mxu0 %v345
  %v1262 = vpop.f32.mrf.mxu0
  %v1263 = vadd.f32 0.0, %v1262
  %v1264 = vpop.f32.mrf.mxu0
  %v1265 = vadd.f32 0.0, %v1264
  %v1266 = vpop.f32.mrf.mxu0
  %v1267 = vadd.f32 0.0, %v1266
  %v1268 = vpop.f32.mrf.mxu0
  %v1269 = vadd.f32 0.0, %v1268
  %1270 = vmatprep.mubr.bf16.mxu0 0
  %1271 = vmatmul.mubr.bf16.gmra.mxu0 %v348
  %v1272 = vpop.f32.mrf.mxu0
  %v1273 = vadd.f32 0.0, %v1272
  %v1274 = vpop.f32.mrf.mxu0
  %v1275 = vadd.f32 0.0, %v1274
  %v1276 = vpop.f32.mrf.mxu0
  %v1277 = vadd.f32 0.0, %v1276
  %v1278 = vpop.f32.mrf.mxu0
  %v1279 = vadd.f32 0.0, %v1278
  %1280 = vmatprep.mubr.bf16.mxu0 0
  %1281 = vmatmul.mubr.bf16.gmra.mxu0 %v351
  %v1282 = vpop.f32.mrf.mxu0
  %v1283 = vadd.f32 0.0, %v1282
  %v1284 = vpop.f32.mrf.mxu0
  %v1285 = vadd.f32 0.0, %v1284
  %v1286 = vpop.f32.mrf.mxu0
  %v1287 = vadd.f32 0.0, %v1286
  %v1288 = vpop.f32.mrf.mxu0
  %v1289 = vadd.f32 0.0, %v1288
  %1290 = vmatprep.mubr.bf16.mxu0 0
  %1291 = vmatmul.mubr.bf16.gmra.mxu0 %v354
  %v1292 = vpop.f32.mrf.mxu0
  %v1293 = vadd.f32 0.0, %v1292
  %v1294 = vpop.f32.mrf.mxu0
  %v1295 = vadd.f32 0.0, %v1294
  %v1296 = vpop.f32.mrf.mxu0
  %v1297 = vadd.f32 0.0, %v1296
  %v1298 = vpop.f32.mrf.mxu0
  %v1299 = vadd.f32 0.0, %v1298
  %1300 = vmatprep.mubr.bf16.mxu0 0
  %1301 = vmatmul.mubr.bf16.gmra.mxu0 %v357
  %v1302 = vpop.f32.mrf.mxu0
  %v1303 = vadd.f32 0.0, %v1302
  %v1304 = vpop.f32.mrf.mxu0
  %v1305 = vadd.f32 0.0, %v1304
  %v1306 = vpop.f32.mrf.mxu0
  %v1307 = vadd.f32 0.0, %v1306
  %v1308 = vpop.f32.mrf.mxu0
  %v1309 = vadd.f32 0.0, %v1308
  %1310 = vmatprep.mubr.bf16.mxu0 0
  %1311 = vmatmul.mubr.bf16.gmra.mxu0 %v360
  %v1312 = vpop.f32.mrf.mxu0
  %v1313 = vadd.f32 0.0, %v1312
  %v1314 = vpop.f32.mrf.mxu0
  %v1315 = vadd.f32 0.0, %v1314
  %v1316 = vpop.f32.mrf.mxu0
  %v1317 = vadd.f32 0.0, %v1316
  %v1318 = vpop.f32.mrf.mxu0
  %v1319 = vadd.f32 0.0, %v1318
  %1320 = vmatprep.mubr.bf16.mxu0 0
  %1321 = vmatmul.mubr.bf16.gmra.mxu0 %v363
  %v1322 = vpop.f32.mrf.mxu0
  %v1323 = vadd.f32 0.0, %v1322
  %v1324 = vpop.f32.mrf.mxu0
  %v1325 = vadd.f32 0.0, %v1324
  %v1326 = vpop.f32.mrf.mxu0
  %v1327 = vadd.f32 0.0, %v1326
  %v1328 = vpop.f32.mrf.mxu0
  %v1329 = vadd.f32 0.0, %v1328
  %1330 = vmatprep.mubr.bf16.mxu0 0
  %1331 = vmatmul.mubr.bf16.gmra.mxu0 %v366
  %v1332 = vpop.f32.mrf.mxu0
  %v1333 = vadd.f32 0.0, %v1332
  %v1334 = vpop.f32.mrf.mxu0
  %v1335 = vadd.f32 0.0, %v1334
  %v1336 = vpop.f32.mrf.mxu0
  %v1337 = vadd.f32 0.0, %v1336
  %v1338 = vpop.f32.mrf.mxu0
  %v1339 = vadd.f32 0.0, %v1338
  %1340 = vmatprep.mubr.bf16.mxu0 0
  %1341 = vmatmul.mubr.bf16.gmra.mxu0 %v369
  %v1342 = vpop.f32.mrf.mxu0
  %v1343 = vadd.f32 0.0, %v1342
  %v1344 = vpop.f32.mrf.mxu0
  %v1345 = vadd.f32 0.0, %v1344
  %v1346 = vpop.f32.mrf.mxu0
  %v1347 = vadd.f32 0.0, %v1346
  %v1348 = vpop.f32.mrf.mxu0
  %v1349 = vadd.f32 0.0, %v1348
  %1350 = vmatprep.mubr.bf16.mxu0 0
  %1351 = vmatmul.mubr.bf16.gmra.mxu0 %v372
  %v1352 = vpop.f32.mrf.mxu0
  %v1353 = vadd.f32 0.0, %v1352
  %v1354 = vpop.f32.mrf.mxu0
  %v1355 = vadd.f32 0.0, %v1354
  %v1356 = vpop.f32.mrf.mxu0
  %v1357 = vadd.f32 0.0, %v1356
  %v1358 = vpop.f32.mrf.mxu0
  %v1359 = vadd.f32 0.0, %v1358
  %1360 = vmatprep.mubr.bf16.mxu0 0
  %1361 = vmatmul.mubr.bf16.gmra.mxu0 %v375
  %v1362 = vpop.f32.mrf.mxu0
  %v1363 = vadd.f32 0.0, %v1362
  %v1364 = vpop.f32.mrf.mxu0
  %v1365 = vadd.f32 0.0, %v1364
  %v1366 = vpop.f32.mrf.mxu0
  %v1367 = vadd.f32 0.0, %v1366
  %v1368 = vpop.f32.mrf.mxu0
  %v1369 = vadd.f32 0.0, %v1368
  %1370 = vmatprep.mubr.bf16.mxu0 0
  %1371 = vmatmul.mubr.bf16.gmra.mxu0 %v378
  %v1372 = vpop.f32.mrf.mxu0
  %v1373 = vadd.f32 0.0, %v1372
  %v1374 = vpop.f32.mrf.mxu0
  %v1375 = vadd.f32 0.0, %v1374
  %v1376 = vpop.f32.mrf.mxu0
  %v1377 = vadd.f32 0.0, %v1376
  %v1378 = vpop.f32.mrf.mxu0
  %v1379 = vadd.f32 0.0, %v1378
  %1380 = vmatprep.mubr.bf16.mxu0 0
  %1381 = vmatmul.mubr.bf16.gmra.mxu0 %v381
  %v1382 = vpop.f32.mrf.mxu0
  %v1383 = vadd.f32 0.0, %v1382
  %v1384 = vpop.f32.mrf.mxu0
  %v1385 = vadd.f32 0.0, %v1384
  %v1386 = vpop.f32.mrf.mxu0
  %v1387 = vadd.f32 0.0, %v1386
  %v1388 = vpop.f32.mrf.mxu0
  %v1389 = vadd.f32 0.0, %v1388
  %1390 = vmatprep.mubr.bf16.mxu0 0
  %1391 = vmatmul.mubr.bf16.gmra.mxu0 %v384
  %v1392 = vpop.f32.mrf.mxu0
  %v1393 = vadd.f32 0.0, %v1392
  %v1394 = vpop.f32.mrf.mxu0
  %v1395 = vadd.f32 0.0, %v1394
  %v1396 = vpop.f32.mrf.mxu0
  %v1397 = vadd.f32 0.0, %v1396
  %v1398 = vpop.f32.mrf.mxu0
  %v1399 = vadd.f32 0.0, %v1398
  %1400 = vmatprep.mubr.bf16.mxu0 0
  %1401 = vmatmul.mubr.bf16.gmra.mxu0 %v387
  %v1402 = vpop.f32.mrf.mxu0
  %v1403 = vadd.f32 0.0, %v1402
  %v1404 = vpop.f32.mrf.mxu0
  %v1405 = vadd.f32 0.0, %v1404
  %v1406 = vpop.f32.mrf.mxu0
  %v1407 = vadd.f32 0.0, %v1406
  %v1408 = vpop.f32.mrf.mxu0
  %v1409 = vadd.f32 0.0, %v1408
  %1410 = vmatprep.mubr.bf16.mxu0 0
  %1411 = vmatmul.mubr.bf16.gmra.mxu0 %v390
  %v1412 = vpop.f32.mrf.mxu0
  %v1413 = vadd.f32 0.0, %v1412
  %v1414 = vpop.f32.mrf.mxu0
  %v1415 = vadd.f32 0.0, %v1414
  %v1416 = vpop.f32.mrf.mxu0
  %v1417 = vadd.f32 0.0, %v1416
  %v1418 = vpop.f32.mrf.mxu0
  %v1419 = vadd.f32 0.0, %v1418
  %1420 = vmatprep.mubr.bf16.mxu0 0
  %1421 = vmatmul.mubr.bf16.gmra.mxu0 %v393
  %v1422 = vpop.f32.mrf.mxu0
  %v1423 = vadd.f32 0.0, %v1422
  %v1424 = vpop.f32.mrf.mxu0
  %v1425 = vadd.f32 0.0, %v1424
  %v1426 = vpop.f32.mrf.mxu0
  %v1427 = vadd.f32 0.0, %v1426
  %v1428 = vpop.f32.mrf.mxu0
  %v1429 = vadd.f32 0.0, %v1428
  %1430 = vmatprep.mubr.bf16.mxu0 0
  %1431 = vmatmul.mubr.bf16.gmra.mxu0 %v396
  %v1432 = vpop.f32.mrf.mxu0
  %v1433 = vadd.f32 0.0, %v1432
  %v1434 = vpop.f32.mrf.mxu0
  %v1435 = vadd.f32 0.0, %v1434
  %v1436 = vpop.f32.mrf.mxu0
  %v1437 = vadd.f32 0.0, %v1436
  %v1438 = vpop.f32.mrf.mxu0
  %v1439 = vadd.f32 0.0, %v1438
  %1440 = vmatprep.mubr.bf16.mxu0 0
  %1441 = vmatmul.mubr.bf16.gmra.mxu0 %v399
  %v1442 = vpop.f32.mrf.mxu0
  %v1443 = vadd.f32 0.0, %v1442
  %v1444 = vpop.f32.mrf.mxu0
  %v1445 = vadd.f32 0.0, %v1444
  %v1446 = vpop.f32.mrf.mxu0
  %v1447 = vadd.f32 0.0, %v1446
  %v1448 = vpop.f32.mrf.mxu0
  %v1449 = vadd.f32 0.0, %v1448
  %1450 = vmatprep.mubr.bf16.mxu0 0
  %1451 = vmatmul.mubr.bf16.gmra.mxu0 %v402
  %v1452 = vpop.f32.mrf.mxu0
  %v1453 = vadd.f32 0.0, %v1452
  %v1454 = vpop.f32.mrf.mxu0
  %v1455 = vadd.f32 0.0, %v1454
  %v1456 = vpop.f32.mrf.mxu0
  %v1457 = vadd.f32 0.0, %v1456
  %v1458 = vpop.f32.mrf.mxu0
  %v1459 = vadd.f32 0.0, %v1458
  %1460 = vmatprep.mubr.bf16.mxu0 0
  %1461 = vmatmul.mubr.bf16.gmra.mxu0 %v405
  %v1462 = vpop.f32.mrf.mxu0
  %v1463 = vadd.f32 0.0, %v1462
  %v1464 = vpop.f32.mrf.mxu0
  %v1465 = vadd.f32 0.0, %v1464
  %v1466 = vpop.f32.mrf.mxu0
  %v1467 = vadd.f32 0.0, %v1466
  %v1468 = vpop.f32.mrf.mxu0
  %v1469 = vadd.f32 0.0, %v1468
  %1470 = vmatprep.mubr.bf16.mxu0 0
  %1471 = vmatmul.mubr.bf16.gmra.mxu0 %v408
  %v1472 = vpop.f32.mrf.mxu0
  %v1473 = vadd.f32 0.0, %v1472
  %v1474 = vpop.f32.mrf.mxu0
  %v1475 = vadd.f32 0.0, %v1474
  %v1476 = vpop.f32.mrf.mxu0
  %v1477 = vadd.f32 0.0, %v1476
  %v1478 = vpop.f32.mrf.mxu0
  %v1479 = vadd.f32 0.0, %v1478
  %1480 = vmatprep.mubr.bf16.mxu0 0
  %1481 = vmatmul.mubr.bf16.gmra.mxu0 %v411
  %v1482 = vpop.f32.mrf.mxu0
  %v1483 = vadd.f32 0.0, %v1482
  %v1484 = vpop.f32.mrf.mxu0
  %v1485 = vadd.f32 0.0, %v1484
  %v1486 = vpop.f32.mrf.mxu0
  %v1487 = vadd.f32 0.0, %v1486
  %v1488 = vpop.f32.mrf.mxu0
  %v1489 = vadd.f32 0.0, %v1488
  %1490 = vmatprep.mubr.bf16.mxu0 0
  %1491 = vmatmul.mubr.bf16.gmra.mxu0 %v1186
  %v1492 = vpop.f32.mrf.mxu0
  %v1493 = vadd.f32 0.0, %v1492
  %v1494 = vpop.f32.mrf.mxu0
  %v1495 = vadd.f32 0.0, %v1494
  %v1496 = vpop.f32.mrf.mxu0
  %v1497 = vadd.f32 0.0, %v1496
  %v1498 = vpop.f32.mrf.mxu0
  %v1499 = vadd.f32 0.0, %v1498
  %1500 = vdwg.mxu0
  %v1501 = vadd.f32 %v829, %v1223
  %v1502 = vadd.f32 %v831, %v1225
  %v1503 = vadd.f32 %v833, %v1227
  %v1504 = vadd.f32 %v835, %v1229
  %v1505 = vadd.f32 %v839, %v1233
  %v1506 = vadd.f32 %v841, %v1235
  %v1507 = vadd.f32 %v843, %v1237
  %v1508 = vadd.f32 %v845, %v1239
  %v1509 = vadd.f32 %v849, %v1243
  %v1510 = vadd.f32 %v851, %v1245
  %v1511 = vadd.f32 %v853, %v1247
  %v1512 = vadd.f32 %v855, %v1249
  %v1513 = vadd.f32 %v859, %v1253
  %v1514 = vadd.f32 %v861, %v1255
  %v1515 = vadd.f32 %v863, %v1257
  %v1516 = vadd.f32 %v865, %v1259
  %v1517 = vadd.f32 %v869, %v1263
  %v1518 = vadd.f32 %v871, %v1265
  %v1519 = vadd.f32 %v873, %v1267
  %v1520 = vadd.f32 %v875, %v1269
  %v1521 = vadd.f32 %v879, %v1273
  %v1522 = vadd.f32 %v881, %v1275
  %v1523 = vadd.f32 %v883, %v1277
  %v1524 = vadd.f32 %v885, %v1279
  %v1525 = vadd.f32 %v889, %v1283
  %v1526 = vadd.f32 %v891, %v1285
  %v1527 = vadd.f32 %v893, %v1287
  %v1528 = vadd.f32 %v895, %v1289
  %v1529 = vadd.f32 %v899, %v1293
  %v1530 = vadd.f32 %v901, %v1295
  %v1531 = vadd.f32 %v903, %v1297
  %v1532 = vadd.f32 %v905, %v1299
  %v1533 = vadd.f32 %v909, %v1303
  %v1534 = vadd.f32 %v911, %v1305
  %v1535 = vadd.f32 %v913, %v1307
  %v1536 = vadd.f32 %v915, %v1309
  %v1537 = vadd.f32 %v919, %v1313
  %v1538 = vadd.f32 %v921, %v1315
  %v1539 = vadd.f32 %v923, %v1317
  %v1540 = vadd.f32 %v925, %v1319
  %v1541 = vadd.f32 %v929, %v1323
  %v1542 = vadd.f32 %v931, %v1325
  %v1543 = vadd.f32 %v933, %v1327
  %v1544 = vadd.f32 %v935, %v1329
  %v1545 = vadd.f32 %v939, %v1333
  %v1546 = vadd.f32 %v941, %v1335
  %v1547 = vadd.f32 %v943, %v1337
  %v1548 = vadd.f32 %v945, %v1339
  %v1549 = vadd.f32 %v949, %v1343
  %v1550 = vadd.f32 %v951, %v1345
  %v1551 = vadd.f32 %v953, %v1347
  %v1552 = vadd.f32 %v955, %v1349
  %v1553 = vadd.f32 %v959, %v1353
  %v1554 = vadd.f32 %v961, %v1355
  %v1555 = vadd.f32 %v963, %v1357
  %v1556 = vadd.f32 %v965, %v1359
  %v1557 = vadd.f32 %v969, %v1363
  %v1558 = vadd.f32 %v971, %v1365
  %v1559 = vadd.f32 %v973, %v1367
  %v1560 = vadd.f32 %v975, %v1369
  %v1561 = vadd.f32 %v979, %v1373
  %v1562 = vadd.f32 %v981, %v1375
  %v1563 = vadd.f32 %v983, %v1377
  %v1564 = vadd.f32 %v985, %v1379
  %v1565 = vadd.f32 %v989, %v1383
  %v1566 = vadd.f32 %v991, %v1385
  %v1567 = vadd.f32 %v993, %v1387
  %v1568 = vadd.f32 %v995, %v1389
  %v1569 = vadd.f32 %v999, %v1393
  %v1570 = vadd.f32 %v1001, %v1395
  %v1571 = vadd.f32 %v1003, %v1397
  %v1572 = vadd.f32 %v1005, %v1399
  %v1573 = vadd.f32 %v1009, %v1403
  %v1574 = vadd.f32 %v1011, %v1405
  %v1575 = vadd.f32 %v1013, %v1407
  %v1576 = vadd.f32 %v1015, %v1409
  %v1577 = vadd.f32 %v1019, %v1413
  %v1578 = vadd.f32 %v1021, %v1415
  %v1579 = vadd.f32 %v1023, %v1417
  %v1580 = vadd.f32 %v1025, %v1419
  %v1581 = vadd.f32 %v1029, %v1423
  %v1582 = vadd.f32 %v1031, %v1425
  %v1583 = vadd.f32 %v1033, %v1427
  %v1584 = vadd.f32 %v1035, %v1429
  %v1585 = vadd.f32 %v1039, %v1433
  %v1586 = vadd.f32 %v1041, %v1435
  %v1587 = vadd.f32 %v1043, %v1437
  %v1588 = vadd.f32 %v1045, %v1439
  %v1589 = vadd.f32 %v1049, %v1443
  %v1590 = vadd.f32 %v1051, %v1445
  %v1591 = vadd.f32 %v1053, %v1447
  %v1592 = vadd.f32 %v1055, %v1449
  %v1593 = vadd.f32 %v1059, %v1453
  %v1594 = vadd.f32 %v1061, %v1455
  %v1595 = vadd.f32 %v1063, %v1457
  %v1596 = vadd.f32 %v1065, %v1459
  %v1597 = vadd.f32 %v1069, %v1463
  %v1598 = vadd.f32 %v1071, %v1465
  %v1599 = vadd.f32 %v1073, %v1467
  %v1600 = vadd.f32 %v1075, %v1469
  %v1601 = vadd.f32 %v1079, %v1473
  %v1602 = vadd.f32 %v1081, %v1475
  %v1603 = vadd.f32 %v1083, %v1477
  %v1604 = vadd.f32 %v1085, %v1479
  %v1605 = vadd.f32 %v1089, %v1483
  %v1606 = vadd.f32 %v1091, %v1485
  %v1607 = vadd.f32 %v1093, %v1487
  %v1608 = vadd.f32 %v1095, %v1489
  %v1609 = vadd.f32 %v1099, %v1493
  %v1610 = vadd.f32 %v1101, %v1495
  %v1611 = vadd.f32 %v1103, %v1497
  %v1612 = vadd.f32 %v1105, %v1499
  %s1613 = scalar_lea.vmem %s1, 288
  %v1614 = vld [vmem:[%s1613] sm:$0xff]
  %v1615 = vld [vmem:[%s1613 + $0x8] sm:$0xff]
  %v1616 = vld [vmem:[%s1613 + $0x10] sm:$0xff]
  %v1617 = vld [vmem:[%s1613 + $0x18] sm:$0xff]
  %v1618 = vld [vmem:[%s1613 + $0x20] sm:$0xff]
  %v1619 = vld [vmem:[%s1613 + $0x28] sm:$0xff]
  %v1620 = vld [vmem:[%s1613 + $0x30] sm:$0xff]
  %v1621 = vld [vmem:[%s1613 + $0x38] sm:$0xff]
  %v1622 = vld [vmem:[%s1613 + $0x40] sm:$0xff]
  %v1623 = vld [vmem:[%s1613 + $0x48] sm:$0xff]
  %v1624 = vld [vmem:[%s1613 + $0x50] sm:$0xff]
  %v1625 = vld [vmem:[%s1613 + $0x58] sm:$0xff]
  %v1628 = vunpack.c.l.b16 %v99
  %v1629 = vunpack.c.l.b16 %v100
  %v1630 = vpack.c.b16 %v1629, %v1628
  %v1643 = vunpack.c.l.b16 %v1614
  %v1644 = vunpack.c.h.b16 %v1614
  %v1645 = vunpack.c.l.b16 %v1615
  %v1646 = vunpack.c.h.b16 %v1615
  %v1647 = vunpack.c.l.b16 %v1616
  %v1648 = vunpack.c.h.b16 %v1616
  %v1649 = vunpack.c.l.b16 %v1617
  %v1650 = vunpack.c.h.b16 %v1617
  %v1651 = vunpack.c.l.b16 %v1618
  %v1652 = vunpack.c.h.b16 %v1618
  %v1653 = vunpack.c.l.b16 %v1619
  %v1654 = vunpack.c.h.b16 %v1619
  %v1655 = vunpack.c.l.b16 %v1620
  %v1656 = vunpack.c.h.b16 %v1620
  %v1657 = vunpack.c.l.b16 %v1621
  %v1658 = vunpack.c.h.b16 %v1621
  %v1659 = vunpack.c.l.b16 %v1622
  %v1660 = vunpack.c.h.b16 %v1622
  %v1661 = vunpack.c.l.b16 %v1623
  %v1662 = vunpack.c.h.b16 %v1623
  %v1663 = vunpack.c.l.b16 %v1624
  %v1664 = vunpack.c.h.b16 %v1624
  %v1665 = vunpack.c.l.b16 %v1625
  %v1666 = vunpack.c.h.b16 %v1625
  %v1667 = vpack.c.b16 %v1645, %v1643
  %v1668 = vpack.c.b16 %v1646, %v1644
  %v1669 = vpack.c.b16 %v1649, %v1647
  %v1670 = vpack.c.b16 %v1650, %v1648
  %v1671 = vpack.c.b16 %v1653, %v1651
  %v1672 = vpack.c.b16 %v1654, %v1652
  %v1673 = vpack.c.b16 %v1657, %v1655
  %v1674 = vpack.c.b16 %v1658, %v1656
  %v1675 = vpack.c.b16 %v1661, %v1659
  %v1676 = vpack.c.b16 %v1662, %v1660
  %v1677 = vpack.c.b16 %v1665, %v1663
  %v1678 = vpack.c.b16 %v1666, %v1664
  %v1692 = vsel %vm328, %v1630, 0
  %1694 = vmatprep.subr.bf16.mxu0 0
  %1695 = vmatpush1.bf16.msra.mxu0 0
  %1696 = vmatprep.subr.bf16.mxu0 0
  %1697 = vmatpush1.bf16.msra.mxu0 0
  %1698 = vmatprep.subr.bf16.mxu0 %v1678
  %1699 = vmatpush1.bf16.msra.mxu0 %v1677
  %1700 = vmatprep.subr.bf16.mxu0 %v1676
  %1701 = vmatpush1.bf16.msra.mxu0 %v1675
  %1702 = vmatprep.subr.bf16.mxu0 %v1674
  %1703 = vmatpush1.bf16.msra.mxu0 %v1673
  %1704 = vmatprep.subr.bf16.mxu0 %v1672
  %1705 = vmatpush1.bf16.msra.mxu0 %v1671
  %1706 = vmatprep.subr.bf16.mxu0 %v1670
  %1707 = vmatpush1.bf16.msra.mxu0 %v1669
  %1708 = vmatprep.subr.bf16.mxu0 %v1668
  %1709 = vmatpush1.bf16.msra.mxu0 %v1667
  %1710 = vmatprep.subr.bf16.mxu0 0
  %1711 = vmatpush2.bf16.msra.mxu0 0
  %1712 = vmatprep.subr.bf16.mxu0 0
  %1713 = vmatpush2.bf16.msra.mxu0 0
  %1714 = vmatprep.subr.bf16.mxu0 0
  %1715 = vmatpush2.bf16.msra.mxu0 0
  %1716 = vmatprep.subr.bf16.mxu0 0
  %1717 = vmatpush2.bf16.msra.mxu0 0
  %1718 = vmatprep.subr.bf16.mxu0 0
  %1719 = vmatpush2.bf16.msra.mxu0 0
  %1720 = vmatprep.subr.bf16.mxu0 0
  %1721 = vmatpush2.bf16.msra.mxu0 0
  %1722 = vmatprep.subr.bf16.mxu0 0
  %1723 = vmatpush2.bf16.msra.mxu0 0
  %1724 = vmatprep.subr.bf16.mxu0 0
  %1725 = vmatpush2.bf16.msra.mxu0 0
  %1726 = vmatprep.mubr.bf16.mxu0 0
  %1727 = vmatmul.mubr.bf16.gmra.mxu0 %v336
  %v1728 = vpop.f32.mrf.mxu0
  %v1729 = vadd.f32 0.0, %v1728
  %v1730 = vpop.f32.mrf.mxu0
  %v1731 = vadd.f32 0.0, %v1730
  %v1732 = vpop.f32.mrf.mxu0
  %v1733 = vadd.f32 0.0, %v1732
  %v1734 = vpop.f32.mrf.mxu0
  %v1735 = vadd.f32 0.0, %v1734
  %1736 = vmatprep.mubr.bf16.mxu0 0
  %1737 = vmatmul.mubr.bf16.gmra.mxu0 %v339
  %v1738 = vpop.f32.mrf.mxu0
  %v1739 = vadd.f32 0.0, %v1738
  %v1740 = vpop.f32.mrf.mxu0
  %v1741 = vadd.f32 0.0, %v1740
  %v1742 = vpop.f32.mrf.mxu0
  %v1743 = vadd.f32 0.0, %v1742
  %v1744 = vpop.f32.mrf.mxu0
  %v1745 = vadd.f32 0.0, %v1744
  %1746 = vmatprep.mubr.bf16.mxu0 0
  %1747 = vmatmul.mubr.bf16.gmra.mxu0 %v342
  %v1748 = vpop.f32.mrf.mxu0
  %v1749 = vadd.f32 0.0, %v1748
  %v1750 = vpop.f32.mrf.mxu0
  %v1751 = vadd.f32 0.0, %v1750
  %v1752 = vpop.f32.mrf.mxu0
  %v1753 = vadd.f32 0.0, %v1752
  %v1754 = vpop.f32.mrf.mxu0
  %v1755 = vadd.f32 0.0, %v1754
  %1756 = vmatprep.mubr.bf16.mxu0 0
  %1757 = vmatmul.mubr.bf16.gmra.mxu0 %v345
  %v1758 = vpop.f32.mrf.mxu0
  %v1759 = vadd.f32 0.0, %v1758
  %v1760 = vpop.f32.mrf.mxu0
  %v1761 = vadd.f32 0.0, %v1760
  %v1762 = vpop.f32.mrf.mxu0
  %v1763 = vadd.f32 0.0, %v1762
  %v1764 = vpop.f32.mrf.mxu0
  %v1765 = vadd.f32 0.0, %v1764
  %1766 = vmatprep.mubr.bf16.mxu0 0
  %1767 = vmatmul.mubr.bf16.gmra.mxu0 %v348
  %v1768 = vpop.f32.mrf.mxu0
  %v1769 = vadd.f32 0.0, %v1768
  %v1770 = vpop.f32.mrf.mxu0
  %v1771 = vadd.f32 0.0, %v1770
  %v1772 = vpop.f32.mrf.mxu0
  %v1773 = vadd.f32 0.0, %v1772
  %v1774 = vpop.f32.mrf.mxu0
  %v1775 = vadd.f32 0.0, %v1774
  %1776 = vmatprep.mubr.bf16.mxu0 0
  %1777 = vmatmul.mubr.bf16.gmra.mxu0 %v351
  %v1778 = vpop.f32.mrf.mxu0
  %v1779 = vadd.f32 0.0, %v1778
  %v1780 = vpop.f32.mrf.mxu0
  %v1781 = vadd.f32 0.0, %v1780
  %v1782 = vpop.f32.mrf.mxu0
  %v1783 = vadd.f32 0.0, %v1782
  %v1784 = vpop.f32.mrf.mxu0
  %v1785 = vadd.f32 0.0, %v1784
  %1786 = vmatprep.mubr.bf16.mxu0 0
  %1787 = vmatmul.mubr.bf16.gmra.mxu0 %v354
  %v1788 = vpop.f32.mrf.mxu0
  %v1789 = vadd.f32 0.0, %v1788
  %v1790 = vpop.f32.mrf.mxu0
  %v1791 = vadd.f32 0.0, %v1790
  %v1792 = vpop.f32.mrf.mxu0
  %v1793 = vadd.f32 0.0, %v1792
  %v1794 = vpop.f32.mrf.mxu0
  %v1795 = vadd.f32 0.0, %v1794
  %1796 = vmatprep.mubr.bf16.mxu0 0
  %1797 = vmatmul.mubr.bf16.gmra.mxu0 %v357
  %v1798 = vpop.f32.mrf.mxu0
  %v1799 = vadd.f32 0.0, %v1798
  %v1800 = vpop.f32.mrf.mxu0
  %v1801 = vadd.f32 0.0, %v1800
  %v1802 = vpop.f32.mrf.mxu0
  %v1803 = vadd.f32 0.0, %v1802
  %v1804 = vpop.f32.mrf.mxu0
  %v1805 = vadd.f32 0.0, %v1804
  %1806 = vmatprep.mubr.bf16.mxu0 0
  %1807 = vmatmul.mubr.bf16.gmra.mxu0 %v360
  %v1808 = vpop.f32.mrf.mxu0
  %v1809 = vadd.f32 0.0, %v1808
  %v1810 = vpop.f32.mrf.mxu0
  %v1811 = vadd.f32 0.0, %v1810
  %v1812 = vpop.f32.mrf.mxu0
  %v1813 = vadd.f32 0.0, %v1812
  %v1814 = vpop.f32.mrf.mxu0
  %v1815 = vadd.f32 0.0, %v1814
  %1816 = vmatprep.mubr.bf16.mxu0 0
  %1817 = vmatmul.mubr.bf16.gmra.mxu0 %v363
  %v1818 = vpop.f32.mrf.mxu0
  %v1819 = vadd.f32 0.0, %v1818
  %v1820 = vpop.f32.mrf.mxu0
  %v1821 = vadd.f32 0.0, %v1820
  %v1822 = vpop.f32.mrf.mxu0
  %v1823 = vadd.f32 0.0, %v1822
  %v1824 = vpop.f32.mrf.mxu0
  %v1825 = vadd.f32 0.0, %v1824
  %1826 = vmatprep.mubr.bf16.mxu0 0
  %1827 = vmatmul.mubr.bf16.gmra.mxu0 %v366
  %v1828 = vpop.f32.mrf.mxu0
  %v1829 = vadd.f32 0.0, %v1828
  %v1830 = vpop.f32.mrf.mxu0
  %v1831 = vadd.f32 0.0, %v1830
  %v1832 = vpop.f32.mrf.mxu0
  %v1833 = vadd.f32 0.0, %v1832
  %v1834 = vpop.f32.mrf.mxu0
  %v1835 = vadd.f32 0.0, %v1834
  %1836 = vmatprep.mubr.bf16.mxu0 0
  %1837 = vmatmul.mubr.bf16.gmra.mxu0 %v369
  %v1838 = vpop.f32.mrf.mxu0
  %v1839 = vadd.f32 0.0, %v1838
  %v1840 = vpop.f32.mrf.mxu0
  %v1841 = vadd.f32 0.0, %v1840
  %v1842 = vpop.f32.mrf.mxu0
  %v1843 = vadd.f32 0.0, %v1842
  %v1844 = vpop.f32.mrf.mxu0
  %v1845 = vadd.f32 0.0, %v1844
  %1846 = vmatprep.mubr.bf16.mxu0 0
  %1847 = vmatmul.mubr.bf16.gmra.mxu0 %v372
  %v1848 = vpop.f32.mrf.mxu0
  %v1849 = vadd.f32 0.0, %v1848
  %v1850 = vpop.f32.mrf.mxu0
  %v1851 = vadd.f32 0.0, %v1850
  %v1852 = vpop.f32.mrf.mxu0
  %v1853 = vadd.f32 0.0, %v1852
  %v1854 = vpop.f32.mrf.mxu0
  %v1855 = vadd.f32 0.0, %v1854
  %1856 = vmatprep.mubr.bf16.mxu0 0
  %1857 = vmatmul.mubr.bf16.gmra.mxu0 %v375
  %v1858 = vpop.f32.mrf.mxu0
  %v1859 = vadd.f32 0.0, %v1858
  %v1860 = vpop.f32.mrf.mxu0
  %v1861 = vadd.f32 0.0, %v1860
  %v1862 = vpop.f32.mrf.mxu0
  %v1863 = vadd.f32 0.0, %v1862
  %v1864 = vpop.f32.mrf.mxu0
  %v1865 = vadd.f32 0.0, %v1864
  %1866 = vmatprep.mubr.bf16.mxu0 0
  %1867 = vmatmul.mubr.bf16.gmra.mxu0 %v378
  %v1868 = vpop.f32.mrf.mxu0
  %v1869 = vadd.f32 0.0, %v1868
  %v1870 = vpop.f32.mrf.mxu0
  %v1871 = vadd.f32 0.0, %v1870
  %v1872 = vpop.f32.mrf.mxu0
  %v1873 = vadd.f32 0.0, %v1872
  %v1874 = vpop.f32.mrf.mxu0
  %v1875 = vadd.f32 0.0, %v1874
  %1876 = vmatprep.mubr.bf16.mxu0 0
  %1877 = vmatmul.mubr.bf16.gmra.mxu0 %v381
  %v1878 = vpop.f32.mrf.mxu0
  %v1879 = vadd.f32 0.0, %v1878
  %v1880 = vpop.f32.mrf.mxu0
  %v1881 = vadd.f32 0.0, %v1880
  %v1882 = vpop.f32.mrf.mxu0
  %v1883 = vadd.f32 0.0, %v1882
  %v1884 = vpop.f32.mrf.mxu0
  %v1885 = vadd.f32 0.0, %v1884
  %1886 = vmatprep.mubr.bf16.mxu0 0
  %1887 = vmatmul.mubr.bf16.gmra.mxu0 %v384
  %v1888 = vpop.f32.mrf.mxu0
  %v1889 = vadd.f32 0.0, %v1888
  %v1890 = vpop.f32.mrf.mxu0
  %v1891 = vadd.f32 0.0, %v1890
  %v1892 = vpop.f32.mrf.mxu0
  %v1893 = vadd.f32 0.0, %v1892
  %v1894 = vpop.f32.mrf.mxu0
  %v1895 = vadd.f32 0.0, %v1894
  %1896 = vmatprep.mubr.bf16.mxu0 0
  %1897 = vmatmul.mubr.bf16.gmra.mxu0 %v387
  %v1898 = vpop.f32.mrf.mxu0
  %v1899 = vadd.f32 0.0, %v1898
  %v1900 = vpop.f32.mrf.mxu0
  %v1901 = vadd.f32 0.0, %v1900
  %v1902 = vpop.f32.mrf.mxu0
  %v1903 = vadd.f32 0.0, %v1902
  %v1904 = vpop.f32.mrf.mxu0
  %v1905 = vadd.f32 0.0, %v1904
  %1906 = vmatprep.mubr.bf16.mxu0 0
  %1907 = vmatmul.mubr.bf16.gmra.mxu0 %v390
  %v1908 = vpop.f32.mrf.mxu0
  %v1909 = vadd.f32 0.0, %v1908
  %v1910 = vpop.f32.mrf.mxu0
  %v1911 = vadd.f32 0.0, %v1910
  %v1912 = vpop.f32.mrf.mxu0
  %v1913 = vadd.f32 0.0, %v1912
  %v1914 = vpop.f32.mrf.mxu0
  %v1915 = vadd.f32 0.0, %v1914
  %1916 = vmatprep.mubr.bf16.mxu0 0
  %1917 = vmatmul.mubr.bf16.gmra.mxu0 %v393
  %v1918 = vpop.f32.mrf.mxu0
  %v1919 = vadd.f32 0.0, %v1918
  %v1920 = vpop.f32.mrf.mxu0
  %v1921 = vadd.f32 0.0, %v1920
  %v1922 = vpop.f32.mrf.mxu0
  %v1923 = vadd.f32 0.0, %v1922
  %v1924 = vpop.f32.mrf.mxu0
  %v1925 = vadd.f32 0.0, %v1924
  %1926 = vmatprep.mubr.bf16.mxu0 0
  %1927 = vmatmul.mubr.bf16.gmra.mxu0 %v396
  %v1928 = vpop.f32.mrf.mxu0
  %v1929 = vadd.f32 0.0, %v1928
  %v1930 = vpop.f32.mrf.mxu0
  %v1931 = vadd.f32 0.0, %v1930
  %v1932 = vpop.f32.mrf.mxu0
  %v1933 = vadd.f32 0.0, %v1932
  %v1934 = vpop.f32.mrf.mxu0
  %v1935 = vadd.f32 0.0, %v1934
  %1936 = vmatprep.mubr.bf16.mxu0 0
  %1937 = vmatmul.mubr.bf16.gmra.mxu0 %v399
  %v1938 = vpop.f32.mrf.mxu0
  %v1939 = vadd.f32 0.0, %v1938
  %v1940 = vpop.f32.mrf.mxu0
  %v1941 = vadd.f32 0.0, %v1940
  %v1942 = vpop.f32.mrf.mxu0
  %v1943 = vadd.f32 0.0, %v1942
  %v1944 = vpop.f32.mrf.mxu0
  %v1945 = vadd.f32 0.0, %v1944
  %1946 = vmatprep.mubr.bf16.mxu0 0
  %1947 = vmatmul.mubr.bf16.gmra.mxu0 %v402
  %v1948 = vpop.f32.mrf.mxu0
  %v1949 = vadd.f32 0.0, %v1948
  %v1950 = vpop.f32.mrf.mxu0
  %v1951 = vadd.f32 0.0, %v1950
  %v1952 = vpop.f32.mrf.mxu0
  %v1953 = vadd.f32 0.0, %v1952
  %v1954 = vpop.f32.mrf.mxu0
  %v1955 = vadd.f32 0.0, %v1954
  %1956 = vmatprep.mubr.bf16.mxu0 0
  %1957 = vmatmul.mubr.bf16.gmra.mxu0 %v405
  %v1958 = vpop.f32.mrf.mxu0
  %v1959 = vadd.f32 0.0, %v1958
  %v1960 = vpop.f32.mrf.mxu0
  %v1961 = vadd.f32 0.0, %v1960
  %v1962 = vpop.f32.mrf.mxu0
  %v1963 = vadd.f32 0.0, %v1962
  %v1964 = vpop.f32.mrf.mxu0
  %v1965 = vadd.f32 0.0, %v1964
  %1966 = vmatprep.mubr.bf16.mxu0 0
  %1967 = vmatmul.mubr.bf16.gmra.mxu0 %v408
  %v1968 = vpop.f32.mrf.mxu0
  %v1969 = vadd.f32 0.0, %v1968
  %v1970 = vpop.f32.mrf.mxu0
  %v1971 = vadd.f32 0.0, %v1970
  %v1972 = vpop.f32.mrf.mxu0
  %v1973 = vadd.f32 0.0, %v1972
  %v1974 = vpop.f32.mrf.mxu0
  %v1975 = vadd.f32 0.0, %v1974
  %1976 = vmatprep.mubr.bf16.mxu0 0
  %1977 = vmatmul.mubr.bf16.gmra.mxu0 %v411
  %v1978 = vpop.f32.mrf.mxu0
  %v1979 = vadd.f32 0.0, %v1978
  %v1980 = vpop.f32.mrf.mxu0
  %v1981 = vadd.f32 0.0, %v1980
  %v1982 = vpop.f32.mrf.mxu0
  %v1983 = vadd.f32 0.0, %v1982
  %v1984 = vpop.f32.mrf.mxu0
  %v1985 = vadd.f32 0.0, %v1984
  %1986 = vmatprep.mubr.bf16.mxu0 0
  %1987 = vmatmul.mubr.bf16.gmra.mxu0 %v1186
  %v1988 = vpop.f32.mrf.mxu0
  %v1989 = vadd.f32 0.0, %v1988
  %v1990 = vpop.f32.mrf.mxu0
  %v1991 = vadd.f32 0.0, %v1990
  %v1992 = vpop.f32.mrf.mxu0
  %v1993 = vadd.f32 0.0, %v1992
  %v1994 = vpop.f32.mrf.mxu0
  %v1995 = vadd.f32 0.0, %v1994
  %1996 = vmatprep.mubr.bf16.mxu0 0
  %1997 = vmatmul.mubr.bf16.gmra.mxu0 %v1692
  %v1998 = vpop.f32.mrf.mxu0
  %v1999 = vadd.f32 0.0, %v1998
  %v2000 = vpop.f32.mrf.mxu0
  %v2001 = vadd.f32 0.0, %v2000
  %v2002 = vpop.f32.mrf.mxu0
  %v2003 = vadd.f32 0.0, %v2002
  %v2004 = vpop.f32.mrf.mxu0
  %v2005 = vadd.f32 0.0, %v2004
  %2006 = vdwg.mxu0
  %v2007 = vadd.f32 %v1501, %v1729
  %v2008 = vadd.f32 %v1502, %v1731
  %v2009 = vadd.f32 %v1503, %v1733
  %v2010 = vadd.f32 %v1504, %v1735
  %v2011 = vadd.f32 %v1505, %v1739
  %v2012 = vadd.f32 %v1506, %v1741
  %v2013 = vadd.f32 %v1507, %v1743
  %v2014 = vadd.f32 %v1508, %v1745
  %v2015 = vadd.f32 %v1509, %v1749
  %v2016 = vadd.f32 %v1510, %v1751
  %v2017 = vadd.f32 %v1511, %v1753
  %v2018 = vadd.f32 %v1512, %v1755
  %v2019 = vadd.f32 %v1513, %v1759
  %v2020 = vadd.f32 %v1514, %v1761
  %v2021 = vadd.f32 %v1515, %v1763
  %v2022 = vadd.f32 %v1516, %v1765
  %v2023 = vadd.f32 %v1517, %v1769
  %v2024 = vadd.f32 %v1518, %v1771
  %v2025 = vadd.f32 %v1519, %v1773
  %v2026 = vadd.f32 %v1520, %v1775
  %v2027 = vadd.f32 %v1521, %v1779
  %v2028 = vadd.f32 %v1522, %v1781
  %v2029 = vadd.f32 %v1523, %v1783
  %v2030 = vadd.f32 %v1524, %v1785
  %v2031 = vadd.f32 %v1525, %v1789
  %v2032 = vadd.f32 %v1526, %v1791
  %v2033 = vadd.f32 %v1527, %v1793
  %v2034 = vadd.f32 %v1528, %v1795
  %v2035 = vadd.f32 %v1529, %v1799
  %v2036 = vadd.f32 %v1530, %v1801
  %v2037 = vadd.f32 %v1531, %v1803
  %v2038 = vadd.f32 %v1532, %v1805
  %v2039 = vadd.f32 %v1533, %v1809
  %v2040 = vadd.f32 %v1534, %v1811
  %v2041 = vadd.f32 %v1535, %v1813
  %v2042 = vadd.f32 %v1536, %v1815
  %v2043 = vadd.f32 %v1537, %v1819
  %v2044 = vadd.f32 %v1538, %v1821
  %v2045 = vadd.f32 %v1539, %v1823
  %v2046 = vadd.f32 %v1540, %v1825
  %v2047 = vadd.f32 %v1541, %v1829
  %v2048 = vadd.f32 %v1542, %v1831
  %v2049 = vadd.f32 %v1543, %v1833
  %v2050 = vadd.f32 %v1544, %v1835
  %v2051 = vadd.f32 %v1545, %v1839
  %v2052 = vadd.f32 %v1546, %v1841
  %v2053 = vadd.f32 %v1547, %v1843
  %v2054 = vadd.f32 %v1548, %v1845
  %v2055 = vadd.f32 %v1549, %v1849
  %v2056 = vadd.f32 %v1550, %v1851
  %v2057 = vadd.f32 %v1551, %v1853
  %v2058 = vadd.f32 %v1552, %v1855
  %v2059 = vadd.f32 %v1553, %v1859
  %v2060 = vadd.f32 %v1554, %v1861
  %v2061 = vadd.f32 %v1555, %v1863
  %v2062 = vadd.f32 %v1556, %v1865
  %v2063 = vadd.f32 %v1557, %v1869
  %v2064 = vadd.f32 %v1558, %v1871
  %v2065 = vadd.f32 %v1559, %v1873
  %v2066 = vadd.f32 %v1560, %v1875
  %v2067 = vadd.f32 %v1561, %v1879
  %v2068 = vadd.f32 %v1562, %v1881
  %v2069 = vadd.f32 %v1563, %v1883
  %v2070 = vadd.f32 %v1564, %v1885
  %v2071 = vadd.f32 %v1565, %v1889
  %v2072 = vadd.f32 %v1566, %v1891
  %v2073 = vadd.f32 %v1567, %v1893
  %v2074 = vadd.f32 %v1568, %v1895
  %v2075 = vadd.f32 %v1569, %v1899
  %v2076 = vadd.f32 %v1570, %v1901
  %v2077 = vadd.f32 %v1571, %v1903
  %v2078 = vadd.f32 %v1572, %v1905
  %v2079 = vadd.f32 %v1573, %v1909
  %v2080 = vadd.f32 %v1574, %v1911
  %v2081 = vadd.f32 %v1575, %v1913
  %v2082 = vadd.f32 %v1576, %v1915
  %v2083 = vadd.f32 %v1577, %v1919
  %v2084 = vadd.f32 %v1578, %v1921
  %v2085 = vadd.f32 %v1579, %v1923
  %v2086 = vadd.f32 %v1580, %v1925
  %v2087 = vadd.f32 %v1581, %v1929
  %v2088 = vadd.f32 %v1582, %v1931
  %v2089 = vadd.f32 %v1583, %v1933
  %v2090 = vadd.f32 %v1584, %v1935
  %v2091 = vadd.f32 %v1585, %v1939
  %v2092 = vadd.f32 %v1586, %v1941
  %v2093 = vadd.f32 %v1587, %v1943
  %v2094 = vadd.f32 %v1588, %v1945
  %v2095 = vadd.f32 %v1589, %v1949
  %v2096 = vadd.f32 %v1590, %v1951
  %v2097 = vadd.f32 %v1591, %v1953
  %v2098 = vadd.f32 %v1592, %v1955
  %v2099 = vadd.f32 %v1593, %v1959
  %v2100 = vadd.f32 %v1594, %v1961
  %v2101 = vadd.f32 %v1595, %v1963
  %v2102 = vadd.f32 %v1596, %v1965
  %v2103 = vadd.f32 %v1597, %v1969
  %v2104 = vadd.f32 %v1598, %v1971
  %v2105 = vadd.f32 %v1599, %v1973
  %v2106 = vadd.f32 %v1600, %v1975
  %v2107 = vadd.f32 %v1601, %v1979
  %v2108 = vadd.f32 %v1602, %v1981
  %v2109 = vadd.f32 %v1603, %v1983
  %v2110 = vadd.f32 %v1604, %v1985
  %v2111 = vadd.f32 %v1605, %v1989
  %v2112 = vadd.f32 %v1606, %v1991
  %v2113 = vadd.f32 %v1607, %v1993
  %v2114 = vadd.f32 %v1608, %v1995
  %v2115 = vadd.f32 %v1609, %v1999
  %v2116 = vadd.f32 %v1610, %v2001
  %v2117 = vadd.f32 %v1611, %v2003
  %v2118 = vadd.f32 %v1612, %v2005
  %s2119 = scalar_lea.vmem %s1, 384
  %v2120 = vld [vmem:[%s2119] sm:$0xff]
  %v2121 = vld [vmem:[%s2119 + $0x8] sm:$0xff]
  %v2122 = vld [vmem:[%s2119 + $0x10] sm:$0xff]
  %v2123 = vld [vmem:[%s2119 + $0x18] sm:$0xff]
  %v2124 = vld [vmem:[%s2119 + $0x20] sm:$0xff]
  %v2125 = vld [vmem:[%s2119 + $0x28] sm:$0xff]
  %v2126 = vld [vmem:[%s2119 + $0x30] sm:$0xff]
  %v2127 = vld [vmem:[%s2119 + $0x38] sm:$0xff]
  %v2128 = vld [vmem:[%s2119 + $0x40] sm:$0xff]
  %v2129 = vld [vmem:[%s2119 + $0x48] sm:$0xff]
  %v2130 = vld [vmem:[%s2119 + $0x50] sm:$0xff]
  %v2131 = vld [vmem:[%s2119 + $0x58] sm:$0xff]
  %v2134 = vunpack.c.l.b16 %v101
  %v2135 = vunpack.c.l.b16 %v102
  %v2136 = vpack.c.b16 %v2135, %v2134
  %v2149 = vunpack.c.l.b16 %v2120
  %v2150 = vunpack.c.h.b16 %v2120
  %v2151 = vunpack.c.l.b16 %v2121
  %v2152 = vunpack.c.h.b16 %v2121
  %v2153 = vunpack.c.l.b16 %v2122
  %v2154 = vunpack.c.h.b16 %v2122
  %v2155 = vunpack.c.l.b16 %v2123
  %v2156 = vunpack.c.h.b16 %v2123
  %v2157 = vunpack.c.l.b16 %v2124
  %v2158 = vunpack.c.h.b16 %v2124
  %v2159 = vunpack.c.l.b16 %v2125
  %v2160 = vunpack.c.h.b16 %v2125
  %v2161 = vunpack.c.l.b16 %v2126
  %v2162 = vunpack.c.h.b16 %v2126
  %v2163 = vunpack.c.l.b16 %v2127
  %v2164 = vunpack.c.h.b16 %v2127
  %v2165 = vunpack.c.l.b16 %v2128
  %v2166 = vunpack.c.h.b16 %v2128
  %v2167 = vunpack.c.l.b16 %v2129
  %v2168 = vunpack.c.h.b16 %v2129
  %v2169 = vunpack.c.l.b16 %v2130
  %v2170 = vunpack.c.h.b16 %v2130
  %v2171 = vunpack.c.l.b16 %v2131
  %v2172 = vunpack.c.h.b16 %v2131
  %v2173 = vpack.c.b16 %v2151, %v2149
  %v2174 = vpack.c.b16 %v2152, %v2150
  %v2175 = vpack.c.b16 %v2155, %v2153
  %v2176 = vpack.c.b16 %v2156, %v2154
  %v2177 = vpack.c.b16 %v2159, %v2157
  %v2178 = vpack.c.b16 %v2160, %v2158
  %v2179 = vpack.c.b16 %v2163, %v2161
  %v2180 = vpack.c.b16 %v2164, %v2162
  %v2181 = vpack.c.b16 %v2167, %v2165
  %v2182 = vpack.c.b16 %v2168, %v2166
  %v2183 = vpack.c.b16 %v2171, %v2169
  %v2184 = vpack.c.b16 %v2172, %v2170
  %v2198 = vsel %vm328, %v2136, 0
  %2200 = vmatprep.subr.bf16.mxu0 0
  %2201 = vmatpush1.bf16.msra.mxu0 0
  %2202 = vmatprep.subr.bf16.mxu0 0
  %2203 = vmatpush1.bf16.msra.mxu0 0
  %2204 = vmatprep.subr.bf16.mxu0 %v2184
  %2205 = vmatpush1.bf16.msra.mxu0 %v2183
  %2206 = vmatprep.subr.bf16.mxu0 %v2182
  %2207 = vmatpush1.bf16.msra.mxu0 %v2181
  %2208 = vmatprep.subr.bf16.mxu0 %v2180
  %2209 = vmatpush1.bf16.msra.mxu0 %v2179
  %2210 = vmatprep.subr.bf16.mxu0 %v2178
  %2211 = vmatpush1.bf16.msra.mxu0 %v2177
  %2212 = vmatprep.subr.bf16.mxu0 %v2176
  %2213 = vmatpush1.bf16.msra.mxu0 %v2175
  %2214 = vmatprep.subr.bf16.mxu0 %v2174
  %2215 = vmatpush1.bf16.msra.mxu0 %v2173
  %2216 = vmatprep.subr.bf16.mxu0 0
  %2217 = vmatpush2.bf16.msra.mxu0 0
  %2218 = vmatprep.subr.bf16.mxu0 0
  %2219 = vmatpush2.bf16.msra.mxu0 0
  %2220 = vmatprep.subr.bf16.mxu0 0
  %2221 = vmatpush2.bf16.msra.mxu0 0
  %2222 = vmatprep.subr.bf16.mxu0 0
  %2223 = vmatpush2.bf16.msra.mxu0 0
  %2224 = vmatprep.subr.bf16.mxu0 0
  %2225 = vmatpush2.bf16.msra.mxu0 0
  %2226 = vmatprep.subr.bf16.mxu0 0
  %2227 = vmatpush2.bf16.msra.mxu0 0
  %2228 = vmatprep.subr.bf16.mxu0 0
  %2229 = vmatpush2.bf16.msra.mxu0 0
  %2230 = vmatprep.subr.bf16.mxu0 0
  %2231 = vmatpush2.bf16.msra.mxu0 0
  %2232 = vmatprep.mubr.bf16.mxu0 0
  %2233 = vmatmul.mubr.bf16.gmra.mxu0 %v339
  %v2234 = vpop.f32.mrf.mxu0
  %v2235 = vadd.f32 0.0, %v2234
  %v2236 = vpop.f32.mrf.mxu0
  %v2237 = vadd.f32 0.0, %v2236
  %v2238 = vpop.f32.mrf.mxu0
  %v2239 = vadd.f32 0.0, %v2238
  %v2240 = vpop.f32.mrf.mxu0
  %v2241 = vadd.f32 0.0, %v2240
  %2242 = vmatprep.mubr.bf16.mxu0 0
  %2243 = vmatmul.mubr.bf16.gmra.mxu0 %v342
  %v2244 = vpop.f32.mrf.mxu0
  %v2245 = vadd.f32 0.0, %v2244
  %v2246 = vpop.f32.mrf.mxu0
  %v2247 = vadd.f32 0.0, %v2246
  %v2248 = vpop.f32.mrf.mxu0
  %v2249 = vadd.f32 0.0, %v2248
  %v2250 = vpop.f32.mrf.mxu0
  %v2251 = vadd.f32 0.0, %v2250
  %2252 = vmatprep.mubr.bf16.mxu0 0
  %2253 = vmatmul.mubr.bf16.gmra.mxu0 %v345
  %v2254 = vpop.f32.mrf.mxu0
  %v2255 = vadd.f32 0.0, %v2254
  %v2256 = vpop.f32.mrf.mxu0
  %v2257 = vadd.f32 0.0, %v2256
  %v2258 = vpop.f32.mrf.mxu0
  %v2259 = vadd.f32 0.0, %v2258
  %v2260 = vpop.f32.mrf.mxu0
  %v2261 = vadd.f32 0.0, %v2260
  %2262 = vmatprep.mubr.bf16.mxu0 0
  %2263 = vmatmul.mubr.bf16.gmra.mxu0 %v348
  %v2264 = vpop.f32.mrf.mxu0
  %v2265 = vadd.f32 0.0, %v2264
  %v2266 = vpop.f32.mrf.mxu0
  %v2267 = vadd.f32 0.0, %v2266
  %v2268 = vpop.f32.mrf.mxu0
  %v2269 = vadd.f32 0.0, %v2268
  %v2270 = vpop.f32.mrf.mxu0
  %v2271 = vadd.f32 0.0, %v2270
  %2272 = vmatprep.mubr.bf16.mxu0 0
  %2273 = vmatmul.mubr.bf16.gmra.mxu0 %v351
  %v2274 = vpop.f32.mrf.mxu0
  %v2275 = vadd.f32 0.0, %v2274
  %v2276 = vpop.f32.mrf.mxu0
  %v2277 = vadd.f32 0.0, %v2276
  %v2278 = vpop.f32.mrf.mxu0
  %v2279 = vadd.f32 0.0, %v2278
  %v2280 = vpop.f32.mrf.mxu0
  %v2281 = vadd.f32 0.0, %v2280
  %2282 = vmatprep.mubr.bf16.mxu0 0
  %2283 = vmatmul.mubr.bf16.gmra.mxu0 %v354
  %v2284 = vpop.f32.mrf.mxu0
  %v2285 = vadd.f32 0.0, %v2284
  %v2286 = vpop.f32.mrf.mxu0
  %v2287 = vadd.f32 0.0, %v2286
  %v2288 = vpop.f32.mrf.mxu0
  %v2289 = vadd.f32 0.0, %v2288
  %v2290 = vpop.f32.mrf.mxu0
  %v2291 = vadd.f32 0.0, %v2290
  %2292 = vmatprep.mubr.bf16.mxu0 0
  %2293 = vmatmul.mubr.bf16.gmra.mxu0 %v357
  %v2294 = vpop.f32.mrf.mxu0
  %v2295 = vadd.f32 0.0, %v2294
  %v2296 = vpop.f32.mrf.mxu0
  %v2297 = vadd.f32 0.0, %v2296
  %v2298 = vpop.f32.mrf.mxu0
  %v2299 = vadd.f32 0.0, %v2298
  %v2300 = vpop.f32.mrf.mxu0
  %v2301 = vadd.f32 0.0, %v2300
  %2302 = vmatprep.mubr.bf16.mxu0 0
  %2303 = vmatmul.mubr.bf16.gmra.mxu0 %v360
  %v2304 = vpop.f32.mrf.mxu0
  %v2305 = vadd.f32 0.0, %v2304
  %v2306 = vpop.f32.mrf.mxu0
  %v2307 = vadd.f32 0.0, %v2306
  %v2308 = vpop.f32.mrf.mxu0
  %v2309 = vadd.f32 0.0, %v2308
  %v2310 = vpop.f32.mrf.mxu0
  %v2311 = vadd.f32 0.0, %v2310
  %2312 = vmatprep.mubr.bf16.mxu0 0
  %2313 = vmatmul.mubr.bf16.gmra.mxu0 %v363
  %v2314 = vpop.f32.mrf.mxu0
  %v2315 = vadd.f32 0.0, %v2314
  %v2316 = vpop.f32.mrf.mxu0
  %v2317 = vadd.f32 0.0, %v2316
  %v2318 = vpop.f32.mrf.mxu0
  %v2319 = vadd.f32 0.0, %v2318
  %v2320 = vpop.f32.mrf.mxu0
  %v2321 = vadd.f32 0.0, %v2320
  %2322 = vmatprep.mubr.bf16.mxu0 0
  %2323 = vmatmul.mubr.bf16.gmra.mxu0 %v366
  %v2324 = vpop.f32.mrf.mxu0
  %v2325 = vadd.f32 0.0, %v2324
  %v2326 = vpop.f32.mrf.mxu0
  %v2327 = vadd.f32 0.0, %v2326
  %v2328 = vpop.f32.mrf.mxu0
  %v2329 = vadd.f32 0.0, %v2328
  %v2330 = vpop.f32.mrf.mxu0
  %v2331 = vadd.f32 0.0, %v2330
  %2332 = vmatprep.mubr.bf16.mxu0 0
  %2333 = vmatmul.mubr.bf16.gmra.mxu0 %v369
  %v2334 = vpop.f32.mrf.mxu0
  %v2335 = vadd.f32 0.0, %v2334
  %v2336 = vpop.f32.mrf.mxu0
  %v2337 = vadd.f32 0.0, %v2336
  %v2338 = vpop.f32.mrf.mxu0
  %v2339 = vadd.f32 0.0, %v2338
  %v2340 = vpop.f32.mrf.mxu0
  %v2341 = vadd.f32 0.0, %v2340
  %2342 = vmatprep.mubr.bf16.mxu0 0
  %2343 = vmatmul.mubr.bf16.gmra.mxu0 %v372
  %v2344 = vpop.f32.mrf.mxu0
  %v2345 = vadd.f32 0.0, %v2344
  %v2346 = vpop.f32.mrf.mxu0
  %v2347 = vadd.f32 0.0, %v2346
  %v2348 = vpop.f32.mrf.mxu0
  %v2349 = vadd.f32 0.0, %v2348
  %v2350 = vpop.f32.mrf.mxu0
  %v2351 = vadd.f32 0.0, %v2350
  %2352 = vmatprep.mubr.bf16.mxu0 0
  %2353 = vmatmul.mubr.bf16.gmra.mxu0 %v375
  %v2354 = vpop.f32.mrf.mxu0
  %v2355 = vadd.f32 0.0, %v2354
  %v2356 = vpop.f32.mrf.mxu0
  %v2357 = vadd.f32 0.0, %v2356
  %v2358 = vpop.f32.mrf.mxu0
  %v2359 = vadd.f32 0.0, %v2358
  %v2360 = vpop.f32.mrf.mxu0
  %v2361 = vadd.f32 0.0, %v2360
  %2362 = vmatprep.mubr.bf16.mxu0 0
  %2363 = vmatmul.mubr.bf16.gmra.mxu0 %v378
  %v2364 = vpop.f32.mrf.mxu0
  %v2365 = vadd.f32 0.0, %v2364
  %v2366 = vpop.f32.mrf.mxu0
  %v2367 = vadd.f32 0.0, %v2366
  %v2368 = vpop.f32.mrf.mxu0
  %v2369 = vadd.f32 0.0, %v2368
  %v2370 = vpop.f32.mrf.mxu0
  %v2371 = vadd.f32 0.0, %v2370
  %2372 = vmatprep.mubr.bf16.mxu0 0
  %2373 = vmatmul.mubr.bf16.gmra.mxu0 %v381
  %v2374 = vpop.f32.mrf.mxu0
  %v2375 = vadd.f32 0.0, %v2374
  %v2376 = vpop.f32.mrf.mxu0
  %v2377 = vadd.f32 0.0, %v2376
  %v2378 = vpop.f32.mrf.mxu0
  %v2379 = vadd.f32 0.0, %v2378
  %v2380 = vpop.f32.mrf.mxu0
  %v2381 = vadd.f32 0.0, %v2380
  %2382 = vmatprep.mubr.bf16.mxu0 0
  %2383 = vmatmul.mubr.bf16.gmra.mxu0 %v384
  %v2384 = vpop.f32.mrf.mxu0
  %v2385 = vadd.f32 0.0, %v2384
  %v2386 = vpop.f32.mrf.mxu0
  %v2387 = vadd.f32 0.0, %v2386
  %v2388 = vpop.f32.mrf.mxu0
  %v2389 = vadd.f32 0.0, %v2388
  %v2390 = vpop.f32.mrf.mxu0
  %v2391 = vadd.f32 0.0, %v2390
  %2392 = vmatprep.mubr.bf16.mxu0 0
  %2393 = vmatmul.mubr.bf16.gmra.mxu0 %v387
  %v2394 = vpop.f32.mrf.mxu0
  %v2395 = vadd.f32 0.0, %v2394
  %v2396 = vpop.f32.mrf.mxu0
  %v2397 = vadd.f32 0.0, %v2396
  %v2398 = vpop.f32.mrf.mxu0
  %v2399 = vadd.f32 0.0, %v2398
  %v2400 = vpop.f32.mrf.mxu0
  %v2401 = vadd.f32 0.0, %v2400
  %2402 = vmatprep.mubr.bf16.mxu0 0
  %2403 = vmatmul.mubr.bf16.gmra.mxu0 %v390
  %v2404 = vpop.f32.mrf.mxu0
  %v2405 = vadd.f32 0.0, %v2404
  %v2406 = vpop.f32.mrf.mxu0
  %v2407 = vadd.f32 0.0, %v2406
  %v2408 = vpop.f32.mrf.mxu0
  %v2409 = vadd.f32 0.0, %v2408
  %v2410 = vpop.f32.mrf.mxu0
  %v2411 = vadd.f32 0.0, %v2410
  %2412 = vmatprep.mubr.bf16.mxu0 0
  %2413 = vmatmul.mubr.bf16.gmra.mxu0 %v393
  %v2414 = vpop.f32.mrf.mxu0
  %v2415 = vadd.f32 0.0, %v2414
  %v2416 = vpop.f32.mrf.mxu0
  %v2417 = vadd.f32 0.0, %v2416
  %v2418 = vpop.f32.mrf.mxu0
  %v2419 = vadd.f32 0.0, %v2418
  %v2420 = vpop.f32.mrf.mxu0
  %v2421 = vadd.f32 0.0, %v2420
  %2422 = vmatprep.mubr.bf16.mxu0 0
  %2423 = vmatmul.mubr.bf16.gmra.mxu0 %v396
  %v2424 = vpop.f32.mrf.mxu0
  %v2425 = vadd.f32 0.0, %v2424
  %v2426 = vpop.f32.mrf.mxu0
  %v2427 = vadd.f32 0.0, %v2426
  %v2428 = vpop.f32.mrf.mxu0
  %v2429 = vadd.f32 0.0, %v2428
  %v2430 = vpop.f32.mrf.mxu0
  %v2431 = vadd.f32 0.0, %v2430
  %2432 = vmatprep.mubr.bf16.mxu0 0
  %2433 = vmatmul.mubr.bf16.gmra.mxu0 %v399
  %v2434 = vpop.f32.mrf.mxu0
  %v2435 = vadd.f32 0.0, %v2434
  %v2436 = vpop.f32.mrf.mxu0
  %v2437 = vadd.f32 0.0, %v2436
  %v2438 = vpop.f32.mrf.mxu0
  %v2439 = vadd.f32 0.0, %v2438
  %v2440 = vpop.f32.mrf.mxu0
  %v2441 = vadd.f32 0.0, %v2440
  %2442 = vmatprep.mubr.bf16.mxu0 0
  %2443 = vmatmul.mubr.bf16.gmra.mxu0 %v402
  %v2444 = vpop.f32.mrf.mxu0
  %v2445 = vadd.f32 0.0, %v2444
  %v2446 = vpop.f32.mrf.mxu0
  %v2447 = vadd.f32 0.0, %v2446
  %v2448 = vpop.f32.mrf.mxu0
  %v2449 = vadd.f32 0.0, %v2448
  %v2450 = vpop.f32.mrf.mxu0
  %v2451 = vadd.f32 0.0, %v2450
  %2452 = vmatprep.mubr.bf16.mxu0 0
  %2453 = vmatmul.mubr.bf16.gmra.mxu0 %v405
  %v2454 = vpop.f32.mrf.mxu0
  %v2455 = vadd.f32 0.0, %v2454
  %v2456 = vpop.f32.mrf.mxu0
  %v2457 = vadd.f32 0.0, %v2456
  %v2458 = vpop.f32.mrf.mxu0
  %v2459 = vadd.f32 0.0, %v2458
  %v2460 = vpop.f32.mrf.mxu0
  %v2461 = vadd.f32 0.0, %v2460
  %2462 = vmatprep.mubr.bf16.mxu0 0
  %2463 = vmatmul.mubr.bf16.gmra.mxu0 %v408
  %v2464 = vpop.f32.mrf.mxu0
  %v2465 = vadd.f32 0.0, %v2464
  %v2466 = vpop.f32.mrf.mxu0
  %v2467 = vadd.f32 0.0, %v2466
  %v2468 = vpop.f32.mrf.mxu0
  %v2469 = vadd.f32 0.0, %v2468
  %v2470 = vpop.f32.mrf.mxu0
  %v2471 = vadd.f32 0.0, %v2470
  %2472 = vmatprep.mubr.bf16.mxu0 0
  %2473 = vmatmul.mubr.bf16.gmra.mxu0 %v411
  %v2474 = vpop.f32.mrf.mxu0
  %v2475 = vadd.f32 0.0, %v2474
  %v2476 = vpop.f32.mrf.mxu0
  %v2477 = vadd.f32 0.0, %v2476
  %v2478 = vpop.f32.mrf.mxu0
  %v2479 = vadd.f32 0.0, %v2478
  %v2480 = vpop.f32.mrf.mxu0
  %v2481 = vadd.f32 0.0, %v2480
  %2482 = vmatprep.mubr.bf16.mxu0 0
  %2483 = vmatmul.mubr.bf16.gmra.mxu0 %v1186
  %v2484 = vpop.f32.mrf.mxu0
  %v2485 = vadd.f32 0.0, %v2484
  %v2486 = vpop.f32.mrf.mxu0
  %v2487 = vadd.f32 0.0, %v2486
  %v2488 = vpop.f32.mrf.mxu0
  %v2489 = vadd.f32 0.0, %v2488
  %v2490 = vpop.f32.mrf.mxu0
  %v2491 = vadd.f32 0.0, %v2490
  %2492 = vmatprep.mubr.bf16.mxu0 0
  %2493 = vmatmul.mubr.bf16.gmra.mxu0 %v1692
  %v2494 = vpop.f32.mrf.mxu0
  %v2495 = vadd.f32 0.0, %v2494
  %v2496 = vpop.f32.mrf.mxu0
  %v2497 = vadd.f32 0.0, %v2496
  %v2498 = vpop.f32.mrf.mxu0
  %v2499 = vadd.f32 0.0, %v2498
  %v2500 = vpop.f32.mrf.mxu0
  %v2501 = vadd.f32 0.0, %v2500
  %2502 = vmatprep.mubr.bf16.mxu0 0
  %2503 = vmatmul.mubr.bf16.gmra.mxu0 %v2198
  %v2504 = vpop.f32.mrf.mxu0
  %v2505 = vadd.f32 0.0, %v2504
  %v2506 = vpop.f32.mrf.mxu0
  %v2507 = vadd.f32 0.0, %v2506
  %v2508 = vpop.f32.mrf.mxu0
  %v2509 = vadd.f32 0.0, %v2508
  %v2510 = vpop.f32.mrf.mxu0
  %v2511 = vadd.f32 0.0, %v2510
  %2512 = vdwg.mxu0
  %v2513 = vadd.f32 %v2007, %v2235
  %v2514 = vadd.f32 %v2008, %v2237
  %v2515 = vadd.f32 %v2009, %v2239
  %v2516 = vadd.f32 %v2010, %v2241
  %v2517 = vadd.f32 %v2011, %v2245
  %v2518 = vadd.f32 %v2012, %v2247
  %v2519 = vadd.f32 %v2013, %v2249
  %v2520 = vadd.f32 %v2014, %v2251
  %v2521 = vadd.f32 %v2015, %v2255
  %v2522 = vadd.f32 %v2016, %v2257
  %v2523 = vadd.f32 %v2017, %v2259
  %v2524 = vadd.f32 %v2018, %v2261
  %v2525 = vadd.f32 %v2019, %v2265
  %v2526 = vadd.f32 %v2020, %v2267
  %v2527 = vadd.f32 %v2021, %v2269
  %v2528 = vadd.f32 %v2022, %v2271
  %v2529 = vadd.f32 %v2023, %v2275
  %v2530 = vadd.f32 %v2024, %v2277
  %v2531 = vadd.f32 %v2025, %v2279
  %v2532 = vadd.f32 %v2026, %v2281
  %v2533 = vadd.f32 %v2027, %v2285
  %v2534 = vadd.f32 %v2028, %v2287
  %v2535 = vadd.f32 %v2029, %v2289
  %v2536 = vadd.f32 %v2030, %v2291
  %v2537 = vadd.f32 %v2031, %v2295
  %v2538 = vadd.f32 %v2032, %v2297
  %v2539 = vadd.f32 %v2033, %v2299
  %v2540 = vadd.f32 %v2034, %v2301
  %v2541 = vadd.f32 %v2035, %v2305
  %v2542 = vadd.f32 %v2036, %v2307
  %v2543 = vadd.f32 %v2037, %v2309
  %v2544 = vadd.f32 %v2038, %v2311
  %v2545 = vadd.f32 %v2039, %v2315
  %v2546 = vadd.f32 %v2040, %v2317
  %v2547 = vadd.f32 %v2041, %v2319
  %v2548 = vadd.f32 %v2042, %v2321
  %v2549 = vadd.f32 %v2043, %v2325
  %v2550 = vadd.f32 %v2044, %v2327
  %v2551 = vadd.f32 %v2045, %v2329
  %v2552 = vadd.f32 %v2046, %v2331
  %v2553 = vadd.f32 %v2047, %v2335
  %v2554 = vadd.f32 %v2048, %v2337
  %v2555 = vadd.f32 %v2049, %v2339
  %v2556 = vadd.f32 %v2050, %v2341
  %v2557 = vadd.f32 %v2051, %v2345
  %v2558 = vadd.f32 %v2052, %v2347
  %v2559 = vadd.f32 %v2053, %v2349
  %v2560 = vadd.f32 %v2054, %v2351
  %v2561 = vadd.f32 %v2055, %v2355
  %v2562 = vadd.f32 %v2056, %v2357
  %v2563 = vadd.f32 %v2057, %v2359
  %v2564 = vadd.f32 %v2058, %v2361
  %v2565 = vadd.f32 %v2059, %v2365
  %v2566 = vadd.f32 %v2060, %v2367
  %v2567 = vadd.f32 %v2061, %v2369
  %v2568 = vadd.f32 %v2062, %v2371
  %v2569 = vadd.f32 %v2063, %v2375
  %v2570 = vadd.f32 %v2064, %v2377
  %v2571 = vadd.f32 %v2065, %v2379
  %v2572 = vadd.f32 %v2066, %v2381
  %v2573 = vadd.f32 %v2067, %v2385
  %v2574 = vadd.f32 %v2068, %v2387
  %v2575 = vadd.f32 %v2069, %v2389
  %v2576 = vadd.f32 %v2070, %v2391
  %v2577 = vadd.f32 %v2071, %v2395
  %v2578 = vadd.f32 %v2072, %v2397
  %v2579 = vadd.f32 %v2073, %v2399
  %v2580 = vadd.f32 %v2074, %v2401
  %v2581 = vadd.f32 %v2075, %v2405
  %v2582 = vadd.f32 %v2076, %v2407
  %v2583 = vadd.f32 %v2077, %v2409
  %v2584 = vadd.f32 %v2078, %v2411
  %v2585 = vadd.f32 %v2079, %v2415
  %v2586 = vadd.f32 %v2080, %v2417
  %v2587 = vadd.f32 %v2081, %v2419
  %v2588 = vadd.f32 %v2082, %v2421
  %v2589 = vadd.f32 %v2083, %v2425
  %v2590 = vadd.f32 %v2084, %v2427
  %v2591 = vadd.f32 %v2085, %v2429
  %v2592 = vadd.f32 %v2086, %v2431
  %v2593 = vadd.f32 %v2087, %v2435
  %v2594 = vadd.f32 %v2088, %v2437
  %v2595 = vadd.f32 %v2089, %v2439
  %v2596 = vadd.f32 %v2090, %v2441
  %v2597 = vadd.f32 %v2091, %v2445
  %v2598 = vadd.f32 %v2092, %v2447
  %v2599 = vadd.f32 %v2093, %v2449
  %v2600 = vadd.f32 %v2094, %v2451
  %v2601 = vadd.f32 %v2095, %v2455
  %v2602 = vadd.f32 %v2096, %v2457
  %v2603 = vadd.f32 %v2097, %v2459
  %v2604 = vadd.f32 %v2098, %v2461
  %v2605 = vadd.f32 %v2099, %v2465
  %v2606 = vadd.f32 %v2100, %v2467
  %v2607 = vadd.f32 %v2101, %v2469
  %v2608 = vadd.f32 %v2102, %v2471
  %v2609 = vadd.f32 %v2103, %v2475
  %v2610 = vadd.f32 %v2104, %v2477
  %v2611 = vadd.f32 %v2105, %v2479
  %v2612 = vadd.f32 %v2106, %v2481
  %v2613 = vadd.f32 %v2107, %v2485
  %v2614 = vadd.f32 %v2108, %v2487
  %v2615 = vadd.f32 %v2109, %v2489
  %v2616 = vadd.f32 %v2110, %v2491
  %v2617 = vadd.f32 %v2111, %v2495
  %v2618 = vadd.f32 %v2112, %v2497
  %v2619 = vadd.f32 %v2113, %v2499
  %v2620 = vadd.f32 %v2114, %v2501
  %v2621 = vadd.f32 %v2115, %v2505
  %v2622 = vadd.f32 %v2116, %v2507
  %v2623 = vadd.f32 %v2117, %v2509
  %v2624 = vadd.f32 %v2118, %v2511
  %v2625 = vld [vmem:[%s2] sm:$0x3]
  %v2627 = vlaneseq
  %v2628 = vshrl.u32 %v2627, 7
  %v2629 = vsub.s32 0, %v2628
  %v2630 = vrot.slane %v2625, %v2629
  %v2631 = vlaneseq
  %v2632 = vshrl.u32 %v2631, 7
  %v2633 = vsub.s32 1, %v2632
  %v2634 = vrot.slane %v2625, %v2633
  %v2637 = vadd.f32 %v2513, %v2630
  %v2638 = vadd.f32 %v2514, %v2634
  %v2639 = vadd.f32 %v2515, %v2630
  %v2640 = vadd.f32 %v2516, %v2634
  %v2641 = vadd.f32 %v2517, %v2630
  %v2642 = vadd.f32 %v2518, %v2634
  %v2643 = vadd.f32 %v2519, %v2630
  %v2644 = vadd.f32 %v2520, %v2634
  %v2645 = vadd.f32 %v2521, %v2630
  %v2646 = vadd.f32 %v2522, %v2634
  %v2647 = vadd.f32 %v2523, %v2630
  %v2648 = vadd.f32 %v2524, %v2634
  %v2649 = vadd.f32 %v2525, %v2630
  %v2650 = vadd.f32 %v2526, %v2634
  %v2651 = vadd.f32 %v2527, %v2630
  %v2652 = vadd.f32 %v2528, %v2634
  %v2653 = vadd.f32 %v2529, %v2630
  %v2654 = vadd.f32 %v2530, %v2634
  %v2655 = vadd.f32 %v2531, %v2630
  %v2656 = vadd.f32 %v2532, %v2634
  %v2657 = vadd.f32 %v2533, %v2630
  %v2658 = vadd.f32 %v2534, %v2634
  %v2659 = vadd.f32 %v2535, %v2630
  %v2660 = vadd.f32 %v2536, %v2634
  %v2661 = vadd.f32 %v2537, %v2630
  %v2662 = vadd.f32 %v2538, %v2634
  %v2663 = vadd.f32 %v2539, %v2630
  %v2664 = vadd.f32 %v2540, %v2634
  %v2665 = vadd.f32 %v2541, %v2630
  %v2666 = vadd.f32 %v2542, %v2634
  %v2667 = vadd.f32 %v2543, %v2630
  %v2668 = vadd.f32 %v2544, %v2634
  %v2669 = vadd.f32 %v2545, %v2630
  %v2670 = vadd.f32 %v2546, %v2634
  %v2671 = vadd.f32 %v2547, %v2630
  %v2672 = vadd.f32 %v2548, %v2634
  %v2673 = vadd.f32 %v2549, %v2630
  %v2674 = vadd.f32 %v2550, %v2634
  %v2675 = vadd.f32 %v2551, %v2630
  %v2676 = vadd.f32 %v2552, %v2634
  %v2677 = vadd.f32 %v2553, %v2630
  %v2678 = vadd.f32 %v2554, %v2634
  %v2679 = vadd.f32 %v2555, %v2630
  %v2680 = vadd.f32 %v2556, %v2634
  %v2681 = vadd.f32 %v2557, %v2630
  %v2682 = vadd.f32 %v2558, %v2634
  %v2683 = vadd.f32 %v2559, %v2630
  %v2684 = vadd.f32 %v2560, %v2634
  %v2685 = vadd.f32 %v2561, %v2630
  %v2686 = vadd.f32 %v2562, %v2634
  %v2687 = vadd.f32 %v2563, %v2630
  %v2688 = vadd.f32 %v2564, %v2634
  %v2689 = vadd.f32 %v2565, %v2630
  %v2690 = vadd.f32 %v2566, %v2634
  %v2691 = vadd.f32 %v2567, %v2630
  %v2692 = vadd.f32 %v2568, %v2634
  %v2693 = vadd.f32 %v2569, %v2630
  %v2694 = vadd.f32 %v2570, %v2634
  %v2695 = vadd.f32 %v2571, %v2630
  %v2696 = vadd.f32 %v2572, %v2634
  %v2697 = vadd.f32 %v2573, %v2630
  %v2698 = vadd.f32 %v2574, %v2634
  %v2699 = vadd.f32 %v2575, %v2630
  %v2700 = vadd.f32 %v2576, %v2634
  %v2701 = vadd.f32 %v2577, %v2630
  %v2702 = vadd.f32 %v2578, %v2634
  %v2703 = vadd.f32 %v2579, %v2630
  %v2704 = vadd.f32 %v2580, %v2634
  %v2705 = vadd.f32 %v2581, %v2630
  %v2706 = vadd.f32 %v2582, %v2634
  %v2707 = vadd.f32 %v2583, %v2630
  %v2708 = vadd.f32 %v2584, %v2634
  %v2709 = vadd.f32 %v2585, %v2630
  %v2710 = vadd.f32 %v2586, %v2634
  %v2711 = vadd.f32 %v2587, %v2630
  %v2712 = vadd.f32 %v2588, %v2634
  %v2713 = vadd.f32 %v2589, %v2630
  %v2714 = vadd.f32 %v2590, %v2634
  %v2715 = vadd.f32 %v2591, %v2630
  %v2716 = vadd.f32 %v2592, %v2634
  %v2717 = vadd.f32 %v2593, %v2630
  %v2718 = vadd.f32 %v2594, %v2634
  %v2719 = vadd.f32 %v2595, %v2630
  %v2720 = vadd.f32 %v2596, %v2634
  %v2721 = vadd.f32 %v2597, %v2630
  %v2722 = vadd.f32 %v2598, %v2634
  %v2723 = vadd.f32 %v2599, %v2630
  %v2724 = vadd.f32 %v2600, %v2634
  %v2725 = vadd.f32 %v2601, %v2630
  %v2726 = vadd.f32 %v2602, %v2634
  %v2727 = vadd.f32 %v2603, %v2630
  %v2728 = vadd.f32 %v2604, %v2634
  %v2729 = vadd.f32 %v2605, %v2630
  %v2730 = vadd.f32 %v2606, %v2634
  %v2731 = vadd.f32 %v2607, %v2630
  %v2732 = vadd.f32 %v2608, %v2634
  %v2733 = vadd.f32 %v2609, %v2630
  %v2734 = vadd.f32 %v2610, %v2634
  %v2735 = vadd.f32 %v2611, %v2630
  %v2736 = vadd.f32 %v2612, %v2634
  %v2737 = vadd.f32 %v2613, %v2630
  %v2738 = vadd.f32 %v2614, %v2634
  %v2739 = vadd.f32 %v2615, %v2630
  %v2740 = vadd.f32 %v2616, %v2634
  %v2741 = vadd.f32 %v2617, %v2630
  %v2742 = vadd.f32 %v2618, %v2634
  %v2743 = vadd.f32 %v2619, %v2630
  %v2744 = vadd.f32 %v2620, %v2634
  %v2745 = vadd.f32 %v2621, %v2630
  %v2746 = vadd.f32 %v2622, %v2634
  %v2747 = vadd.f32 %v2623, %v2630
  %v2748 = vadd.f32 %v2624, %v2634
  %v2749 = vmax.f32 %v2637, 0.0
  %v2750 = vmax.f32 %v2638, 0.0
  %v2751 = vmax.f32 %v2639, 0.0
  %v2752 = vmax.f32 %v2640, 0.0
  %v2753 = vmax.f32 %v2641, 0.0
  %v2754 = vmax.f32 %v2642, 0.0
  %v2755 = vmax.f32 %v2643, 0.0
  %v2756 = vmax.f32 %v2644, 0.0
  %v2757 = vmax.f32 %v2645, 0.0
  %v2758 = vmax.f32 %v2646, 0.0
  %v2759 = vmax.f32 %v2647, 0.0
  %v2760 = vmax.f32 %v2648, 0.0
  %v2761 = vmax.f32 %v2649, 0.0
  %v2762 = vmax.f32 %v2650, 0.0
  %v2763 = vmax.f32 %v2651, 0.0
  %v2764 = vmax.f32 %v2652, 0.0
  %v2765 = vmax.f32 %v2653, 0.0
  %v2766 = vmax.f32 %v2654, 0.0
  %v2767 = vmax.f32 %v2655, 0.0
  %v2768 = vmax.f32 %v2656, 0.0
  %v2769 = vmax.f32 %v2657, 0.0
  %v2770 = vmax.f32 %v2658, 0.0
  %v2771 = vmax.f32 %v2659, 0.0
  %v2772 = vmax.f32 %v2660, 0.0
  %v2773 = vmax.f32 %v2661, 0.0
  %v2774 = vmax.f32 %v2662, 0.0
  %v2775 = vmax.f32 %v2663, 0.0
  %v2776 = vmax.f32 %v2664, 0.0
  %v2777 = vmax.f32 %v2665, 0.0
  %v2778 = vmax.f32 %v2666, 0.0
  %v2779 = vmax.f32 %v2667, 0.0
  %v2780 = vmax.f32 %v2668, 0.0
  %v2781 = vmax.f32 %v2669, 0.0
  %v2782 = vmax.f32 %v2670, 0.0
  %v2783 = vmax.f32 %v2671, 0.0
  %v2784 = vmax.f32 %v2672, 0.0
  %v2785 = vmax.f32 %v2673, 0.0
  %v2786 = vmax.f32 %v2674, 0.0
  %v2787 = vmax.f32 %v2675, 0.0
  %v2788 = vmax.f32 %v2676, 0.0
  %v2789 = vmax.f32 %v2677, 0.0
  %v2790 = vmax.f32 %v2678, 0.0
  %v2791 = vmax.f32 %v2679, 0.0
  %v2792 = vmax.f32 %v2680, 0.0
  %v2793 = vmax.f32 %v2681, 0.0
  %v2794 = vmax.f32 %v2682, 0.0
  %v2795 = vmax.f32 %v2683, 0.0
  %v2796 = vmax.f32 %v2684, 0.0
  %v2797 = vmax.f32 %v2685, 0.0
  %v2798 = vmax.f32 %v2686, 0.0
  %v2799 = vmax.f32 %v2687, 0.0
  %v2800 = vmax.f32 %v2688, 0.0
  %v2801 = vmax.f32 %v2689, 0.0
  %v2802 = vmax.f32 %v2690, 0.0
  %v2803 = vmax.f32 %v2691, 0.0
  %v2804 = vmax.f32 %v2692, 0.0
  %v2805 = vmax.f32 %v2693, 0.0
  %v2806 = vmax.f32 %v2694, 0.0
  %v2807 = vmax.f32 %v2695, 0.0
  %v2808 = vmax.f32 %v2696, 0.0
  %v2809 = vmax.f32 %v2697, 0.0
  %v2810 = vmax.f32 %v2698, 0.0
  %v2811 = vmax.f32 %v2699, 0.0
  %v2812 = vmax.f32 %v2700, 0.0
  %v2813 = vmax.f32 %v2701, 0.0
  %v2814 = vmax.f32 %v2702, 0.0
  %v2815 = vmax.f32 %v2703, 0.0
  %v2816 = vmax.f32 %v2704, 0.0
  %v2817 = vmax.f32 %v2705, 0.0
  %v2818 = vmax.f32 %v2706, 0.0
  %v2819 = vmax.f32 %v2707, 0.0
  %v2820 = vmax.f32 %v2708, 0.0
  %v2821 = vmax.f32 %v2709, 0.0
  %v2822 = vmax.f32 %v2710, 0.0
  %v2823 = vmax.f32 %v2711, 0.0
  %v2824 = vmax.f32 %v2712, 0.0
  %v2825 = vmax.f32 %v2713, 0.0
  %v2826 = vmax.f32 %v2714, 0.0
  %v2827 = vmax.f32 %v2715, 0.0
  %v2828 = vmax.f32 %v2716, 0.0
  %v2829 = vmax.f32 %v2717, 0.0
  %v2830 = vmax.f32 %v2718, 0.0
  %v2831 = vmax.f32 %v2719, 0.0
  %v2832 = vmax.f32 %v2720, 0.0
  %v2833 = vmax.f32 %v2721, 0.0
  %v2834 = vmax.f32 %v2722, 0.0
  %v2835 = vmax.f32 %v2723, 0.0
  %v2836 = vmax.f32 %v2724, 0.0
  %v2837 = vmax.f32 %v2725, 0.0
  %v2838 = vmax.f32 %v2726, 0.0
  %v2839 = vmax.f32 %v2727, 0.0
  %v2840 = vmax.f32 %v2728, 0.0
  %v2841 = vmax.f32 %v2729, 0.0
  %v2842 = vmax.f32 %v2730, 0.0
  %v2843 = vmax.f32 %v2731, 0.0
  %v2844 = vmax.f32 %v2732, 0.0
  %v2845 = vmax.f32 %v2733, 0.0
  %v2846 = vmax.f32 %v2734, 0.0
  %v2847 = vmax.f32 %v2735, 0.0
  %v2848 = vmax.f32 %v2736, 0.0
  %v2849 = vmax.f32 %v2737, 0.0
  %v2850 = vmax.f32 %v2738, 0.0
  %v2851 = vmax.f32 %v2739, 0.0
  %v2852 = vmax.f32 %v2740, 0.0
  %v2853 = vmax.f32 %v2741, 0.0
  %v2854 = vmax.f32 %v2742, 0.0
  %v2855 = vmax.f32 %v2743, 0.0
  %v2856 = vmax.f32 %v2744, 0.0
  %v2857 = vmax.f32 %v2745, 0.0
  %v2858 = vmax.f32 %v2746, 0.0
  %v2859 = vmax.f32 %v2747, 0.0
  %v2860 = vmax.f32 %v2748, 0.0
  %v2861 = vmax.f32 %v2749, %v2753
  %v2862 = vmax.f32 %v2750, %v2754
  %v2863 = vmax.f32 %v2751, %v2755
  %v2864 = vmax.f32 %v2752, %v2756
  %v2865 = vmax.f32 %v2757, %v2761
  %v2866 = vmax.f32 %v2758, %v2762
  %v2867 = vmax.f32 %v2759, %v2763
  %v2868 = vmax.f32 %v2760, %v2764
  %v2869 = vmax.f32 %v2765, %v2769
  %v2870 = vmax.f32 %v2766, %v2770
  %v2871 = vmax.f32 %v2767, %v2771
  %v2872 = vmax.f32 %v2768, %v2772
  %v2873 = vmax.f32 %v2773, %v2777
  %v2874 = vmax.f32 %v2774, %v2778
  %v2875 = vmax.f32 %v2775, %v2779
  %v2876 = vmax.f32 %v2776, %v2780
  %v2877 = vmax.f32 %v2781, %v2785
  %v2878 = vmax.f32 %v2782, %v2786
  %v2879 = vmax.f32 %v2783, %v2787
  %v2880 = vmax.f32 %v2784, %v2788
  %v2881 = vmax.f32 %v2789, %v2793
  %v2882 = vmax.f32 %v2790, %v2794
  %v2883 = vmax.f32 %v2791, %v2795
  %v2884 = vmax.f32 %v2792, %v2796
  %v2885 = vmax.f32 %v2797, %v2801
  %v2886 = vmax.f32 %v2798, %v2802
  %v2887 = vmax.f32 %v2799, %v2803
  %v2888 = vmax.f32 %v2800, %v2804
  %v2889 = vmax.f32 %v2805, %v2809
  %v2890 = vmax.f32 %v2806, %v2810
  %v2891 = vmax.f32 %v2807, %v2811
  %v2892 = vmax.f32 %v2808, %v2812
  %v2893 = vmax.f32 %v2813, %v2817
  %v2894 = vmax.f32 %v2814, %v2818
  %v2895 = vmax.f32 %v2815, %v2819
  %v2896 = vmax.f32 %v2816, %v2820
  %v2897 = vmax.f32 %v2821, %v2825
  %v2898 = vmax.f32 %v2822, %v2826
  %v2899 = vmax.f32 %v2823, %v2827
  %v2900 = vmax.f32 %v2824, %v2828
  %v2901 = vmax.f32 %v2829, %v2833
  %v2902 = vmax.f32 %v2830, %v2834
  %v2903 = vmax.f32 %v2831, %v2835
  %v2904 = vmax.f32 %v2832, %v2836
  %v2905 = vmax.f32 %v2837, %v2841
  %v2906 = vmax.f32 %v2838, %v2842
  %v2907 = vmax.f32 %v2839, %v2843
  %v2908 = vmax.f32 %v2840, %v2844
  %v2909 = vmax.f32 %v2845, %v2849
  %v2910 = vmax.f32 %v2846, %v2850
  %v2911 = vmax.f32 %v2847, %v2851
  %v2912 = vmax.f32 %v2848, %v2852
  %v2913 = vmax.f32 %v2853, %v2857
  %v2914 = vmax.f32 %v2854, %v2858
  %v2915 = vmax.f32 %v2855, %v2859
  %v2916 = vmax.f32 %v2856, %v2860
  %2973 = vrot.lane.b32.xlu0 %v2861, 122
  %v2974 = vpop.permute.xlu0 %2973
  %2975 = vrot.lane.b32.xlu0 %v2862, 122
  %v2976 = vpop.permute.xlu0 %2975
  %2977 = vrot.lane.b32.xlu0 %v2863, 122
  %v2978 = vpop.permute.xlu0 %2977
  %2979 = vrot.lane.b32.xlu0 %v2864, 122
  %v2980 = vpop.permute.xlu0 %2979
  %2981 = vrot.lane.b32.xlu0 %v2865, 122
  %v2982 = vpop.permute.xlu0 %2981
  %2983 = vrot.lane.b32.xlu0 %v2866, 122
  %v2984 = vpop.permute.xlu0 %2983
  %2985 = vrot.lane.b32.xlu0 %v2867, 122
  %v2986 = vpop.permute.xlu0 %2985
  %2987 = vrot.lane.b32.xlu0 %v2868, 122
  %v2988 = vpop.permute.xlu0 %2987
  %2989 = vrot.lane.b32.xlu0 %v2869, 122
  %v2990 = vpop.permute.xlu0 %2989
  %2991 = vrot.lane.b32.xlu0 %v2870, 122
  %v2992 = vpop.permute.xlu0 %2991
  %2993 = vrot.lane.b32.xlu0 %v2871, 122
  %v2994 = vpop.permute.xlu0 %2993
  %2995 = vrot.lane.b32.xlu0 %v2872, 122
  %v2996 = vpop.permute.xlu0 %2995
  %2997 = vrot.lane.b32.xlu0 %v2873, 122
  %v2998 = vpop.permute.xlu0 %2997
  %2999 = vrot.lane.b32.xlu0 %v2874, 122
  %v3000 = vpop.permute.xlu0 %2999
  %3001 = vrot.lane.b32.xlu0 %v2875, 122
  %v3002 = vpop.permute.xlu0 %3001
  %3003 = vrot.lane.b32.xlu0 %v2876, 122
  %v3004 = vpop.permute.xlu0 %3003
  %3005 = vrot.lane.b32.xlu0 %v2877, 122
  %v3006 = vpop.permute.xlu0 %3005
  %3007 = vrot.lane.b32.xlu0 %v2878, 122
  %v3008 = vpop.permute.xlu0 %3007
  %3009 = vrot.lane.b32.xlu0 %v2879, 122
  %v3010 = vpop.permute.xlu0 %3009
  %3011 = vrot.lane.b32.xlu0 %v2880, 122
  %v3012 = vpop.permute.xlu0 %3011
  %3013 = vrot.lane.b32.xlu0 %v2881, 122
  %v3014 = vpop.permute.xlu0 %3013
  %3015 = vrot.lane.b32.xlu0 %v2882, 122
  %v3016 = vpop.permute.xlu0 %3015
  %3017 = vrot.lane.b32.xlu0 %v2883, 122
  %v3018 = vpop.permute.xlu0 %3017
  %3019 = vrot.lane.b32.xlu0 %v2884, 122
  %v3020 = vpop.permute.xlu0 %3019
  %3021 = vrot.lane.b32.xlu0 %v2885, 122
  %v3022 = vpop.permute.xlu0 %3021
  %3023 = vrot.lane.b32.xlu0 %v2886, 122
  %v3024 = vpop.permute.xlu0 %3023
  %3025 = vrot.lane.b32.xlu0 %v2887, 122
  %v3026 = vpop.permute.xlu0 %3025
  %3027 = vrot.lane.b32.xlu0 %v2888, 122
  %v3028 = vpop.permute.xlu0 %3027
  %3029 = vrot.lane.b32.xlu0 %v2889, 122
  %v3030 = vpop.permute.xlu0 %3029
  %3031 = vrot.lane.b32.xlu0 %v2890, 122
  %v3032 = vpop.permute.xlu0 %3031
  %3033 = vrot.lane.b32.xlu0 %v2891, 122
  %v3034 = vpop.permute.xlu0 %3033
  %3035 = vrot.lane.b32.xlu0 %v2892, 122
  %v3036 = vpop.permute.xlu0 %3035
  %3037 = vrot.lane.b32.xlu0 %v2893, 122
  %v3038 = vpop.permute.xlu0 %3037
  %3039 = vrot.lane.b32.xlu0 %v2894, 122
  %v3040 = vpop.permute.xlu0 %3039
  %3041 = vrot.lane.b32.xlu0 %v2895, 122
  %v3042 = vpop.permute.xlu0 %3041
  %3043 = vrot.lane.b32.xlu0 %v2896, 122
  %v3044 = vpop.permute.xlu0 %3043
  %3045 = vrot.lane.b32.xlu0 %v2897, 122
  %v3046 = vpop.permute.xlu0 %3045
  %3047 = vrot.lane.b32.xlu0 %v2898, 122
  %v3048 = vpop.permute.xlu0 %3047
  %3049 = vrot.lane.b32.xlu0 %v2899, 122
  %v3050 = vpop.permute.xlu0 %3049
  %3051 = vrot.lane.b32.xlu0 %v2900, 122
  %v3052 = vpop.permute.xlu0 %3051
  %3053 = vrot.lane.b32.xlu0 %v2901, 122
  %v3054 = vpop.permute.xlu0 %3053
  %3055 = vrot.lane.b32.xlu0 %v2902, 122
  %v3056 = vpop.permute.xlu0 %3055
  %3057 = vrot.lane.b32.xlu0 %v2903, 122
  %v3058 = vpop.permute.xlu0 %3057
  %3059 = vrot.lane.b32.xlu0 %v2904, 122
  %v3060 = vpop.permute.xlu0 %3059
  %3061 = vrot.lane.b32.xlu0 %v2905, 122
  %v3062 = vpop.permute.xlu0 %3061
  %3063 = vrot.lane.b32.xlu0 %v2906, 122
  %v3064 = vpop.permute.xlu0 %3063
  %3065 = vrot.lane.b32.xlu0 %v2907, 122
  %v3066 = vpop.permute.xlu0 %3065
  %3067 = vrot.lane.b32.xlu0 %v2908, 122
  %v3068 = vpop.permute.xlu0 %3067
  %3069 = vrot.lane.b32.xlu0 %v2909, 122
  %v3070 = vpop.permute.xlu0 %3069
  %3071 = vrot.lane.b32.xlu0 %v2910, 122
  %v3072 = vpop.permute.xlu0 %3071
  %3073 = vrot.lane.b32.xlu0 %v2911, 122
  %v3074 = vpop.permute.xlu0 %3073
  %3075 = vrot.lane.b32.xlu0 %v2912, 122
  %v3076 = vpop.permute.xlu0 %3075
  %3077 = vrot.lane.b32.xlu0 %v2913, 122
  %v3078 = vpop.permute.xlu0 %3077
  %3079 = vrot.lane.b32.xlu0 %v2914, 122
  %v3080 = vpop.permute.xlu0 %3079
  %3081 = vrot.lane.b32.xlu0 %v2915, 122
  %v3082 = vpop.permute.xlu0 %3081
  %3083 = vrot.lane.b32.xlu0 %v2916, 122
  %v3084 = vpop.permute.xlu0 %3083
  %vm3085 = vcmask 998400
  %v3086 = vsel %vm3085, %v2974, %v2976
  %v3087 = vsel %vm3085, %v2978, %v2980
  %v3088 = vsel %vm3085, %v2982, %v2984
  %v3089 = vsel %vm3085, %v2986, %v2988
  %v3090 = vsel %vm3085, %v2990, %v2992
  %v3091 = vsel %vm3085, %v2994, %v2996
  %v3092 = vsel %vm3085, %v2998, %v3000
  %v3093 = vsel %vm3085, %v3002, %v3004
  %v3094 = vsel %vm3085, %v3006, %v3008
  %v3095 = vsel %vm3085, %v3010, %v3012
  %v3096 = vsel %vm3085, %v3014, %v3016
  %v3097 = vsel %vm3085, %v3018, %v3020
  %v3098 = vsel %vm3085, %v3022, %v3024
  %v3099 = vsel %vm3085, %v3026, %v3028
  %v3100 = vsel %vm3085, %v3030, %v3032
  %v3101 = vsel %vm3085, %v3034, %v3036
  %v3102 = vsel %vm3085, %v3038, %v3040
  %v3103 = vsel %vm3085, %v3042, %v3044
  %v3104 = vsel %vm3085, %v3046, %v3048
  %v3105 = vsel %vm3085, %v3050, %v3052
  %v3106 = vsel %vm3085, %v3054, %v3056
  %v3107 = vsel %vm3085, %v3058, %v3060
  %v3108 = vsel %vm3085, %v3062, %v3064
  %v3109 = vsel %vm3085, %v3066, %v3068
  %v3110 = vsel %vm3085, %v3070, %v3072
  %v3111 = vsel %vm3085, %v3074, %v3076
  %v3112 = vsel %vm3085, %v3078, %v3080
  %v3113 = vsel %vm3085, %v3082, %v3084
  %v3170 = vmax.f32 %v2861, %v3086
  %v3171 = vmax.f32 %v2862, %v2976
  %v3172 = vmax.f32 %v2863, %v3087
  %v3173 = vmax.f32 %v2864, %v2980
  %v3174 = vmax.f32 %v2865, %v3088
  %v3175 = vmax.f32 %v2866, %v2984
  %v3176 = vmax.f32 %v2867, %v3089
  %v3177 = vmax.f32 %v2868, %v2988
  %v3178 = vmax.f32 %v2869, %v3090
  %v3179 = vmax.f32 %v2870, %v2992
  %v3180 = vmax.f32 %v2871, %v3091
  %v3181 = vmax.f32 %v2872, %v2996
  %v3182 = vmax.f32 %v2873, %v3092
  %v3183 = vmax.f32 %v2874, %v3000
  %v3184 = vmax.f32 %v2875, %v3093
  %v3185 = vmax.f32 %v2876, %v3004
  %v3186 = vmax.f32 %v2877, %v3094
  %v3187 = vmax.f32 %v2878, %v3008
  %v3188 = vmax.f32 %v2879, %v3095
  %v3189 = vmax.f32 %v2880, %v3012
  %v3190 = vmax.f32 %v2881, %v3096
  %v3191 = vmax.f32 %v2882, %v3016
  %v3192 = vmax.f32 %v2883, %v3097
  %v3193 = vmax.f32 %v2884, %v3020
  %v3194 = vmax.f32 %v2885, %v3098
  %v3195 = vmax.f32 %v2886, %v3024
  %v3196 = vmax.f32 %v2887, %v3099
  %v3197 = vmax.f32 %v2888, %v3028
  %v3198 = vmax.f32 %v2889, %v3100
  %v3199 = vmax.f32 %v2890, %v3032
  %v3200 = vmax.f32 %v2891, %v3101
  %v3201 = vmax.f32 %v2892, %v3036
  %v3202 = vmax.f32 %v2893, %v3102
  %v3203 = vmax.f32 %v2894, %v3040
  %v3204 = vmax.f32 %v2895, %v3103
  %v3205 = vmax.f32 %v2896, %v3044
  %v3206 = vmax.f32 %v2897, %v3104
  %v3207 = vmax.f32 %v2898, %v3048
  %v3208 = vmax.f32 %v2899, %v3105
  %v3209 = vmax.f32 %v2900, %v3052
  %v3210 = vmax.f32 %v2901, %v3106
  %v3211 = vmax.f32 %v2902, %v3056
  %v3212 = vmax.f32 %v2903, %v3107
  %v3213 = vmax.f32 %v2904, %v3060
  %v3214 = vmax.f32 %v2905, %v3108
  %v3215 = vmax.f32 %v2906, %v3064
  %v3216 = vmax.f32 %v2907, %v3109
  %v3217 = vmax.f32 %v2908, %v3068
  %v3218 = vmax.f32 %v2909, %v3110
  %v3219 = vmax.f32 %v2910, %v3072
  %v3220 = vmax.f32 %v2911, %v3111
  %v3221 = vmax.f32 %v2912, %v3076
  %v3222 = vmax.f32 %v2913, %v3112
  %v3223 = vmax.f32 %v2914, %v3080
  %v3224 = vmax.f32 %v2915, %v3113
  %v3225 = vmax.f32 %v2916, %v3084
  %v3226 = vpack.c.bf16 %v3172, %v3170
  %v3227 = vpack.c.bf16 %v3173, %v3171
  %v3228 = vpack.c.bf16 %v3176, %v3174
  %v3229 = vpack.c.bf16 %v3177, %v3175
  %v3230 = vpack.c.bf16 %v3180, %v3178
  %v3231 = vpack.c.bf16 %v3181, %v3179
  %v3232 = vpack.c.bf16 %v3184, %v3182
  %v3233 = vpack.c.bf16 %v3185, %v3183
  %v3234 = vpack.c.bf16 %v3188, %v3186
  %v3235 = vpack.c.bf16 %v3189, %v3187
  %v3236 = vpack.c.bf16 %v3192, %v3190
  %v3237 = vpack.c.bf16 %v3193, %v3191
  %v3238 = vpack.c.bf16 %v3196, %v3194
  %v3239 = vpack.c.bf16 %v3197, %v3195
  %v3240 = vpack.c.bf16 %v3200, %v3198
  %v3241 = vpack.c.bf16 %v3201, %v3199
  %v3242 = vpack.c.bf16 %v3204, %v3202
  %v3243 = vpack.c.bf16 %v3205, %v3203
  %v3244 = vpack.c.bf16 %v3208, %v3206
  %v3245 = vpack.c.bf16 %v3209, %v3207
  %v3246 = vpack.c.bf16 %v3212, %v3210
  %v3247 = vpack.c.bf16 %v3213, %v3211
  %v3248 = vpack.c.bf16 %v3216, %v3214
  %v3249 = vpack.c.bf16 %v3217, %v3215
  %v3250 = vpack.c.bf16 %v3220, %v3218
  %v3251 = vpack.c.bf16 %v3221, %v3219
  %v3252 = vpack.c.bf16 %v3224, %v3222
  %v3253 = vpack.c.bf16 %v3225, %v3223
  %v3254 = vld [vmem:[%s3] sm:$0xff]
  %v3255 = vld [vmem:[%s3 + $0x8] sm:$0xff]
  %v3256 = vld [vmem:[%s3 + $0x10] sm:$0xff]
  %v3257 = vld [vmem:[%s3 + $0x18] sm:$0xff]
  %v3258 = vld [vmem:[%s3 + $0x20] sm:$0xff]
  %v3259 = vld [vmem:[%s3 + $0x28] sm:$0xff]
  %v3260 = vld [vmem:[%s3 + $0x30] sm:$0xff]
  %v3261 = vld [vmem:[%s3 + $0x38] sm:$0xff]
  %v3262 = vld [vmem:[%s3 + $0x40] sm:$0xff]
  %v3263 = vld [vmem:[%s3 + $0x48] sm:$0xff]
  %v3264 = vld [vmem:[%s3 + $0x50] sm:$0xff]
  %v3265 = vld [vmem:[%s3 + $0x58] sm:$0xff]
  %v3266 = vld [vmem:[%s3 + $0x60] sm:$0xff]
  %v3267 = vld [vmem:[%s3 + $0x68] sm:$0xff]
  %v3268 = vld [vmem:[%s3 + $0x70] sm:$0xff]
  %v3269 = vld [vmem:[%s3 + $0x78] sm:$0xff]
  %v3270 = vld [vmem:[%s3 + $0x80] sm:$0xff]
  %v3271 = vld [vmem:[%s3 + $0x88] sm:$0xff]
  %v3272 = vld [vmem:[%s3 + $0x90] sm:$0xff]
  %v3273 = vld [vmem:[%s3 + $0x98] sm:$0xff]
  %v3274 = vld [vmem:[%s3 + $0xa0] sm:$0x11]
  %s3275 = scalar_lea.vmem %s3, 168
  %v3276 = vld [vmem:[%s3275] sm:$0xff]
  %v3277 = vld [vmem:[%s3275 + $0x8] sm:$0xff]
  %v3278 = vld [vmem:[%s3275 + $0x10] sm:$0xff]
  %v3279 = vld [vmem:[%s3275 + $0x18] sm:$0xff]
  %v3280 = vld [vmem:[%s3275 + $0x20] sm:$0xff]
  %v3281 = vld [vmem:[%s3275 + $0x28] sm:$0xff]
  %v3282 = vld [vmem:[%s3275 + $0x30] sm:$0xff]
  %v3283 = vld [vmem:[%s3275 + $0x38] sm:$0xff]
  %v3284 = vld [vmem:[%s3275 + $0x40] sm:$0xff]
  %v3285 = vld [vmem:[%s3275 + $0x48] sm:$0xff]
  %v3286 = vld [vmem:[%s3275 + $0x50] sm:$0xff]
  %v3287 = vld [vmem:[%s3275 + $0x58] sm:$0xff]
  %v3288 = vld [vmem:[%s3275 + $0x60] sm:$0xff]
  %v3289 = vld [vmem:[%s3275 + $0x68] sm:$0xff]
  %v3290 = vld [vmem:[%s3275 + $0x70] sm:$0xff]
  %v3291 = vld [vmem:[%s3275 + $0x78] sm:$0xff]
  %v3292 = vld [vmem:[%s3275 + $0x80] sm:$0xff]
  %v3293 = vld [vmem:[%s3275 + $0x88] sm:$0xff]
  %v3294 = vld [vmem:[%s3275 + $0x90] sm:$0xff]
  %v3295 = vld [vmem:[%s3275 + $0x98] sm:$0xff]
  %v3296 = vld [vmem:[%s3275 + $0xa0] sm:$0x11]
  %v3318 = vunpack.c.l.b16 %v3276
  %v3319 = vunpack.c.h.b16 %v3276
  %v3320 = vunpack.c.l.b16 %v3277
  %v3321 = vunpack.c.h.b16 %v3277
  %v3322 = vunpack.c.l.b16 %v3278
  %v3323 = vunpack.c.h.b16 %v3278
  %v3324 = vunpack.c.l.b16 %v3279
  %v3325 = vunpack.c.h.b16 %v3279
  %v3326 = vunpack.c.l.b16 %v3280
  %v3327 = vunpack.c.h.b16 %v3280
  %v3328 = vunpack.c.l.b16 %v3281
  %v3329 = vunpack.c.h.b16 %v3281
  %v3330 = vunpack.c.l.b16 %v3282
  %v3331 = vunpack.c.h.b16 %v3282
  %v3332 = vunpack.c.l.b16 %v3283
  %v3333 = vunpack.c.h.b16 %v3283
  %v3334 = vunpack.c.l.b16 %v3284
  %v3335 = vunpack.c.h.b16 %v3284
  %v3336 = vunpack.c.l.b16 %v3285
  %v3337 = vunpack.c.h.b16 %v3285
  %v3338 = vunpack.c.l.b16 %v3286
  %v3339 = vunpack.c.h.b16 %v3286
  %v3340 = vunpack.c.l.b16 %v3287
  %v3341 = vunpack.c.h.b16 %v3287
  %v3342 = vunpack.c.l.b16 %v3288
  %v3343 = vunpack.c.h.b16 %v3288
  %v3344 = vunpack.c.l.b16 %v3289
  %v3345 = vunpack.c.h.b16 %v3289
  %v3346 = vunpack.c.l.b16 %v3290
  %v3347 = vunpack.c.h.b16 %v3290
  %v3348 = vunpack.c.l.b16 %v3291
  %v3349 = vunpack.c.h.b16 %v3291
  %v3350 = vunpack.c.l.b16 %v3292
  %v3351 = vunpack.c.h.b16 %v3292
  %v3352 = vunpack.c.l.b16 %v3293
  %v3353 = vunpack.c.h.b16 %v3293
  %v3354 = vunpack.c.l.b16 %v3294
  %v3355 = vunpack.c.h.b16 %v3294
  %v3356 = vunpack.c.l.b16 %v3295
  %v3357 = vunpack.c.h.b16 %v3295
  %v3358 = vunpack.c.l.b16 %v3296
  %v3359 = vunpack.c.h.b16 %v3296
  %v3360 = vpack.c.b16 %v3320, %v3318
  %v3361 = vpack.c.b16 %v3321, %v3319
  %v3362 = vpack.c.b16 %v3324, %v3322
  %v3363 = vpack.c.b16 %v3325, %v3323
  %v3364 = vpack.c.b16 %v3328, %v3326
  %v3365 = vpack.c.b16 %v3329, %v3327
  %v3366 = vpack.c.b16 %v3332, %v3330
  %v3367 = vpack.c.b16 %v3333, %v3331
  %v3368 = vpack.c.b16 %v3336, %v3334
  %v3369 = vpack.c.b16 %v3337, %v3335
  %v3370 = vpack.c.b16 %v3340, %v3338
  %v3371 = vpack.c.b16 %v3341, %v3339
  %v3372 = vpack.c.b16 %v3344, %v3342
  %v3373 = vpack.c.b16 %v3345, %v3343
  %v3374 = vpack.c.b16 %v3348, %v3346
  %v3375 = vpack.c.b16 %v3349, %v3347
  %v3376 = vpack.c.b16 %v3352, %v3350
  %v3377 = vpack.c.b16 %v3353, %v3351
  %v3378 = vpack.c.b16 %v3356, %v3354
  %v3379 = vpack.c.b16 %v3357, %v3355
  %v3380 = vpack.c.b16 %v3358, %v3358
  %v3381 = vpack.c.b16 %v3359, %v3359
  %vm3402 = vcmask 277504
  %v3404 = vsel %vm3402, %v3229, 0
  %v3407 = vsel %vm3402, %v3231, 0
  %v3410 = vsel %vm3402, %v3233, 0
  %v3413 = vsel %vm3402, %v3235, 0
  %v3416 = vsel %vm3402, %v3237, 0
  %v3419 = vsel %vm3402, %v3239, 0
  %v3422 = vsel %vm3402, %v3241, 0
  %v3425 = vsel %vm3402, %v3243, 0
  %v3428 = vsel %vm3402, %v3245, 0
  %v3431 = vsel %vm3402, %v3247, 0
  %vm3433 = vcmask 1040384
  %v3435 = vsel %vm3433, %v3380, 0
  %v3438 = vsel %vm3433, %v3381, 0
  %3440 = vmatprep.subr.bf16.mxu0 %v3375
  %3441 = vmatpush1.bf16.msra.mxu0 %v3374
  %3442 = vmatprep.subr.bf16.mxu0 %v3373
  %3443 = vmatpush1.bf16.msra.mxu0 %v3372
  %3444 = vmatprep.subr.bf16.mxu0 %v3371
  %3445 = vmatpush1.bf16.msra.mxu0 %v3370
  %3446 = vmatprep.subr.bf16.mxu0 %v3369
  %3447 = vmatpush1.bf16.msra.mxu0 %v3368
  %3448 = vmatprep.subr.bf16.mxu0 %v3367
  %3449 = vmatpush1.bf16.msra.mxu0 %v3366
  %3450 = vmatprep.subr.bf16.mxu0 %v3365
  %3451 = vmatpush1.bf16.msra.mxu0 %v3364
  %3452 = vmatprep.subr.bf16.mxu0 %v3363
  %3453 = vmatpush1.bf16.msra.mxu0 %v3362
  %3454 = vmatprep.subr.bf16.mxu0 %v3361
  %3455 = vmatpush1.bf16.msra.mxu0 %v3360
  %3456 = vmatprep.subr.bf16.mxu0 0
  %3457 = vmatpush2.bf16.msra.mxu0 0
  %3458 = vmatprep.subr.bf16.mxu0 0
  %3459 = vmatpush2.bf16.msra.mxu0 0
  %3460 = vmatprep.subr.bf16.mxu0 0
  %3461 = vmatpush2.bf16.msra.mxu0 0
  %3462 = vmatprep.subr.bf16.mxu0 0
  %3463 = vmatpush2.bf16.msra.mxu0 0
  %3464 = vmatprep.subr.bf16.mxu0 0
  %3465 = vmatpush2.bf16.msra.mxu0 0
  %3466 = vmatprep.subr.bf16.mxu0 %v3438
  %3467 = vmatpush2.bf16.msra.mxu0 %v3435
  %3468 = vmatprep.subr.bf16.mxu0 %v3379
  %3469 = vmatpush2.bf16.msra.mxu0 %v3378
  %3470 = vmatprep.subr.bf16.mxu0 %v3377
  %3471 = vmatpush2.bf16.msra.mxu0 %v3376
  %3472 = vmatprep.mubr.bf16.mxu0 %v3404
  %3473 = vmatmul.mubr.bf16.gmra.mxu0 %v3228
  %v3474 = vpop.f32.mrf.mxu0
  %v3475 = vadd.f32 0.0, %v3474
  %v3476 = vpop.f32.mrf.mxu0
  %v3477 = vadd.f32 0.0, %v3476
  %v3478 = vpop.f32.mrf.mxu0
  %v3479 = vadd.f32 0.0, %v3478
  %v3480 = vpop.f32.mrf.mxu0
  %v3481 = vadd.f32 0.0, %v3480
  %3482 = vmatprep.mubr.bf16.mxu0 %v3407
  %3483 = vmatmul.mubr.bf16.gmra.mxu0 %v3230
  %v3484 = vpop.f32.mrf.mxu0
  %v3485 = vadd.f32 0.0, %v3484
  %v3486 = vpop.f32.mrf.mxu0
  %v3487 = vadd.f32 0.0, %v3486
  %v3488 = vpop.f32.mrf.mxu0
  %v3489 = vadd.f32 0.0, %v3488
  %v3490 = vpop.f32.mrf.mxu0
  %v3491 = vadd.f32 0.0, %v3490
  %3492 = vmatprep.mubr.bf16.mxu0 %v3410
  %3493 = vmatmul.mubr.bf16.gmra.mxu0 %v3232
  %v3494 = vpop.f32.mrf.mxu0
  %v3495 = vadd.f32 0.0, %v3494
  %v3496 = vpop.f32.mrf.mxu0
  %v3497 = vadd.f32 0.0, %v3496
  %v3498 = vpop.f32.mrf.mxu0
  %v3499 = vadd.f32 0.0, %v3498
  %v3500 = vpop.f32.mrf.mxu0
  %v3501 = vadd.f32 0.0, %v3500
  %3502 = vmatprep.mubr.bf16.mxu0 %v3413
  %3503 = vmatmul.mubr.bf16.gmra.mxu0 %v3234
  %v3504 = vpop.f32.mrf.mxu0
  %v3505 = vadd.f32 0.0, %v3504
  %v3506 = vpop.f32.mrf.mxu0
  %v3507 = vadd.f32 0.0, %v3506
  %v3508 = vpop.f32.mrf.mxu0
  %v3509 = vadd.f32 0.0, %v3508
  %v3510 = vpop.f32.mrf.mxu0
  %v3511 = vadd.f32 0.0, %v3510
  %3512 = vmatprep.mubr.bf16.mxu0 %v3416
  %3513 = vmatmul.mubr.bf16.gmra.mxu0 %v3236
  %v3514 = vpop.f32.mrf.mxu0
  %v3515 = vadd.f32 0.0, %v3514
  %v3516 = vpop.f32.mrf.mxu0
  %v3517 = vadd.f32 0.0, %v3516
  %v3518 = vpop.f32.mrf.mxu0
  %v3519 = vadd.f32 0.0, %v3518
  %v3520 = vpop.f32.mrf.mxu0
  %v3521 = vadd.f32 0.0, %v3520
  %3522 = vmatprep.mubr.bf16.mxu0 %v3419
  %3523 = vmatmul.mubr.bf16.gmra.mxu0 %v3238
  %v3524 = vpop.f32.mrf.mxu0
  %v3525 = vadd.f32 0.0, %v3524
  %v3526 = vpop.f32.mrf.mxu0
  %v3527 = vadd.f32 0.0, %v3526
  %v3528 = vpop.f32.mrf.mxu0
  %v3529 = vadd.f32 0.0, %v3528
  %v3530 = vpop.f32.mrf.mxu0
  %v3531 = vadd.f32 0.0, %v3530
  %3532 = vmatprep.mubr.bf16.mxu0 %v3422
  %3533 = vmatmul.mubr.bf16.gmra.mxu0 %v3240
  %v3534 = vpop.f32.mrf.mxu0
  %v3535 = vadd.f32 0.0, %v3534
  %v3536 = vpop.f32.mrf.mxu0
  %v3537 = vadd.f32 0.0, %v3536
  %v3538 = vpop.f32.mrf.mxu0
  %v3539 = vadd.f32 0.0, %v3538
  %v3540 = vpop.f32.mrf.mxu0
  %v3541 = vadd.f32 0.0, %v3540
  %3542 = vmatprep.mubr.bf16.mxu0 %v3425
  %3543 = vmatmul.mubr.bf16.gmra.mxu0 %v3242
  %v3544 = vpop.f32.mrf.mxu0
  %v3545 = vadd.f32 0.0, %v3544
  %v3546 = vpop.f32.mrf.mxu0
  %v3547 = vadd.f32 0.0, %v3546
  %v3548 = vpop.f32.mrf.mxu0
  %v3549 = vadd.f32 0.0, %v3548
  %v3550 = vpop.f32.mrf.mxu0
  %v3551 = vadd.f32 0.0, %v3550
  %3552 = vmatprep.mubr.bf16.mxu0 %v3428
  %3553 = vmatmul.mubr.bf16.gmra.mxu0 %v3244
  %v3554 = vpop.f32.mrf.mxu0
  %v3555 = vadd.f32 0.0, %v3554
  %v3556 = vpop.f32.mrf.mxu0
  %v3557 = vadd.f32 0.0, %v3556
  %v3558 = vpop.f32.mrf.mxu0
  %v3559 = vadd.f32 0.0, %v3558
  %v3560 = vpop.f32.mrf.mxu0
  %v3561 = vadd.f32 0.0, %v3560
  %3562 = vmatprep.mubr.bf16.mxu0 %v3431
  %3563 = vmatmul.mubr.bf16.gmra.mxu0 %v3246
  %v3564 = vpop.f32.mrf.mxu0
  %v3565 = vadd.f32 0.0, %v3564
  %v3566 = vpop.f32.mrf.mxu0
  %v3567 = vadd.f32 0.0, %v3566
  %v3568 = vpop.f32.mrf.mxu0
  %v3569 = vadd.f32 0.0, %v3568
  %v3570 = vpop.f32.mrf.mxu0
  %v3571 = vadd.f32 0.0, %v3570
  %3572 = vdwg.mxu0
  %v3594 = vunpack.c.l.b16 %v3254
  %v3595 = vunpack.c.h.b16 %v3254
  %v3596 = vunpack.c.l.b16 %v3255
  %v3597 = vunpack.c.h.b16 %v3255
  %v3598 = vunpack.c.l.b16 %v3256
  %v3599 = vunpack.c.h.b16 %v3256
  %v3600 = vunpack.c.l.b16 %v3257
  %v3601 = vunpack.c.h.b16 %v3257
  %v3602 = vunpack.c.l.b16 %v3258
  %v3603 = vunpack.c.h.b16 %v3258
  %v3604 = vunpack.c.l.b16 %v3259
  %v3605 = vunpack.c.h.b16 %v3259
  %v3606 = vunpack.c.l.b16 %v3260
  %v3607 = vunpack.c.h.b16 %v3260
  %v3608 = vunpack.c.l.b16 %v3261
  %v3609 = vunpack.c.h.b16 %v3261
  %v3610 = vunpack.c.l.b16 %v3262
  %v3611 = vunpack.c.h.b16 %v3262
  %v3612 = vunpack.c.l.b16 %v3263
  %v3613 = vunpack.c.h.b16 %v3263
  %v3614 = vunpack.c.l.b16 %v3264
  %v3615 = vunpack.c.h.b16 %v3264
  %v3616 = vunpack.c.l.b16 %v3265
  %v3617 = vunpack.c.h.b16 %v3265
  %v3618 = vunpack.c.l.b16 %v3266
  %v3619 = vunpack.c.h.b16 %v3266
  %v3620 = vunpack.c.l.b16 %v3267
  %v3621 = vunpack.c.h.b16 %v3267
  %v3622 = vunpack.c.l.b16 %v3268
  %v3623 = vunpack.c.h.b16 %v3268
  %v3624 = vunpack.c.l.b16 %v3269
  %v3625 = vunpack.c.h.b16 %v3269
  %v3626 = vunpack.c.l.b16 %v3270
  %v3627 = vunpack.c.h.b16 %v3270
  %v3628 = vunpack.c.l.b16 %v3271
  %v3629 = vunpack.c.h.b16 %v3271
  %v3630 = vunpack.c.l.b16 %v3272
  %v3631 = vunpack.c.h.b16 %v3272
  %v3632 = vunpack.c.l.b16 %v3273
  %v3633 = vunpack.c.h.b16 %v3273
  %v3634 = vunpack.c.l.b16 %v3274
  %v3635 = vunpack.c.h.b16 %v3274
  %v3636 = vpack.c.b16 %v3596, %v3594
  %v3637 = vpack.c.b16 %v3597, %v3595
  %v3638 = vpack.c.b16 %v3600, %v3598
  %v3639 = vpack.c.b16 %v3601, %v3599
  %v3640 = vpack.c.b16 %v3604, %v3602
  %v3641 = vpack.c.b16 %v3605, %v3603
  %v3642 = vpack.c.b16 %v3608, %v3606
  %v3643 = vpack.c.b16 %v3609, %v3607
  %v3644 = vpack.c.b16 %v3612, %v3610
  %v3645 = vpack.c.b16 %v3613, %v3611
  %v3646 = vpack.c.b16 %v3616, %v3614
  %v3647 = vpack.c.b16 %v3617, %v3615
  %v3648 = vpack.c.b16 %v3620, %v3618
  %v3649 = vpack.c.b16 %v3621, %v3619
  %v3650 = vpack.c.b16 %v3624, %v3622
  %v3651 = vpack.c.b16 %v3625, %v3623
  %v3652 = vpack.c.b16 %v3628, %v3626
  %v3653 = vpack.c.b16 %v3629, %v3627
  %v3654 = vpack.c.b16 %v3632, %v3630
  %v3655 = vpack.c.b16 %v3633, %v3631
  %v3656 = vpack.c.b16 %v3634, %v3634
  %v3657 = vpack.c.b16 %v3635, %v3635
  %v3679 = vsel %vm3402, %v3227, 0
  %v3682 = vsel %vm3433, %v3656, 0
  %v3685 = vsel %vm3433, %v3657, 0
  %3687 = vmatprep.subr.bf16.mxu0 %v3651
  %3688 = vmatpush1.bf16.msra.mxu0 %v3650
  %3689 = vmatprep.subr.bf16.mxu0 %v3649
  %3690 = vmatpush1.bf16.msra.mxu0 %v3648
  %3691 = vmatprep.subr.bf16.mxu0 %v3647
  %3692 = vmatpush1.bf16.msra.mxu0 %v3646
  %3693 = vmatprep.subr.bf16.mxu0 %v3645
  %3694 = vmatpush1.bf16.msra.mxu0 %v3644
  %3695 = vmatprep.subr.bf16.mxu0 %v3643
  %3696 = vmatpush1.bf16.msra.mxu0 %v3642
  %3697 = vmatprep.subr.bf16.mxu0 %v3641
  %3698 = vmatpush1.bf16.msra.mxu0 %v3640
  %3699 = vmatprep.subr.bf16.mxu0 %v3639
  %3700 = vmatpush1.bf16.msra.mxu0 %v3638
  %3701 = vmatprep.subr.bf16.mxu0 %v3637
  %3702 = vmatpush1.bf16.msra.mxu0 %v3636
  %3703 = vmatprep.subr.bf16.mxu0 0
  %3704 = vmatpush2.bf16.msra.mxu0 0
  %3705 = vmatprep.subr.bf16.mxu0 0
  %3706 = vmatpush2.bf16.msra.mxu0 0
  %3707 = vmatprep.subr.bf16.mxu0 0
  %3708 = vmatpush2.bf16.msra.mxu0 0
  %3709 = vmatprep.subr.bf16.mxu0 0
  %3710 = vmatpush2.bf16.msra.mxu0 0
  %3711 = vmatprep.subr.bf16.mxu0 0
  %3712 = vmatpush2.bf16.msra.mxu0 0
  %3713 = vmatprep.subr.bf16.mxu0 %v3685
  %3714 = vmatpush2.bf16.msra.mxu0 %v3682
  %3715 = vmatprep.subr.bf16.mxu0 %v3655
  %3716 = vmatpush2.bf16.msra.mxu0 %v3654
  %3717 = vmatprep.subr.bf16.mxu0 %v3653
  %3718 = vmatpush2.bf16.msra.mxu0 %v3652
  %3719 = vmatprep.mubr.bf16.mxu0 %v3679
  %3720 = vmatmul.mubr.bf16.gmra.mxu0 %v3226
  %v3721 = vpop.f32.mrf.mxu0
  %v3722 = vadd.f32 %v3475, %v3721
  %v3723 = vpop.f32.mrf.mxu0
  %v3724 = vadd.f32 %v3477, %v3723
  %v3725 = vpop.f32.mrf.mxu0
  %v3726 = vadd.f32 %v3479, %v3725
  %v3727 = vpop.f32.mrf.mxu0
  %v3728 = vadd.f32 %v3481, %v3727
  %3729 = vmatprep.mubr.bf16.mxu0 %v3404
  %3730 = vmatmul.mubr.bf16.gmra.mxu0 %v3228
  %v3731 = vpop.f32.mrf.mxu0
  %v3732 = vadd.f32 %v3485, %v3731
  %v3733 = vpop.f32.mrf.mxu0
  %v3734 = vadd.f32 %v3487, %v3733
  %v3735 = vpop.f32.mrf.mxu0
  %v3736 = vadd.f32 %v3489, %v3735
  %v3737 = vpop.f32.mrf.mxu0
  %v3738 = vadd.f32 %v3491, %v3737
  %3739 = vmatprep.mubr.bf16.mxu0 %v3407
  %3740 = vmatmul.mubr.bf16.gmra.mxu0 %v3230
  %v3741 = vpop.f32.mrf.mxu0
  %v3742 = vadd.f32 %v3495, %v3741
  %v3743 = vpop.f32.mrf.mxu0
  %v3744 = vadd.f32 %v3497, %v3743
  %v3745 = vpop.f32.mrf.mxu0
  %v3746 = vadd.f32 %v3499, %v3745
  %v3747 = vpop.f32.mrf.mxu0
  %v3748 = vadd.f32 %v3501, %v3747
  %3749 = vmatprep.mubr.bf16.mxu0 %v3410
  %3750 = vmatmul.mubr.bf16.gmra.mxu0 %v3232
  %v3751 = vpop.f32.mrf.mxu0
  %v3752 = vadd.f32 %v3505, %v3751
  %v3753 = vpop.f32.mrf.mxu0
  %v3754 = vadd.f32 %v3507, %v3753
  %v3755 = vpop.f32.mrf.mxu0
  %v3756 = vadd.f32 %v3509, %v3755
  %v3757 = vpop.f32.mrf.mxu0
  %v3758 = vadd.f32 %v3511, %v3757
  %3759 = vmatprep.mubr.bf16.mxu0 %v3413
  %3760 = vmatmul.mubr.bf16.gmra.mxu0 %v3234
  %v3761 = vpop.f32.mrf.mxu0
  %v3762 = vadd.f32 %v3515, %v3761
  %v3763 = vpop.f32.mrf.mxu0
  %v3764 = vadd.f32 %v3517, %v3763
  %v3765 = vpop.f32.mrf.mxu0
  %v3766 = vadd.f32 %v3519, %v3765
  %v3767 = vpop.f32.mrf.mxu0
  %v3768 = vadd.f32 %v3521, %v3767
  %3769 = vmatprep.mubr.bf16.mxu0 %v3416
  %3770 = vmatmul.mubr.bf16.gmra.mxu0 %v3236
  %v3771 = vpop.f32.mrf.mxu0
  %v3772 = vadd.f32 %v3525, %v3771
  %v3773 = vpop.f32.mrf.mxu0
  %v3774 = vadd.f32 %v3527, %v3773
  %v3775 = vpop.f32.mrf.mxu0
  %v3776 = vadd.f32 %v3529, %v3775
  %v3777 = vpop.f32.mrf.mxu0
  %v3778 = vadd.f32 %v3531, %v3777
  %3779 = vmatprep.mubr.bf16.mxu0 %v3419
  %3780 = vmatmul.mubr.bf16.gmra.mxu0 %v3238
  %v3781 = vpop.f32.mrf.mxu0
  %v3782 = vadd.f32 %v3535, %v3781
  %v3783 = vpop.f32.mrf.mxu0
  %v3784 = vadd.f32 %v3537, %v3783
  %v3785 = vpop.f32.mrf.mxu0
  %v3786 = vadd.f32 %v3539, %v3785
  %v3787 = vpop.f32.mrf.mxu0
  %v3788 = vadd.f32 %v3541, %v3787
  %3789 = vmatprep.mubr.bf16.mxu0 %v3422
  %3790 = vmatmul.mubr.bf16.gmra.mxu0 %v3240
  %v3791 = vpop.f32.mrf.mxu0
  %v3792 = vadd.f32 %v3545, %v3791
  %v3793 = vpop.f32.mrf.mxu0
  %v3794 = vadd.f32 %v3547, %v3793
  %v3795 = vpop.f32.mrf.mxu0
  %v3796 = vadd.f32 %v3549, %v3795
  %v3797 = vpop.f32.mrf.mxu0
  %v3798 = vadd.f32 %v3551, %v3797
  %3799 = vmatprep.mubr.bf16.mxu0 %v3425
  %3800 = vmatmul.mubr.bf16.gmra.mxu0 %v3242
  %v3801 = vpop.f32.mrf.mxu0
  %v3802 = vadd.f32 %v3555, %v3801
  %v3803 = vpop.f32.mrf.mxu0
  %v3804 = vadd.f32 %v3557, %v3803
  %v3805 = vpop.f32.mrf.mxu0
  %v3806 = vadd.f32 %v3559, %v3805
  %v3807 = vpop.f32.mrf.mxu0
  %v3808 = vadd.f32 %v3561, %v3807
  %3809 = vmatprep.mubr.bf16.mxu0 %v3428
  %3810 = vmatmul.mubr.bf16.gmra.mxu0 %v3244
  %v3811 = vpop.f32.mrf.mxu0
  %v3812 = vadd.f32 %v3565, %v3811
  %v3813 = vpop.f32.mrf.mxu0
  %v3814 = vadd.f32 %v3567, %v3813
  %v3815 = vpop.f32.mrf.mxu0
  %v3816 = vadd.f32 %v3569, %v3815
  %v3817 = vpop.f32.mrf.mxu0
  %v3818 = vadd.f32 %v3571, %v3817
  %3819 = vdwg.mxu0
  %s3820 = scalar_lea.vmem %s3, 336
  %v3821 = vld [vmem:[%s3820] sm:$0xff]
  %v3822 = vld [vmem:[%s3820 + $0x8] sm:$0xff]
  %v3823 = vld [vmem:[%s3820 + $0x10] sm:$0xff]
  %v3824 = vld [vmem:[%s3820 + $0x18] sm:$0xff]
  %v3825 = vld [vmem:[%s3820 + $0x20] sm:$0xff]
  %v3826 = vld [vmem:[%s3820 + $0x28] sm:$0xff]
  %v3827 = vld [vmem:[%s3820 + $0x30] sm:$0xff]
  %v3828 = vld [vmem:[%s3820 + $0x38] sm:$0xff]
  %v3829 = vld [vmem:[%s3820 + $0x40] sm:$0xff]
  %v3830 = vld [vmem:[%s3820 + $0x48] sm:$0xff]
  %v3831 = vld [vmem:[%s3820 + $0x50] sm:$0xff]
  %v3832 = vld [vmem:[%s3820 + $0x58] sm:$0xff]
  %v3833 = vld [vmem:[%s3820 + $0x60] sm:$0xff]
  %v3834 = vld [vmem:[%s3820 + $0x68] sm:$0xff]
  %v3835 = vld [vmem:[%s3820 + $0x70] sm:$0xff]
  %v3836 = vld [vmem:[%s3820 + $0x78] sm:$0xff]
  %v3837 = vld [vmem:[%s3820 + $0x80] sm:$0xff]
  %v3838 = vld [vmem:[%s3820 + $0x88] sm:$0xff]
  %v3839 = vld [vmem:[%s3820 + $0x90] sm:$0xff]
  %v3840 = vld [vmem:[%s3820 + $0x98] sm:$0xff]
  %v3841 = vld [vmem:[%s3820 + $0xa0] sm:$0x11]
  %v3863 = vunpack.c.l.b16 %v3821
  %v3864 = vunpack.c.h.b16 %v3821
  %v3865 = vunpack.c.l.b16 %v3822
  %v3866 = vunpack.c.h.b16 %v3822
  %v3867 = vunpack.c.l.b16 %v3823
  %v3868 = vunpack.c.h.b16 %v3823
  %v3869 = vunpack.c.l.b16 %v3824
  %v3870 = vunpack.c.h.b16 %v3824
  %v3871 = vunpack.c.l.b16 %v3825
  %v3872 = vunpack.c.h.b16 %v3825
  %v3873 = vunpack.c.l.b16 %v3826
  %v3874 = vunpack.c.h.b16 %v3826
  %v3875 = vunpack.c.l.b16 %v3827
  %v3876 = vunpack.c.h.b16 %v3827
  %v3877 = vunpack.c.l.b16 %v3828
  %v3878 = vunpack.c.h.b16 %v3828
  %v3879 = vunpack.c.l.b16 %v3829
  %v3880 = vunpack.c.h.b16 %v3829
  %v3881 = vunpack.c.l.b16 %v3830
  %v3882 = vunpack.c.h.b16 %v3830
  %v3883 = vunpack.c.l.b16 %v3831
  %v3884 = vunpack.c.h.b16 %v3831
  %v3885 = vunpack.c.l.b16 %v3832
  %v3886 = vunpack.c.h.b16 %v3832
  %v3887 = vunpack.c.l.b16 %v3833
  %v3888 = vunpack.c.h.b16 %v3833
  %v3889 = vunpack.c.l.b16 %v3834
  %v3890 = vunpack.c.h.b16 %v3834
  %v3891 = vunpack.c.l.b16 %v3835
  %v3892 = vunpack.c.h.b16 %v3835
  %v3893 = vunpack.c.l.b16 %v3836
  %v3894 = vunpack.c.h.b16 %v3836
  %v3895 = vunpack.c.l.b16 %v3837
  %v3896 = vunpack.c.h.b16 %v3837
  %v3897 = vunpack.c.l.b16 %v3838
  %v3898 = vunpack.c.h.b16 %v3838
  %v3899 = vunpack.c.l.b16 %v3839
  %v3900 = vunpack.c.h.b16 %v3839
  %v3901 = vunpack.c.l.b16 %v3840
  %v3902 = vunpack.c.h.b16 %v3840
  %v3903 = vunpack.c.l.b16 %v3841
  %v3904 = vunpack.c.h.b16 %v3841
  %v3905 = vpack.c.b16 %v3865, %v3863
  %v3906 = vpack.c.b16 %v3866, %v3864
  %v3907 = vpack.c.b16 %v3869, %v3867
  %v3908 = vpack.c.b16 %v3870, %v3868
  %v3909 = vpack.c.b16 %v3873, %v3871
  %v3910 = vpack.c.b16 %v3874, %v3872
  %v3911 = vpack.c.b16 %v3877, %v3875
  %v3912 = vpack.c.b16 %v3878, %v3876
  %v3913 = vpack.c.b16 %v3881, %v3879
  %v3914 = vpack.c.b16 %v3882, %v3880
  %v3915 = vpack.c.b16 %v3885, %v3883
  %v3916 = vpack.c.b16 %v3886, %v3884
  %v3917 = vpack.c.b16 %v3889, %v3887
  %v3918 = vpack.c.b16 %v3890, %v3888
  %v3919 = vpack.c.b16 %v3893, %v3891
  %v3920 = vpack.c.b16 %v3894, %v3892
  %v3921 = vpack.c.b16 %v3897, %v3895
  %v3922 = vpack.c.b16 %v3898, %v3896
  %v3923 = vpack.c.b16 %v3901, %v3899
  %v3924 = vpack.c.b16 %v3902, %v3900
  %v3925 = vpack.c.b16 %v3903, %v3903
  %v3926 = vpack.c.b16 %v3904, %v3904
  %v3948 = vsel %vm3402, %v3249, 0
  %v3951 = vsel %vm3433, %v3925, 0
  %v3954 = vsel %vm3433, %v3926, 0
  %3956 = vmatprep.subr.bf16.mxu0 %v3920
  %3957 = vmatpush1.bf16.msra.mxu0 %v3919
  %3958 = vmatprep.subr.bf16.mxu0 %v3918
  %3959 = vmatpush1.bf16.msra.mxu0 %v3917
  %3960 = vmatprep.subr.bf16.mxu0 %v3916
  %3961 = vmatpush1.bf16.msra.mxu0 %v3915
  %3962 = vmatprep.subr.bf16.mxu0 %v3914
  %3963 = vmatpush1.bf16.msra.mxu0 %v3913
  %3964 = vmatprep.subr.bf16.mxu0 %v3912
  %3965 = vmatpush1.bf16.msra.mxu0 %v3911
  %3966 = vmatprep.subr.bf16.mxu0 %v3910
  %3967 = vmatpush1.bf16.msra.mxu0 %v3909
  %3968 = vmatprep.subr.bf16.mxu0 %v3908
  %3969 = vmatpush1.bf16.msra.mxu0 %v3907
  %3970 = vmatprep.subr.bf16.mxu0 %v3906
  %3971 = vmatpush1.bf16.msra.mxu0 %v3905
  %3972 = vmatprep.subr.bf16.mxu0 0
  %3973 = vmatpush2.bf16.msra.mxu0 0
  %3974 = vmatprep.subr.bf16.mxu0 0
  %3975 = vmatpush2.bf16.msra.mxu0 0
  %3976 = vmatprep.subr.bf16.mxu0 0
  %3977 = vmatpush2.bf16.msra.mxu0 0
  %3978 = vmatprep.subr.bf16.mxu0 0
  %3979 = vmatpush2.bf16.msra.mxu0 0
  %3980 = vmatprep.subr.bf16.mxu0 0
  %3981 = vmatpush2.bf16.msra.mxu0 0
  %3982 = vmatprep.subr.bf16.mxu0 %v3954
  %3983 = vmatpush2.bf16.msra.mxu0 %v3951
  %3984 = vmatprep.subr.bf16.mxu0 %v3924
  %3985 = vmatpush2.bf16.msra.mxu0 %v3923
  %3986 = vmatprep.subr.bf16.mxu0 %v3922
  %3987 = vmatpush2.bf16.msra.mxu0 %v3921
  %3988 = vmatprep.mubr.bf16.mxu0 %v3407
  %3989 = vmatmul.mubr.bf16.gmra.mxu0 %v3230
  %v3990 = vpop.f32.mrf.mxu0
  %v3991 = vadd.f32 0.0, %v3990
  %v3992 = vpop.f32.mrf.mxu0
  %v3993 = vadd.f32 0.0, %v3992
  %v3994 = vpop.f32.mrf.mxu0
  %v3995 = vadd.f32 0.0, %v3994
  %v3996 = vpop.f32.mrf.mxu0
  %v3997 = vadd.f32 0.0, %v3996
  %3998 = vmatprep.mubr.bf16.mxu0 %v3410
  %3999 = vmatmul.mubr.bf16.gmra.mxu0 %v3232
  %v4000 = vpop.f32.mrf.mxu0
  %v4001 = vadd.f32 0.0, %v4000
  %v4002 = vpop.f32.mrf.mxu0
  %v4003 = vadd.f32 0.0, %v4002
  %v4004 = vpop.f32.mrf.mxu0
  %v4005 = vadd.f32 0.0, %v4004
  %v4006 = vpop.f32.mrf.mxu0
  %v4007 = vadd.f32 0.0, %v4006
  %4008 = vmatprep.mubr.bf16.mxu0 %v3413
  %4009 = vmatmul.mubr.bf16.gmra.mxu0 %v3234
  %v4010 = vpop.f32.mrf.mxu0
  %v4011 = vadd.f32 0.0, %v4010
  %v4012 = vpop.f32.mrf.mxu0
  %v4013 = vadd.f32 0.0, %v4012
  %v4014 = vpop.f32.mrf.mxu0
  %v4015 = vadd.f32 0.0, %v4014
  %v4016 = vpop.f32.mrf.mxu0
  %v4017 = vadd.f32 0.0, %v4016
  %4018 = vmatprep.mubr.bf16.mxu0 %v3416
  %4019 = vmatmul.mubr.bf16.gmra.mxu0 %v3236
  %v4020 = vpop.f32.mrf.mxu0
  %v4021 = vadd.f32 0.0, %v4020
  %v4022 = vpop.f32.mrf.mxu0
  %v4023 = vadd.f32 0.0, %v4022
  %v4024 = vpop.f32.mrf.mxu0
  %v4025 = vadd.f32 0.0, %v4024
  %v4026 = vpop.f32.mrf.mxu0
  %v4027 = vadd.f32 0.0, %v4026
  %4028 = vmatprep.mubr.bf16.mxu0 %v3419
  %4029 = vmatmul.mubr.bf16.gmra.mxu0 %v3238
  %v4030 = vpop.f32.mrf.mxu0
  %v4031 = vadd.f32 0.0, %v4030
  %v4032 = vpop.f32.mrf.mxu0
  %v4033 = vadd.f32 0.0, %v4032
  %v4034 = vpop.f32.mrf.mxu0
  %v4035 = vadd.f32 0.0, %v4034
  %v4036 = vpop.f32.mrf.mxu0
  %v4037 = vadd.f32 0.0, %v4036
  %4038 = vmatprep.mubr.bf16.mxu0 %v3422
  %4039 = vmatmul.mubr.bf16.gmra.mxu0 %v3240
  %v4040 = vpop.f32.mrf.mxu0
  %v4041 = vadd.f32 0.0, %v4040
  %v4042 = vpop.f32.mrf.mxu0
  %v4043 = vadd.f32 0.0, %v4042
  %v4044 = vpop.f32.mrf.mxu0
  %v4045 = vadd.f32 0.0, %v4044
  %v4046 = vpop.f32.mrf.mxu0
  %v4047 = vadd.f32 0.0, %v4046
  %4048 = vmatprep.mubr.bf16.mxu0 %v3425
  %4049 = vmatmul.mubr.bf16.gmra.mxu0 %v3242
  %v4050 = vpop.f32.mrf.mxu0
  %v4051 = vadd.f32 0.0, %v4050
  %v4052 = vpop.f32.mrf.mxu0
  %v4053 = vadd.f32 0.0, %v4052
  %v4054 = vpop.f32.mrf.mxu0
  %v4055 = vadd.f32 0.0, %v4054
  %v4056 = vpop.f32.mrf.mxu0
  %v4057 = vadd.f32 0.0, %v4056
  %4058 = vmatprep.mubr.bf16.mxu0 %v3428
  %4059 = vmatmul.mubr.bf16.gmra.mxu0 %v3244
  %v4060 = vpop.f32.mrf.mxu0
  %v4061 = vadd.f32 0.0, %v4060
  %v4062 = vpop.f32.mrf.mxu0
  %v4063 = vadd.f32 0.0, %v4062
  %v4064 = vpop.f32.mrf.mxu0
  %v4065 = vadd.f32 0.0, %v4064
  %v4066 = vpop.f32.mrf.mxu0
  %v4067 = vadd.f32 0.0, %v4066
  %4068 = vmatprep.mubr.bf16.mxu0 %v3431
  %4069 = vmatmul.mubr.bf16.gmra.mxu0 %v3246
  %v4070 = vpop.f32.mrf.mxu0
  %v4071 = vadd.f32 0.0, %v4070
  %v4072 = vpop.f32.mrf.mxu0
  %v4073 = vadd.f32 0.0, %v4072
  %v4074 = vpop.f32.mrf.mxu0
  %v4075 = vadd.f32 0.0, %v4074
  %v4076 = vpop.f32.mrf.mxu0
  %v4077 = vadd.f32 0.0, %v4076
  %4078 = vmatprep.mubr.bf16.mxu0 %v3948
  %4079 = vmatmul.mubr.bf16.gmra.mxu0 %v3248
  %v4080 = vpop.f32.mrf.mxu0
  %v4081 = vadd.f32 0.0, %v4080
  %v4082 = vpop.f32.mrf.mxu0
  %v4083 = vadd.f32 0.0, %v4082
  %v4084 = vpop.f32.mrf.mxu0
  %v4085 = vadd.f32 0.0, %v4084
  %v4086 = vpop.f32.mrf.mxu0
  %v4087 = vadd.f32 0.0, %v4086
  %4088 = vdwg.mxu0
  %v4089 = vadd.f32 %v3722, %v3991
  %v4090 = vadd.f32 %v3724, %v3993
  %v4091 = vadd.f32 %v3726, %v3995
  %v4092 = vadd.f32 %v3728, %v3997
  %v4093 = vadd.f32 %v3732, %v4001
  %v4094 = vadd.f32 %v3734, %v4003
  %v4095 = vadd.f32 %v3736, %v4005
  %v4096 = vadd.f32 %v3738, %v4007
  %v4097 = vadd.f32 %v3742, %v4011
  %v4098 = vadd.f32 %v3744, %v4013
  %v4099 = vadd.f32 %v3746, %v4015
  %v4100 = vadd.f32 %v3748, %v4017
  %v4101 = vadd.f32 %v3752, %v4021
  %v4102 = vadd.f32 %v3754, %v4023
  %v4103 = vadd.f32 %v3756, %v4025
  %v4104 = vadd.f32 %v3758, %v4027
  %v4105 = vadd.f32 %v3762, %v4031
  %v4106 = vadd.f32 %v3764, %v4033
  %v4107 = vadd.f32 %v3766, %v4035
  %v4108 = vadd.f32 %v3768, %v4037
  %v4109 = vadd.f32 %v3772, %v4041
  %v4110 = vadd.f32 %v3774, %v4043
  %v4111 = vadd.f32 %v3776, %v4045
  %v4112 = vadd.f32 %v3778, %v4047
  %v4113 = vadd.f32 %v3782, %v4051
  %v4114 = vadd.f32 %v3784, %v4053
  %v4115 = vadd.f32 %v3786, %v4055
  %v4116 = vadd.f32 %v3788, %v4057
  %v4117 = vadd.f32 %v3792, %v4061
  %v4118 = vadd.f32 %v3794, %v4063
  %v4119 = vadd.f32 %v3796, %v4065
  %v4120 = vadd.f32 %v3798, %v4067
  %v4121 = vadd.f32 %v3802, %v4071
  %v4122 = vadd.f32 %v3804, %v4073
  %v4123 = vadd.f32 %v3806, %v4075
  %v4124 = vadd.f32 %v3808, %v4077
  %v4125 = vadd.f32 %v3812, %v4081
  %v4126 = vadd.f32 %v3814, %v4083
  %v4127 = vadd.f32 %v3816, %v4085
  %v4128 = vadd.f32 %v3818, %v4087
  %s4129 = scalar_lea.vmem %s3, 504
  %v4130 = vld [vmem:[%s4129] sm:$0xff]
  %v4131 = vld [vmem:[%s4129 + $0x8] sm:$0xff]
  %v4132 = vld [vmem:[%s4129 + $0x10] sm:$0xff]
  %v4133 = vld [vmem:[%s4129 + $0x18] sm:$0xff]
  %v4134 = vld [vmem:[%s4129 + $0x20] sm:$0xff]
  %v4135 = vld [vmem:[%s4129 + $0x28] sm:$0xff]
  %v4136 = vld [vmem:[%s4129 + $0x30] sm:$0xff]
  %v4137 = vld [vmem:[%s4129 + $0x38] sm:$0xff]
  %v4138 = vld [vmem:[%s4129 + $0x40] sm:$0xff]
  %v4139 = vld [vmem:[%s4129 + $0x48] sm:$0xff]
  %v4140 = vld [vmem:[%s4129 + $0x50] sm:$0xff]
  %v4141 = vld [vmem:[%s4129 + $0x58] sm:$0xff]
  %v4142 = vld [vmem:[%s4129 + $0x60] sm:$0xff]
  %v4143 = vld [vmem:[%s4129 + $0x68] sm:$0xff]
  %v4144 = vld [vmem:[%s4129 + $0x70] sm:$0xff]
  %v4145 = vld [vmem:[%s4129 + $0x78] sm:$0xff]
  %v4146 = vld [vmem:[%s4129 + $0x80] sm:$0xff]
  %v4147 = vld [vmem:[%s4129 + $0x88] sm:$0xff]
  %v4148 = vld [vmem:[%s4129 + $0x90] sm:$0xff]
  %v4149 = vld [vmem:[%s4129 + $0x98] sm:$0xff]
  %v4150 = vld [vmem:[%s4129 + $0xa0] sm:$0x11]
  %v4172 = vunpack.c.l.b16 %v4130
  %v4173 = vunpack.c.h.b16 %v4130
  %v4174 = vunpack.c.l.b16 %v4131
  %v4175 = vunpack.c.h.b16 %v4131
  %v4176 = vunpack.c.l.b16 %v4132
  %v4177 = vunpack.c.h.b16 %v4132
  %v4178 = vunpack.c.l.b16 %v4133
  %v4179 = vunpack.c.h.b16 %v4133
  %v4180 = vunpack.c.l.b16 %v4134
  %v4181 = vunpack.c.h.b16 %v4134
  %v4182 = vunpack.c.l.b16 %v4135
  %v4183 = vunpack.c.h.b16 %v4135
  %v4184 = vunpack.c.l.b16 %v4136
  %v4185 = vunpack.c.h.b16 %v4136
  %v4186 = vunpack.c.l.b16 %v4137
  %v4187 = vunpack.c.h.b16 %v4137
  %v4188 = vunpack.c.l.b16 %v4138
  %v4189 = vunpack.c.h.b16 %v4138
  %v4190 = vunpack.c.l.b16 %v4139
  %v4191 = vunpack.c.h.b16 %v4139
  %v4192 = vunpack.c.l.b16 %v4140
  %v4193 = vunpack.c.h.b16 %v4140
  %v4194 = vunpack.c.l.b16 %v4141
  %v4195 = vunpack.c.h.b16 %v4141
  %v4196 = vunpack.c.l.b16 %v4142
  %v4197 = vunpack.c.h.b16 %v4142
  %v4198 = vunpack.c.l.b16 %v4143
  %v4199 = vunpack.c.h.b16 %v4143
  %v4200 = vunpack.c.l.b16 %v4144
  %v4201 = vunpack.c.h.b16 %v4144
  %v4202 = vunpack.c.l.b16 %v4145
  %v4203 = vunpack.c.h.b16 %v4145
  %v4204 = vunpack.c.l.b16 %v4146
  %v4205 = vunpack.c.h.b16 %v4146
  %v4206 = vunpack.c.l.b16 %v4147
  %v4207 = vunpack.c.h.b16 %v4147
  %v4208 = vunpack.c.l.b16 %v4148
  %v4209 = vunpack.c.h.b16 %v4148
  %v4210 = vunpack.c.l.b16 %v4149
  %v4211 = vunpack.c.h.b16 %v4149
  %v4212 = vunpack.c.l.b16 %v4150
  %v4213 = vunpack.c.h.b16 %v4150
  %v4214 = vpack.c.b16 %v4174, %v4172
  %v4215 = vpack.c.b16 %v4175, %v4173
  %v4216 = vpack.c.b16 %v4178, %v4176
  %v4217 = vpack.c.b16 %v4179, %v4177
  %v4218 = vpack.c.b16 %v4182, %v4180
  %v4219 = vpack.c.b16 %v4183, %v4181
  %v4220 = vpack.c.b16 %v4186, %v4184
  %v4221 = vpack.c.b16 %v4187, %v4185
  %v4222 = vpack.c.b16 %v4190, %v4188
  %v4223 = vpack.c.b16 %v4191, %v4189
  %v4224 = vpack.c.b16 %v4194, %v4192
  %v4225 = vpack.c.b16 %v4195, %v4193
  %v4226 = vpack.c.b16 %v4198, %v4196
  %v4227 = vpack.c.b16 %v4199, %v4197
  %v4228 = vpack.c.b16 %v4202, %v4200
  %v4229 = vpack.c.b16 %v4203, %v4201
  %v4230 = vpack.c.b16 %v4206, %v4204
  %v4231 = vpack.c.b16 %v4207, %v4205
  %v4232 = vpack.c.b16 %v4210, %v4208
  %v4233 = vpack.c.b16 %v4211, %v4209
  %v4234 = vpack.c.b16 %v4212, %v4212
  %v4235 = vpack.c.b16 %v4213, %v4213
  %v4257 = vsel %vm3402, %v3251, 0
  %v4260 = vsel %vm3433, %v4234, 0
  %v4263 = vsel %vm3433, %v4235, 0
  %4265 = vmatprep.subr.bf16.mxu0 %v4229
  %4266 = vmatpush1.bf16.msra.mxu0 %v4228
  %4267 = vmatprep.subr.bf16.mxu0 %v4227
  %4268 = vmatpush1.bf16.msra.mxu0 %v4226
  %4269 = vmatprep.subr.bf16.mxu0 %v4225
  %4270 = vmatpush1.bf16.msra.mxu0 %v4224
  %4271 = vmatprep.subr.bf16.mxu0 %v4223
  %4272 = vmatpush1.bf16.msra.mxu0 %v4222
  %4273 = vmatprep.subr.bf16.mxu0 %v4221
  %4274 = vmatpush1.bf16.msra.mxu0 %v4220
  %4275 = vmatprep.subr.bf16.mxu0 %v4219
  %4276 = vmatpush1.bf16.msra.mxu0 %v4218
  %4277 = vmatprep.subr.bf16.mxu0 %v4217
  %4278 = vmatpush1.bf16.msra.mxu0 %v4216
  %4279 = vmatprep.subr.bf16.mxu0 %v4215
  %4280 = vmatpush1.bf16.msra.mxu0 %v4214
  %4281 = vmatprep.subr.bf16.mxu0 0
  %4282 = vmatpush2.bf16.msra.mxu0 0
  %4283 = vmatprep.subr.bf16.mxu0 0
  %4284 = vmatpush2.bf16.msra.mxu0 0
  %4285 = vmatprep.subr.bf16.mxu0 0
  %4286 = vmatpush2.bf16.msra.mxu0 0
  %4287 = vmatprep.subr.bf16.mxu0 0
  %4288 = vmatpush2.bf16.msra.mxu0 0
  %4289 = vmatprep.subr.bf16.mxu0 0
  %4290 = vmatpush2.bf16.msra.mxu0 0
  %4291 = vmatprep.subr.bf16.mxu0 %v4263
  %4292 = vmatpush2.bf16.msra.mxu0 %v4260
  %4293 = vmatprep.subr.bf16.mxu0 %v4233
  %4294 = vmatpush2.bf16.msra.mxu0 %v4232
  %4295 = vmatprep.subr.bf16.mxu0 %v4231
  %4296 = vmatpush2.bf16.msra.mxu0 %v4230
  %4297 = vmatprep.mubr.bf16.mxu0 %v3410
  %4298 = vmatmul.mubr.bf16.gmra.mxu0 %v3232
  %v4299 = vpop.f32.mrf.mxu0
  %v4300 = vadd.f32 0.0, %v4299
  %v4301 = vpop.f32.mrf.mxu0
  %v4302 = vadd.f32 0.0, %v4301
  %v4303 = vpop.f32.mrf.mxu0
  %v4304 = vadd.f32 0.0, %v4303
  %v4305 = vpop.f32.mrf.mxu0
  %v4306 = vadd.f32 0.0, %v4305
  %4307 = vmatprep.mubr.bf16.mxu0 %v3413
  %4308 = vmatmul.mubr.bf16.gmra.mxu0 %v3234
  %v4309 = vpop.f32.mrf.mxu0
  %v4310 = vadd.f32 0.0, %v4309
  %v4311 = vpop.f32.mrf.mxu0
  %v4312 = vadd.f32 0.0, %v4311
  %v4313 = vpop.f32.mrf.mxu0
  %v4314 = vadd.f32 0.0, %v4313
  %v4315 = vpop.f32.mrf.mxu0
  %v4316 = vadd.f32 0.0, %v4315
  %4317 = vmatprep.mubr.bf16.mxu0 %v3416
  %4318 = vmatmul.mubr.bf16.gmra.mxu0 %v3236
  %v4319 = vpop.f32.mrf.mxu0
  %v4320 = vadd.f32 0.0, %v4319
  %v4321 = vpop.f32.mrf.mxu0
  %v4322 = vadd.f32 0.0, %v4321
  %v4323 = vpop.f32.mrf.mxu0
  %v4324 = vadd.f32 0.0, %v4323
  %v4325 = vpop.f32.mrf.mxu0
  %v4326 = vadd.f32 0.0, %v4325
  %4327 = vmatprep.mubr.bf16.mxu0 %v3419
  %4328 = vmatmul.mubr.bf16.gmra.mxu0 %v3238
  %v4329 = vpop.f32.mrf.mxu0
  %v4330 = vadd.f32 0.0, %v4329
  %v4331 = vpop.f32.mrf.mxu0
  %v4332 = vadd.f32 0.0, %v4331
  %v4333 = vpop.f32.mrf.mxu0
  %v4334 = vadd.f32 0.0, %v4333
  %v4335 = vpop.f32.mrf.mxu0
  %v4336 = vadd.f32 0.0, %v4335
  %4337 = vmatprep.mubr.bf16.mxu0 %v3422
  %4338 = vmatmul.mubr.bf16.gmra.mxu0 %v3240
  %v4339 = vpop.f32.mrf.mxu0
  %v4340 = vadd.f32 0.0, %v4339
  %v4341 = vpop.f32.mrf.mxu0
  %v4342 = vadd.f32 0.0, %v4341
  %v4343 = vpop.f32.mrf.mxu0
  %v4344 = vadd.f32 0.0, %v4343
  %v4345 = vpop.f32.mrf.mxu0
  %v4346 = vadd.f32 0.0, %v4345
  %4347 = vmatprep.mubr.bf16.mxu0 %v3425
  %4348 = vmatmul.mubr.bf16.gmra.mxu0 %v3242
  %v4349 = vpop.f32.mrf.mxu0
  %v4350 = vadd.f32 0.0, %v4349
  %v4351 = vpop.f32.mrf.mxu0
  %v4352 = vadd.f32 0.0, %v4351
  %v4353 = vpop.f32.mrf.mxu0
  %v4354 = vadd.f32 0.0, %v4353
  %v4355 = vpop.f32.mrf.mxu0
  %v4356 = vadd.f32 0.0, %v4355
  %4357 = vmatprep.mubr.bf16.mxu0 %v3428
  %4358 = vmatmul.mubr.bf16.gmra.mxu0 %v3244
  %v4359 = vpop.f32.mrf.mxu0
  %v4360 = vadd.f32 0.0, %v4359
  %v4361 = vpop.f32.mrf.mxu0
  %v4362 = vadd.f32 0.0, %v4361
  %v4363 = vpop.f32.mrf.mxu0
  %v4364 = vadd.f32 0.0, %v4363
  %v4365 = vpop.f32.mrf.mxu0
  %v4366 = vadd.f32 0.0, %v4365
  %4367 = vmatprep.mubr.bf16.mxu0 %v3431
  %4368 = vmatmul.mubr.bf16.gmra.mxu0 %v3246
  %v4369 = vpop.f32.mrf.mxu0
  %v4370 = vadd.f32 0.0, %v4369
  %v4371 = vpop.f32.mrf.mxu0
  %v4372 = vadd.f32 0.0, %v4371
  %v4373 = vpop.f32.mrf.mxu0
  %v4374 = vadd.f32 0.0, %v4373
  %v4375 = vpop.f32.mrf.mxu0
  %v4376 = vadd.f32 0.0, %v4375
  %4377 = vmatprep.mubr.bf16.mxu0 %v3948
  %4378 = vmatmul.mubr.bf16.gmra.mxu0 %v3248
  %v4379 = vpop.f32.mrf.mxu0
  %v4380 = vadd.f32 0.0, %v4379
  %v4381 = vpop.f32.mrf.mxu0
  %v4382 = vadd.f32 0.0, %v4381
  %v4383 = vpop.f32.mrf.mxu0
  %v4384 = vadd.f32 0.0, %v4383
  %v4385 = vpop.f32.mrf.mxu0
  %v4386 = vadd.f32 0.0, %v4385
  %4387 = vmatprep.mubr.bf16.mxu0 %v4257
  %4388 = vmatmul.mubr.bf16.gmra.mxu0 %v3250
  %v4389 = vpop.f32.mrf.mxu0
  %v4390 = vadd.f32 0.0, %v4389
  %v4391 = vpop.f32.mrf.mxu0
  %v4392 = vadd.f32 0.0, %v4391
  %v4393 = vpop.f32.mrf.mxu0
  %v4394 = vadd.f32 0.0, %v4393
  %v4395 = vpop.f32.mrf.mxu0
  %v4396 = vadd.f32 0.0, %v4395
  %4397 = vdwg.mxu0
  %v4398 = vadd.f32 %v4089, %v4300
  %v4399 = vadd.f32 %v4090, %v4302
  %v4400 = vadd.f32 %v4091, %v4304
  %v4401 = vadd.f32 %v4092, %v4306
  %v4402 = vadd.f32 %v4093, %v4310
  %v4403 = vadd.f32 %v4094, %v4312
  %v4404 = vadd.f32 %v4095, %v4314
  %v4405 = vadd.f32 %v4096, %v4316
  %v4406 = vadd.f32 %v4097, %v4320
  %v4407 = vadd.f32 %v4098, %v4322
  %v4408 = vadd.f32 %v4099, %v4324
  %v4409 = vadd.f32 %v4100, %v4326
  %v4410 = vadd.f32 %v4101, %v4330
  %v4411 = vadd.f32 %v4102, %v4332
  %v4412 = vadd.f32 %v4103, %v4334
  %v4413 = vadd.f32 %v4104, %v4336
  %v4414 = vadd.f32 %v4105, %v4340
  %v4415 = vadd.f32 %v4106, %v4342
  %v4416 = vadd.f32 %v4107, %v4344
  %v4417 = vadd.f32 %v4108, %v4346
  %v4418 = vadd.f32 %v4109, %v4350
  %v4419 = vadd.f32 %v4110, %v4352
  %v4420 = vadd.f32 %v4111, %v4354
  %v4421 = vadd.f32 %v4112, %v4356
  %v4422 = vadd.f32 %v4113, %v4360
  %v4423 = vadd.f32 %v4114, %v4362
  %v4424 = vadd.f32 %v4115, %v4364
  %v4425 = vadd.f32 %v4116, %v4366
  %v4426 = vadd.f32 %v4117, %v4370
  %v4427 = vadd.f32 %v4118, %v4372
  %v4428 = vadd.f32 %v4119, %v4374
  %v4429 = vadd.f32 %v4120, %v4376
  %v4430 = vadd.f32 %v4121, %v4380
  %v4431 = vadd.f32 %v4122, %v4382
  %v4432 = vadd.f32 %v4123, %v4384
  %v4433 = vadd.f32 %v4124, %v4386
  %v4434 = vadd.f32 %v4125, %v4390
  %v4435 = vadd.f32 %v4126, %v4392
  %v4436 = vadd.f32 %v4127, %v4394
  %v4437 = vadd.f32 %v4128, %v4396
  %s4438 = scalar_lea.vmem %s3, 672
  %v4439 = vld [vmem:[%s4438] sm:$0xff]
  %v4440 = vld [vmem:[%s4438 + $0x8] sm:$0xff]
  %v4441 = vld [vmem:[%s4438 + $0x10] sm:$0xff]
  %v4442 = vld [vmem:[%s4438 + $0x18] sm:$0xff]
  %v4443 = vld [vmem:[%s4438 + $0x20] sm:$0xff]
  %v4444 = vld [vmem:[%s4438 + $0x28] sm:$0xff]
  %v4445 = vld [vmem:[%s4438 + $0x30] sm:$0xff]
  %v4446 = vld [vmem:[%s4438 + $0x38] sm:$0xff]
  %v4447 = vld [vmem:[%s4438 + $0x40] sm:$0xff]
  %v4448 = vld [vmem:[%s4438 + $0x48] sm:$0xff]
  %v4449 = vld [vmem:[%s4438 + $0x50] sm:$0xff]
  %v4450 = vld [vmem:[%s4438 + $0x58] sm:$0xff]
  %v4451 = vld [vmem:[%s4438 + $0x60] sm:$0xff]
  %v4452 = vld [vmem:[%s4438 + $0x68] sm:$0xff]
  %v4453 = vld [vmem:[%s4438 + $0x70] sm:$0xff]
  %v4454 = vld [vmem:[%s4438 + $0x78] sm:$0xff]
  %v4455 = vld [vmem:[%s4438 + $0x80] sm:$0xff]
  %v4456 = vld [vmem:[%s4438 + $0x88] sm:$0xff]
  %v4457 = vld [vmem:[%s4438 + $0x90] sm:$0xff]
  %v4458 = vld [vmem:[%s4438 + $0x98] sm:$0xff]
  %v4459 = vld [vmem:[%s4438 + $0xa0] sm:$0x11]
  %v4481 = vunpack.c.l.b16 %v4439
  %v4482 = vunpack.c.h.b16 %v4439
  %v4483 = vunpack.c.l.b16 %v4440
  %v4484 = vunpack.c.h.b16 %v4440
  %v4485 = vunpack.c.l.b16 %v4441
  %v4486 = vunpack.c.h.b16 %v4441
  %v4487 = vunpack.c.l.b16 %v4442
  %v4488 = vunpack.c.h.b16 %v4442
  %v4489 = vunpack.c.l.b16 %v4443
  %v4490 = vunpack.c.h.b16 %v4443
  %v4491 = vunpack.c.l.b16 %v4444
  %v4492 = vunpack.c.h.b16 %v4444
  %v4493 = vunpack.c.l.b16 %v4445
  %v4494 = vunpack.c.h.b16 %v4445
  %v4495 = vunpack.c.l.b16 %v4446
  %v4496 = vunpack.c.h.b16 %v4446
  %v4497 = vunpack.c.l.b16 %v4447
  %v4498 = vunpack.c.h.b16 %v4447
  %v4499 = vunpack.c.l.b16 %v4448
  %v4500 = vunpack.c.h.b16 %v4448
  %v4501 = vunpack.c.l.b16 %v4449
  %v4502 = vunpack.c.h.b16 %v4449
  %v4503 = vunpack.c.l.b16 %v4450
  %v4504 = vunpack.c.h.b16 %v4450
  %v4505 = vunpack.c.l.b16 %v4451
  %v4506 = vunpack.c.h.b16 %v4451
  %v4507 = vunpack.c.l.b16 %v4452
  %v4508 = vunpack.c.h.b16 %v4452
  %v4509 = vunpack.c.l.b16 %v4453
  %v4510 = vunpack.c.h.b16 %v4453
  %v4511 = vunpack.c.l.b16 %v4454
  %v4512 = vunpack.c.h.b16 %v4454
  %v4513 = vunpack.c.l.b16 %v4455
  %v4514 = vunpack.c.h.b16 %v4455
  %v4515 = vunpack.c.l.b16 %v4456
  %v4516 = vunpack.c.h.b16 %v4456
  %v4517 = vunpack.c.l.b16 %v4457
  %v4518 = vunpack.c.h.b16 %v4457
  %v4519 = vunpack.c.l.b16 %v4458
  %v4520 = vunpack.c.h.b16 %v4458
  %v4521 = vunpack.c.l.b16 %v4459
  %v4522 = vunpack.c.h.b16 %v4459
  %v4523 = vpack.c.b16 %v4483, %v4481
  %v4524 = vpack.c.b16 %v4484, %v4482
  %v4525 = vpack.c.b16 %v4487, %v4485
  %v4526 = vpack.c.b16 %v4488, %v4486
  %v4527 = vpack.c.b16 %v4491, %v4489
  %v4528 = vpack.c.b16 %v4492, %v4490
  %v4529 = vpack.c.b16 %v4495, %v4493
  %v4530 = vpack.c.b16 %v4496, %v4494
  %v4531 = vpack.c.b16 %v4499, %v4497
  %v4532 = vpack.c.b16 %v4500, %v4498
  %v4533 = vpack.c.b16 %v4503, %v4501
  %v4534 = vpack.c.b16 %v4504, %v4502
  %v4535 = vpack.c.b16 %v4507, %v4505
  %v4536 = vpack.c.b16 %v4508, %v4506
  %v4537 = vpack.c.b16 %v4511, %v4509
  %v4538 = vpack.c.b16 %v4512, %v4510
  %v4539 = vpack.c.b16 %v4515, %v4513
  %v4540 = vpack.c.b16 %v4516, %v4514
  %v4541 = vpack.c.b16 %v4519, %v4517
  %v4542 = vpack.c.b16 %v4520, %v4518
  %v4543 = vpack.c.b16 %v4521, %v4521
  %v4544 = vpack.c.b16 %v4522, %v4522
  %v4566 = vsel %vm3402, %v3253, 0
  %v4569 = vsel %vm3433, %v4543, 0
  %v4572 = vsel %vm3433, %v4544, 0
  %4574 = vmatprep.subr.bf16.mxu0 %v4538
  %4575 = vmatpush1.bf16.msra.mxu0 %v4537
  %4576 = vmatprep.subr.bf16.mxu0 %v4536
  %4577 = vmatpush1.bf16.msra.mxu0 %v4535
  %4578 = vmatprep.subr.bf16.mxu0 %v4534
  %4579 = vmatpush1.bf16.msra.mxu0 %v4533
  %4580 = vmatprep.subr.bf16.mxu0 %v4532
  %4581 = vmatpush1.bf16.msra.mxu0 %v4531
  %4582 = vmatprep.subr.bf16.mxu0 %v4530
  %4583 = vmatpush1.bf16.msra.mxu0 %v4529
  %4584 = vmatprep.subr.bf16.mxu0 %v4528
  %4585 = vmatpush1.bf16.msra.mxu0 %v4527
  %4586 = vmatprep.subr.bf16.mxu0 %v4526
  %4587 = vmatpush1.bf16.msra.mxu0 %v4525
  %4588 = vmatprep.subr.bf16.mxu0 %v4524
  %4589 = vmatpush1.bf16.msra.mxu0 %v4523
  %4590 = vmatprep.subr.bf16.mxu0 0
  %4591 = vmatpush2.bf16.msra.mxu0 0
  %4592 = vmatprep.subr.bf16.mxu0 0
  %4593 = vmatpush2.bf16.msra.mxu0 0
  %4594 = vmatprep.subr.bf16.mxu0 0
  %4595 = vmatpush2.bf16.msra.mxu0 0
  %4596 = vmatprep.subr.bf16.mxu0 0
  %4597 = vmatpush2.bf16.msra.mxu0 0
  %4598 = vmatprep.subr.bf16.mxu0 0
  %4599 = vmatpush2.bf16.msra.mxu0 0
  %4600 = vmatprep.subr.bf16.mxu0 %v4572
  %4601 = vmatpush2.bf16.msra.mxu0 %v4569
  %4602 = vmatprep.subr.bf16.mxu0 %v4542
  %4603 = vmatpush2.bf16.msra.mxu0 %v4541
  %4604 = vmatprep.subr.bf16.mxu0 %v4540
  %4605 = vmatpush2.bf16.msra.mxu0 %v4539
  %4606 = vmatprep.mubr.bf16.mxu0 %v3413
  %4607 = vmatmul.mubr.bf16.gmra.mxu0 %v3234
  %v4608 = vpop.f32.mrf.mxu0
  %v4609 = vadd.f32 0.0, %v4608
  %v4610 = vpop.f32.mrf.mxu0
  %v4611 = vadd.f32 0.0, %v4610
  %v4612 = vpop.f32.mrf.mxu0
  %v4613 = vadd.f32 0.0, %v4612
  %v4614 = vpop.f32.mrf.mxu0
  %v4615 = vadd.f32 0.0, %v4614
  %4616 = vmatprep.mubr.bf16.mxu0 %v3416
  %4617 = vmatmul.mubr.bf16.gmra.mxu0 %v3236
  %v4618 = vpop.f32.mrf.mxu0
  %v4619 = vadd.f32 0.0, %v4618
  %v4620 = vpop.f32.mrf.mxu0
  %v4621 = vadd.f32 0.0, %v4620
  %v4622 = vpop.f32.mrf.mxu0
  %v4623 = vadd.f32 0.0, %v4622
  %v4624 = vpop.f32.mrf.mxu0
  %v4625 = vadd.f32 0.0, %v4624
  %4626 = vmatprep.mubr.bf16.mxu0 %v3419
  %4627 = vmatmul.mubr.bf16.gmra.mxu0 %v3238
  %v4628 = vpop.f32.mrf.mxu0
  %v4629 = vadd.f32 0.0, %v4628
  %v4630 = vpop.f32.mrf.mxu0
  %v4631 = vadd.f32 0.0, %v4630
  %v4632 = vpop.f32.mrf.mxu0
  %v4633 = vadd.f32 0.0, %v4632
  %v4634 = vpop.f32.mrf.mxu0
  %v4635 = vadd.f32 0.0, %v4634
  %4636 = vmatprep.mubr.bf16.mxu0 %v3422
  %4637 = vmatmul.mubr.bf16.gmra.mxu0 %v3240
  %v4638 = vpop.f32.mrf.mxu0
  %v4639 = vadd.f32 0.0, %v4638
  %v4640 = vpop.f32.mrf.mxu0
  %v4641 = vadd.f32 0.0, %v4640
  %v4642 = vpop.f32.mrf.mxu0
  %v4643 = vadd.f32 0.0, %v4642
  %v4644 = vpop.f32.mrf.mxu0
  %v4645 = vadd.f32 0.0, %v4644
  %4646 = vmatprep.mubr.bf16.mxu0 %v3425
  %4647 = vmatmul.mubr.bf16.gmra.mxu0 %v3242
  %v4648 = vpop.f32.mrf.mxu0
  %v4649 = vadd.f32 0.0, %v4648
  %v4650 = vpop.f32.mrf.mxu0
  %v4651 = vadd.f32 0.0, %v4650
  %v4652 = vpop.f32.mrf.mxu0
  %v4653 = vadd.f32 0.0, %v4652
  %v4654 = vpop.f32.mrf.mxu0
  %v4655 = vadd.f32 0.0, %v4654
  %4656 = vmatprep.mubr.bf16.mxu0 %v3428
  %4657 = vmatmul.mubr.bf16.gmra.mxu0 %v3244
  %v4658 = vpop.f32.mrf.mxu0
  %v4659 = vadd.f32 0.0, %v4658
  %v4660 = vpop.f32.mrf.mxu0
  %v4661 = vadd.f32 0.0, %v4660
  %v4662 = vpop.f32.mrf.mxu0
  %v4663 = vadd.f32 0.0, %v4662
  %v4664 = vpop.f32.mrf.mxu0
  %v4665 = vadd.f32 0.0, %v4664
  %4666 = vmatprep.mubr.bf16.mxu0 %v3431
  %4667 = vmatmul.mubr.bf16.gmra.mxu0 %v3246
  %v4668 = vpop.f32.mrf.mxu0
  %v4669 = vadd.f32 0.0, %v4668
  %v4670 = vpop.f32.mrf.mxu0
  %v4671 = vadd.f32 0.0, %v4670
  %v4672 = vpop.f32.mrf.mxu0
  %v4673 = vadd.f32 0.0, %v4672
  %v4674 = vpop.f32.mrf.mxu0
  %v4675 = vadd.f32 0.0, %v4674
  %4676 = vmatprep.mubr.bf16.mxu0 %v3948
  %4677 = vmatmul.mubr.bf16.gmra.mxu0 %v3248
  %v4678 = vpop.f32.mrf.mxu0
  %v4679 = vadd.f32 0.0, %v4678
  %v4680 = vpop.f32.mrf.mxu0
  %v4681 = vadd.f32 0.0, %v4680
  %v4682 = vpop.f32.mrf.mxu0
  %v4683 = vadd.f32 0.0, %v4682
  %v4684 = vpop.f32.mrf.mxu0
  %v4685 = vadd.f32 0.0, %v4684
  %4686 = vmatprep.mubr.bf16.mxu0 %v4257
  %4687 = vmatmul.mubr.bf16.gmra.mxu0 %v3250
  %v4688 = vpop.f32.mrf.mxu0
  %v4689 = vadd.f32 0.0, %v4688
  %v4690 = vpop.f32.mrf.mxu0
  %v4691 = vadd.f32 0.0, %v4690
  %v4692 = vpop.f32.mrf.mxu0
  %v4693 = vadd.f32 0.0, %v4692
  %v4694 = vpop.f32.mrf.mxu0
  %v4695 = vadd.f32 0.0, %v4694
  %4696 = vmatprep.mubr.bf16.mxu0 %v4566
  %4697 = vmatmul.mubr.bf16.gmra.mxu0 %v3252
  %v4698 = vpop.f32.mrf.mxu0
  %v4699 = vadd.f32 0.0, %v4698
  %v4700 = vpop.f32.mrf.mxu0
  %v4701 = vadd.f32 0.0, %v4700
  %v4702 = vpop.f32.mrf.mxu0
  %v4703 = vadd.f32 0.0, %v4702
  %v4704 = vpop.f32.mrf.mxu0
  %v4705 = vadd.f32 0.0, %v4704
  %4706 = vdwg.mxu0
  %v4707 = vadd.f32 %v4398, %v4609
  %v4708 = vadd.f32 %v4399, %v4611
  %v4709 = vadd.f32 %v4400, %v4613
  %v4710 = vadd.f32 %v4401, %v4615
  %v4711 = vadd.f32 %v4402, %v4619
  %v4712 = vadd.f32 %v4403, %v4621
  %v4713 = vadd.f32 %v4404, %v4623
  %v4714 = vadd.f32 %v4405, %v4625
  %v4715 = vadd.f32 %v4406, %v4629
  %v4716 = vadd.f32 %v4407, %v4631
  %v4717 = vadd.f32 %v4408, %v4633
  %v4718 = vadd.f32 %v4409, %v4635
  %v4719 = vadd.f32 %v4410, %v4639
  %v4720 = vadd.f32 %v4411, %v4641
  %v4721 = vadd.f32 %v4412, %v4643
  %v4722 = vadd.f32 %v4413, %v4645
  %v4723 = vadd.f32 %v4414, %v4649
  %v4724 = vadd.f32 %v4415, %v4651
  %v4725 = vadd.f32 %v4416, %v4653
  %v4726 = vadd.f32 %v4417, %v4655
  %v4727 = vadd.f32 %v4418, %v4659
  %v4728 = vadd.f32 %v4419, %v4661
  %v4729 = vadd.f32 %v4420, %v4663
  %v4730 = vadd.f32 %v4421, %v4665
  %v4731 = vadd.f32 %v4422, %v4669
  %v4732 = vadd.f32 %v4423, %v4671
  %v4733 = vadd.f32 %v4424, %v4673
  %v4734 = vadd.f32 %v4425, %v4675
  %v4735 = vadd.f32 %v4426, %v4679
  %v4736 = vadd.f32 %v4427, %v4681
  %v4737 = vadd.f32 %v4428, %v4683
  %v4738 = vadd.f32 %v4429, %v4685
  %v4739 = vadd.f32 %v4430, %v4689
  %v4740 = vadd.f32 %v4431, %v4691
  %v4741 = vadd.f32 %v4432, %v4693
  %v4742 = vadd.f32 %v4433, %v4695
  %v4743 = vadd.f32 %v4434, %v4699
  %v4744 = vadd.f32 %v4435, %v4701
  %v4745 = vadd.f32 %v4436, %v4703
  %v4746 = vadd.f32 %v4437, %v4705
  %v4747 = vld [vmem:[%s4] sm:$0x3]
  %v4749 = vlaneseq
  %v4750 = vshrl.u32 %v4749, 7
  %v4751 = vsub.s32 0, %v4750
  %v4752 = vrot.slane %v4747, %v4751
  %v4753 = vlaneseq
  %v4754 = vshrl.u32 %v4753, 7
  %v4755 = vsub.s32 1, %v4754
  %v4756 = vrot.slane %v4747, %v4755
  %v4759 = vadd.f32 %v4707, %v4752
  %v4760 = vadd.f32 %v4708, %v4756
  %v4761 = vadd.f32 %v4709, %v4752
  %v4762 = vadd.f32 %v4710, %v4756
  %v4763 = vadd.f32 %v4711, %v4752
  %v4764 = vadd.f32 %v4712, %v4756
  %v4765 = vadd.f32 %v4713, %v4752
  %v4766 = vadd.f32 %v4714, %v4756
  %v4767 = vadd.f32 %v4715, %v4752
  %v4768 = vadd.f32 %v4716, %v4756
  %v4769 = vadd.f32 %v4717, %v4752
  %v4770 = vadd.f32 %v4718, %v4756
  %v4771 = vadd.f32 %v4719, %v4752
  %v4772 = vadd.f32 %v4720, %v4756
  %v4773 = vadd.f32 %v4721, %v4752
  %v4774 = vadd.f32 %v4722, %v4756
  %v4775 = vadd.f32 %v4723, %v4752
  %v4776 = vadd.f32 %v4724, %v4756
  %v4777 = vadd.f32 %v4725, %v4752
  %v4778 = vadd.f32 %v4726, %v4756
  %v4779 = vadd.f32 %v4727, %v4752
  %v4780 = vadd.f32 %v4728, %v4756
  %v4781 = vadd.f32 %v4729, %v4752
  %v4782 = vadd.f32 %v4730, %v4756
  %v4783 = vadd.f32 %v4731, %v4752
  %v4784 = vadd.f32 %v4732, %v4756
  %v4785 = vadd.f32 %v4733, %v4752
  %v4786 = vadd.f32 %v4734, %v4756
  %v4787 = vadd.f32 %v4735, %v4752
  %v4788 = vadd.f32 %v4736, %v4756
  %v4789 = vadd.f32 %v4737, %v4752
  %v4790 = vadd.f32 %v4738, %v4756
  %v4791 = vadd.f32 %v4739, %v4752
  %v4792 = vadd.f32 %v4740, %v4756
  %v4793 = vadd.f32 %v4741, %v4752
  %v4794 = vadd.f32 %v4742, %v4756
  %v4795 = vadd.f32 %v4743, %v4752
  %v4796 = vadd.f32 %v4744, %v4756
  %v4797 = vadd.f32 %v4745, %v4752
  %v4798 = vadd.f32 %v4746, %v4756
  %v4799 = vmax.f32 %v4759, 0.0
  %v4800 = vmax.f32 %v4760, 0.0
  %v4801 = vmax.f32 %v4761, 0.0
  %v4802 = vmax.f32 %v4762, 0.0
  %v4803 = vmax.f32 %v4763, 0.0
  %v4804 = vmax.f32 %v4764, 0.0
  %v4805 = vmax.f32 %v4765, 0.0
  %v4806 = vmax.f32 %v4766, 0.0
  %v4807 = vmax.f32 %v4767, 0.0
  %v4808 = vmax.f32 %v4768, 0.0
  %v4809 = vmax.f32 %v4769, 0.0
  %v4810 = vmax.f32 %v4770, 0.0
  %v4811 = vmax.f32 %v4771, 0.0
  %v4812 = vmax.f32 %v4772, 0.0
  %v4813 = vmax.f32 %v4773, 0.0
  %v4814 = vmax.f32 %v4774, 0.0
  %v4815 = vmax.f32 %v4775, 0.0
  %v4816 = vmax.f32 %v4776, 0.0
  %v4817 = vmax.f32 %v4777, 0.0
  %v4818 = vmax.f32 %v4778, 0.0
  %v4819 = vmax.f32 %v4779, 0.0
  %v4820 = vmax.f32 %v4780, 0.0
  %v4821 = vmax.f32 %v4781, 0.0
  %v4822 = vmax.f32 %v4782, 0.0
  %v4823 = vmax.f32 %v4783, 0.0
  %v4824 = vmax.f32 %v4784, 0.0
  %v4825 = vmax.f32 %v4785, 0.0
  %v4826 = vmax.f32 %v4786, 0.0
  %v4827 = vmax.f32 %v4787, 0.0
  %v4828 = vmax.f32 %v4788, 0.0
  %v4829 = vmax.f32 %v4789, 0.0
  %v4830 = vmax.f32 %v4790, 0.0
  %v4831 = vmax.f32 %v4791, 0.0
  %v4832 = vmax.f32 %v4792, 0.0
  %v4833 = vmax.f32 %v4793, 0.0
  %v4834 = vmax.f32 %v4794, 0.0
  %v4835 = vmax.f32 %v4795, 0.0
  %v4836 = vmax.f32 %v4796, 0.0
  %v4837 = vmax.f32 %v4797, 0.0
  %v4838 = vmax.f32 %v4798, 0.0
  %v4839 = vmax.f32 %v4799, %v4803
  %v4840 = vmax.f32 %v4800, %v4804
  %v4841 = vmax.f32 %v4801, %v4805
  %v4842 = vmax.f32 %v4802, %v4806
  %v4843 = vmax.f32 %v4807, %v4811
  %v4844 = vmax.f32 %v4808, %v4812
  %v4845 = vmax.f32 %v4809, %v4813
  %v4846 = vmax.f32 %v4810, %v4814
  %v4847 = vmax.f32 %v4815, %v4819
  %v4848 = vmax.f32 %v4816, %v4820
  %v4849 = vmax.f32 %v4817, %v4821
  %v4850 = vmax.f32 %v4818, %v4822
  %v4851 = vmax.f32 %v4823, %v4827
  %v4852 = vmax.f32 %v4824, %v4828
  %v4853 = vmax.f32 %v4825, %v4829
  %v4854 = vmax.f32 %v4826, %v4830
  %v4855 = vmax.f32 %v4831, %v4835
  %v4856 = vmax.f32 %v4832, %v4836
  %v4857 = vmax.f32 %v4833, %v4837
  %v4858 = vmax.f32 %v4834, %v4838
  %4879 = vrot.lane.b32.xlu0 %v4839, 112
  %v4880 = vpop.permute.xlu0 %4879
  %4881 = vrot.lane.b32.xlu0 %v4840, 112
  %v4882 = vpop.permute.xlu0 %4881
  %4883 = vrot.lane.b32.xlu0 %v4841, 112
  %v4884 = vpop.permute.xlu0 %4883
  %4885 = vrot.lane.b32.xlu0 %v4842, 112
  %v4886 = vpop.permute.xlu0 %4885
  %4887 = vrot.lane.b32.xlu0 %v4843, 112
  %v4888 = vpop.permute.xlu0 %4887
  %4889 = vrot.lane.b32.xlu0 %v4844, 112
  %v4890 = vpop.permute.xlu0 %4889
  %4891 = vrot.lane.b32.xlu0 %v4845, 112
  %v4892 = vpop.permute.xlu0 %4891
  %4893 = vrot.lane.b32.xlu0 %v4846, 112
  %v4894 = vpop.permute.xlu0 %4893
  %4895 = vrot.lane.b32.xlu0 %v4847, 112
  %v4896 = vpop.permute.xlu0 %4895
  %4897 = vrot.lane.b32.xlu0 %v4848, 112
  %v4898 = vpop.permute.xlu0 %4897
  %4899 = vrot.lane.b32.xlu0 %v4849, 112
  %v4900 = vpop.permute.xlu0 %4899
  %4901 = vrot.lane.b32.xlu0 %v4850, 112
  %v4902 = vpop.permute.xlu0 %4901
  %4903 = vrot.lane.b32.xlu0 %v4851, 112
  %v4904 = vpop.permute.xlu0 %4903
  %4905 = vrot.lane.b32.xlu0 %v4852, 112
  %v4906 = vpop.permute.xlu0 %4905
  %4907 = vrot.lane.b32.xlu0 %v4853, 112
  %v4908 = vpop.permute.xlu0 %4907
  %4909 = vrot.lane.b32.xlu0 %v4854, 112
  %v4910 = vpop.permute.xlu0 %4909
  %4911 = vrot.lane.b32.xlu0 %v4855, 112
  %v4912 = vpop.permute.xlu0 %4911
  %4913 = vrot.lane.b32.xlu0 %v4856, 112
  %v4914 = vpop.permute.xlu0 %4913
  %4915 = vrot.lane.b32.xlu0 %v4857, 112
  %v4916 = vpop.permute.xlu0 %4915
  %4917 = vrot.lane.b32.xlu0 %v4858, 112
  %v4918 = vpop.permute.xlu0 %4917
  %vm4919 = vcmask 916480
  %v4920 = vsel %vm4919, %v4880, %v4882
  %v4921 = vsel %vm4919, %v4884, %v4886
  %v4922 = vsel %vm4919, %v4888, %v4890
  %v4923 = vsel %vm4919, %v4892, %v4894
  %v4924 = vsel %vm4919, %v4896, %v4898
  %v4925 = vsel %vm4919, %v4900, %v4902
  %v4926 = vsel %vm4919, %v4904, %v4906
  %v4927 = vsel %vm4919, %v4908, %v4910
  %v4928 = vsel %vm4919, %v4912, %v4914
  %v4929 = vsel %vm4919, %v4916, %v4918
  %v4950 = vmax.f32 %v4839, %v4920
  %v4951 = vmax.f32 %v4840, %v4882
  %v4952 = vmax.f32 %v4841, %v4921
  %v4953 = vmax.f32 %v4842, %v4886
  %v4954 = vmax.f32 %v4843, %v4922
  %v4955 = vmax.f32 %v4844, %v4890
  %v4956 = vmax.f32 %v4845, %v4923
  %v4957 = vmax.f32 %v4846, %v4894
  %v4958 = vmax.f32 %v4847, %v4924
  %v4959 = vmax.f32 %v4848, %v4898
  %v4960 = vmax.f32 %v4849, %v4925
  %v4961 = vmax.f32 %v4850, %v4902
  %v4962 = vmax.f32 %v4851, %v4926
  %v4963 = vmax.f32 %v4852, %v4906
  %v4964 = vmax.f32 %v4853, %v4927
  %v4965 = vmax.f32 %v4854, %v4910
  %v4966 = vmax.f32 %v4855, %v4928
  %v4967 = vmax.f32 %v4856, %v4914
  %v4968 = vmax.f32 %v4857, %v4929
  %v4969 = vmax.f32 %v4858, %v4918
  %v4970 = vpack.c.bf16 %v4952, %v4950
  %v4971 = vpack.c.bf16 %v4953, %v4951
  %v4972 = vpack.c.bf16 %v4956, %v4954
  %v4973 = vpack.c.bf16 %v4957, %v4955
  %v4974 = vpack.c.bf16 %v4960, %v4958
  %v4975 = vpack.c.bf16 %v4961, %v4959
  %v4976 = vpack.c.bf16 %v4964, %v4962
  %v4977 = vpack.c.bf16 %v4965, %v4963
  %v4978 = vpack.c.bf16 %v4968, %v4966
  %v4979 = vpack.c.bf16 %v4969, %v4967
  %v4980 = vld [vmem:[%s5] sm:$0xf]
  %v4981 = vld [vmem:[%s5 + $0x4] sm:$0xf]
  %v4982 = vld [vmem:[%s5 + $0x8] sm:$0xf]
  %v4983 = vld [vmem:[%s5 + $0xc] sm:$0xf]
  %v4984 = vld [vmem:[%s5 + $0x10] sm:$0xf]
  %v4985 = vld [vmem:[%s5 + $0x14] sm:$0xf]
  %v4986 = vld [vmem:[%s5 + $0x18] sm:$0xf]
  %v4987 = vld [vmem:[%s5 + $0x1c] sm:$0xf]
  %v4988 = vld [vmem:[%s5 + $0x20] sm:$0xf]
  %v4989 = vld [vmem:[%s5 + $0x24] sm:$0xf]
  %v4990 = vld [vmem:[%s5 + $0x28] sm:$0xf]
  %v4991 = vld [vmem:[%s5 + $0x2c] sm:$0xf]
  %v4992 = vld [vmem:[%s5 + $0x30] sm:$0xf]
  %v4993 = vld [vmem:[%s5 + $0x34] sm:$0xf]
  %v4994 = vld [vmem:[%s5 + $0x38] sm:$0xf]
  %v4995 = vld [vmem:[%s5 + $0x3c] sm:$0xf]
  %v4996 = vld [vmem:[%s5 + $0x40] sm:$0xf]
  %v4997 = vld [vmem:[%s5 + $0x44] sm:$0xf]
  %s4998 = scalar_lea.vmem %s5, 72
  %v4999 = vld [vmem:[%s4998] sm:$0xf]
  %v5000 = vld [vmem:[%s4998 + $0x4] sm:$0xf]
  %v5001 = vld [vmem:[%s4998 + $0x8] sm:$0xf]
  %v5002 = vld [vmem:[%s4998 + $0xc] sm:$0xf]
  %v5003 = vld [vmem:[%s4998 + $0x10] sm:$0xf]
  %v5004 = vld [vmem:[%s4998 + $0x14] sm:$0xf]
  %v5005 = vld [vmem:[%s4998 + $0x18] sm:$0xf]
  %v5006 = vld [vmem:[%s4998 + $0x1c] sm:$0xf]
  %v5007 = vld [vmem:[%s4998 + $0x20] sm:$0xf]
  %v5008 = vld [vmem:[%s4998 + $0x24] sm:$0xf]
  %v5009 = vld [vmem:[%s4998 + $0x28] sm:$0xf]
  %v5010 = vld [vmem:[%s4998 + $0x2c] sm:$0xf]
  %v5011 = vld [vmem:[%s4998 + $0x30] sm:$0xf]
  %v5012 = vld [vmem:[%s4998 + $0x34] sm:$0xf]
  %v5013 = vld [vmem:[%s4998 + $0x38] sm:$0xf]
  %v5014 = vld [vmem:[%s4998 + $0x3c] sm:$0xf]
  %v5015 = vld [vmem:[%s4998 + $0x40] sm:$0xf]
  %v5016 = vld [vmem:[%s4998 + $0x44] sm:$0xf]
  %v5035 = vunpack.c.l.b16 %v4999
  %v5036 = vunpack.c.l.b16 %v5000
  %v5037 = vunpack.c.l.b16 %v5001
  %v5038 = vunpack.c.l.b16 %v5002
  %v5039 = vunpack.c.l.b16 %v5003
  %v5040 = vunpack.c.l.b16 %v5004
  %v5041 = vunpack.c.l.b16 %v5005
  %v5042 = vunpack.c.l.b16 %v5006
  %v5043 = vunpack.c.l.b16 %v5007
  %v5044 = vunpack.c.l.b16 %v5008
  %v5045 = vunpack.c.l.b16 %v5009
  %v5046 = vunpack.c.l.b16 %v5010
  %v5047 = vunpack.c.l.b16 %v5011
  %v5048 = vunpack.c.l.b16 %v5012
  %v5049 = vunpack.c.l.b16 %v5013
  %v5050 = vunpack.c.l.b16 %v5014
  %v5051 = vunpack.c.l.b16 %v5015
  %v5052 = vunpack.c.l.b16 %v5016
  %v5053 = vpack.c.b16 %v5036, %v5035
  %v5054 = vpack.c.b16 %v5038, %v5037
  %v5055 = vpack.c.b16 %v5040, %v5039
  %v5056 = vpack.c.b16 %v5042, %v5041
  %v5057 = vpack.c.b16 %v5044, %v5043
  %v5058 = vpack.c.b16 %v5046, %v5045
  %v5059 = vpack.c.b16 %v5048, %v5047
  %v5060 = vpack.c.b16 %v5050, %v5049
  %v5061 = vpack.c.b16 %v5052, %v5051
  %vm5071 = vcmask 130048
  %v5073 = vsel %vm5071, %v4973, 0
  %5075 = vmatprep.subr.bf16.mxu0 0
  %5076 = vmatpush1.bf16.msra.mxu0 %v5060
  %5077 = vmatprep.subr.bf16.mxu0 0
  %5078 = vmatpush1.bf16.msra.mxu0 %v5059
  %5079 = vmatprep.subr.bf16.mxu0 0
  %5080 = vmatpush1.bf16.msra.mxu0 %v5058
  %5081 = vmatprep.subr.bf16.mxu0 0
  %5082 = vmatpush1.bf16.msra.mxu0 %v5057
  %5083 = vmatprep.subr.bf16.mxu0 0
  %5084 = vmatpush1.bf16.msra.mxu0 %v5056
  %5085 = vmatprep.subr.bf16.mxu0 0
  %5086 = vmatpush1.bf16.msra.mxu0 %v5055
  %5087 = vmatprep.subr.bf16.mxu0 0
  %5088 = vmatpush1.bf16.msra.mxu0 %v5054
  %5089 = vmatprep.subr.bf16.mxu0 0
  %5090 = vmatpush1.bf16.msra.mxu0 %v5053
  %5091 = vmatprep.subr.bf16.mxu0 0
  %5092 = vmatpush2.bf16.msra.mxu0 0
  %5093 = vmatprep.subr.bf16.mxu0 0
  %5094 = vmatpush2.bf16.msra.mxu0 0
  %5095 = vmatprep.subr.bf16.mxu0 0
  %5096 = vmatpush2.bf16.msra.mxu0 0
  %5097 = vmatprep.subr.bf16.mxu0 0
  %5098 = vmatpush2.bf16.msra.mxu0 0
  %5099 = vmatprep.subr.bf16.mxu0 0
  %5100 = vmatpush2.bf16.msra.mxu0 0
  %5101 = vmatprep.subr.bf16.mxu0 0
  %5102 = vmatpush2.bf16.msra.mxu0 0
  %5103 = vmatprep.subr.bf16.mxu0 0
  %5104 = vmatpush2.bf16.msra.mxu0 0
  %5105 = vmatprep.subr.bf16.mxu0 0
  %5106 = vmatpush2.bf16.msra.mxu0 %v5061
  %5107 = vmatprep.mubr.bf16.mxu0 %v5073
  %5108 = vmatmul.mubr.bf16.gmra.mxu0 %v4972
  %v5109 = vpop.f32.mrf.mxu0
  %v5110 = vadd.f32 0.0, %v5109
  %v5111 = vpop.f32.mrf.mxu0
  %v5112 = vpop.f32.mrf.mxu0
  %v5113 = vadd.f32 0.0, %v5112
  %v5114 = vpop.f32.mrf.mxu0
  %5115 = vdwg.mxu0
  %v5134 = vunpack.c.l.b16 %v4980
  %v5135 = vunpack.c.l.b16 %v4981
  %v5136 = vunpack.c.l.b16 %v4982
  %v5137 = vunpack.c.l.b16 %v4983
  %v5138 = vunpack.c.l.b16 %v4984
  %v5139 = vunpack.c.l.b16 %v4985
  %v5140 = vunpack.c.l.b16 %v4986
  %v5141 = vunpack.c.l.b16 %v4987
  %v5142 = vunpack.c.l.b16 %v4988
  %v5143 = vunpack.c.l.b16 %v4989
  %v5144 = vunpack.c.l.b16 %v4990
  %v5145 = vunpack.c.l.b16 %v4991
  %v5146 = vunpack.c.l.b16 %v4992
  %v5147 = vunpack.c.l.b16 %v4993
  %v5148 = vunpack.c.l.b16 %v4994
  %v5149 = vunpack.c.l.b16 %v4995
  %v5150 = vunpack.c.l.b16 %v4996
  %v5151 = vunpack.c.l.b16 %v4997
  %v5152 = vpack.c.b16 %v5135, %v5134
  %v5153 = vpack.c.b16 %v5137, %v5136
  %v5154 = vpack.c.b16 %v5139, %v5138
  %v5155 = vpack.c.b16 %v5141, %v5140
  %v5156 = vpack.c.b16 %v5143, %v5142
  %v5157 = vpack.c.b16 %v5145, %v5144
  %v5158 = vpack.c.b16 %v5147, %v5146
  %v5159 = vpack.c.b16 %v5149, %v5148
  %v5160 = vpack.c.b16 %v5151, %v5150
  %v5171 = vsel %vm5071, %v4971, 0
  %5173 = vmatprep.subr.bf16.mxu0 0
  %5174 = vmatpush1.bf16.msra.mxu0 %v5159
  %5175 = vmatprep.subr.bf16.mxu0 0
  %5176 = vmatpush1.bf16.msra.mxu0 %v5158
  %5177 = vmatprep.subr.bf16.mxu0 0
  %5178 = vmatpush1.bf16.msra.mxu0 %v5157
  %5179 = vmatprep.subr.bf16.mxu0 0
  %5180 = vmatpush1.bf16.msra.mxu0 %v5156
  %5181 = vmatprep.subr.bf16.mxu0 0
  %5182 = vmatpush1.bf16.msra.mxu0 %v5155
  %5183 = vmatprep.subr.bf16.mxu0 0
  %5184 = vmatpush1.bf16.msra.mxu0 %v5154
  %5185 = vmatprep.subr.bf16.mxu0 0
  %5186 = vmatpush1.bf16.msra.mxu0 %v5153
  %5187 = vmatprep.subr.bf16.mxu0 0
  %5188 = vmatpush1.bf16.msra.mxu0 %v5152
  %5189 = vmatprep.subr.bf16.mxu0 0
  %5190 = vmatpush2.bf16.msra.mxu0 0
  %5191 = vmatprep.subr.bf16.mxu0 0
  %5192 = vmatpush2.bf16.msra.mxu0 0
  %5193 = vmatprep.subr.bf16.mxu0 0
  %5194 = vmatpush2.bf16.msra.mxu0 0
  %5195 = vmatprep.subr.bf16.mxu0 0
  %5196 = vmatpush2.bf16.msra.mxu0 0
  %5197 = vmatprep.subr.bf16.mxu0 0
  %5198 = vmatpush2.bf16.msra.mxu0 0
  %5199 = vmatprep.subr.bf16.mxu0 0
  %5200 = vmatpush2.bf16.msra.mxu0 0
  %5201 = vmatprep.subr.bf16.mxu0 0
  %5202 = vmatpush2.bf16.msra.mxu0 0
  %5203 = vmatprep.subr.bf16.mxu0 0
  %5204 = vmatpush2.bf16.msra.mxu0 %v5160
  %5205 = vmatprep.mubr.bf16.mxu0 %v5171
  %5206 = vmatmul.mubr.bf16.gmra.mxu0 %v4970
  %v5207 = vpop.f32.mrf.mxu0
  %v5208 = vadd.f32 %v5110, %v5207
  %v5209 = vpop.f32.mrf.mxu0
  %v5210 = vpop.f32.mrf.mxu0
  %v5211 = vadd.f32 %v5113, %v5210
  %v5212 = vpop.f32.mrf.mxu0
  %5213 = vdwg.mxu0
  %s5214 = scalar_lea.vmem %s5, 144
  %v5215 = vld [vmem:[%s5214] sm:$0xf]
  %v5216 = vld [vmem:[%s5214 + $0x4] sm:$0xf]
  %v5217 = vld [vmem:[%s5214 + $0x8] sm:$0xf]
  %v5218 = vld [vmem:[%s5214 + $0xc] sm:$0xf]
  %v5219 = vld [vmem:[%s5214 + $0x10] sm:$0xf]
  %v5220 = vld [vmem:[%s5214 + $0x14] sm:$0xf]
  %v5221 = vld [vmem:[%s5214 + $0x18] sm:$0xf]
  %v5222 = vld [vmem:[%s5214 + $0x1c] sm:$0xf]
  %v5223 = vld [vmem:[%s5214 + $0x20] sm:$0xf]
  %v5224 = vld [vmem:[%s5214 + $0x24] sm:$0xf]
  %v5225 = vld [vmem:[%s5214 + $0x28] sm:$0xf]
  %v5226 = vld [vmem:[%s5214 + $0x2c] sm:$0xf]
  %v5227 = vld [vmem:[%s5214 + $0x30] sm:$0xf]
  %v5228 = vld [vmem:[%s5214 + $0x34] sm:$0xf]
  %v5229 = vld [vmem:[%s5214 + $0x38] sm:$0xf]
  %v5230 = vld [vmem:[%s5214 + $0x3c] sm:$0xf]
  %v5231 = vld [vmem:[%s5214 + $0x40] sm:$0xf]
  %v5232 = vld [vmem:[%s5214 + $0x44] sm:$0xf]
  %v5251 = vunpack.c.l.b16 %v5215
  %v5252 = vunpack.c.l.b16 %v5216
  %v5253 = vunpack.c.l.b16 %v5217
  %v5254 = vunpack.c.l.b16 %v5218
  %v5255 = vunpack.c.l.b16 %v5219
  %v5256 = vunpack.c.l.b16 %v5220
  %v5257 = vunpack.c.l.b16 %v5221
  %v5258 = vunpack.c.l.b16 %v5222
  %v5259 = vunpack.c.l.b16 %v5223
  %v5260 = vunpack.c.l.b16 %v5224
  %v5261 = vunpack.c.l.b16 %v5225
  %v5262 = vunpack.c.l.b16 %v5226
  %v5263 = vunpack.c.l.b16 %v5227
  %v5264 = vunpack.c.l.b16 %v5228
  %v5265 = vunpack.c.l.b16 %v5229
  %v5266 = vunpack.c.l.b16 %v5230
  %v5267 = vunpack.c.l.b16 %v5231
  %v5268 = vunpack.c.l.b16 %v5232
  %v5269 = vpack.c.b16 %v5252, %v5251
  %v5270 = vpack.c.b16 %v5254, %v5253
  %v5271 = vpack.c.b16 %v5256, %v5255
  %v5272 = vpack.c.b16 %v5258, %v5257
  %v5273 = vpack.c.b16 %v5260, %v5259
  %v5274 = vpack.c.b16 %v5262, %v5261
  %v5275 = vpack.c.b16 %v5264, %v5263
  %v5276 = vpack.c.b16 %v5266, %v5265
  %v5277 = vpack.c.b16 %v5268, %v5267
  %v5288 = vsel %vm5071, %v4975, 0
  %5290 = vmatprep.subr.bf16.mxu0 0
  %5291 = vmatpush1.bf16.msra.mxu0 %v5276
  %5292 = vmatprep.subr.bf16.mxu0 0
  %5293 = vmatpush1.bf16.msra.mxu0 %v5275
  %5294 = vmatprep.subr.bf16.mxu0 0
  %5295 = vmatpush1.bf16.msra.mxu0 %v5274
  %5296 = vmatprep.subr.bf16.mxu0 0
  %5297 = vmatpush1.bf16.msra.mxu0 %v5273
  %5298 = vmatprep.subr.bf16.mxu0 0
  %5299 = vmatpush1.bf16.msra.mxu0 %v5272
  %5300 = vmatprep.subr.bf16.mxu0 0
  %5301 = vmatpush1.bf16.msra.mxu0 %v5271
  %5302 = vmatprep.subr.bf16.mxu0 0
  %5303 = vmatpush1.bf16.msra.mxu0 %v5270
  %5304 = vmatprep.subr.bf16.mxu0 0
  %5305 = vmatpush1.bf16.msra.mxu0 %v5269
  %5306 = vmatprep.subr.bf16.mxu0 0
  %5307 = vmatpush2.bf16.msra.mxu0 0
  %5308 = vmatprep.subr.bf16.mxu0 0
  %5309 = vmatpush2.bf16.msra.mxu0 0
  %5310 = vmatprep.subr.bf16.mxu0 0
  %5311 = vmatpush2.bf16.msra.mxu0 0
  %5312 = vmatprep.subr.bf16.mxu0 0
  %5313 = vmatpush2.bf16.msra.mxu0 0
  %5314 = vmatprep.subr.bf16.mxu0 0
  %5315 = vmatpush2.bf16.msra.mxu0 0
  %5316 = vmatprep.subr.bf16.mxu0 0
  %5317 = vmatpush2.bf16.msra.mxu0 0
  %5318 = vmatprep.subr.bf16.mxu0 0
  %5319 = vmatpush2.bf16.msra.mxu0 0
  %5320 = vmatprep.subr.bf16.mxu0 0
  %5321 = vmatpush2.bf16.msra.mxu0 %v5277
  %5322 = vmatprep.mubr.bf16.mxu0 %v5288
  %5323 = vmatmul.mubr.bf16.gmra.mxu0 %v4974
  %v5324 = vpop.f32.mrf.mxu0
  %v5325 = vadd.f32 0.0, %v5324
  %v5326 = vpop.f32.mrf.mxu0
  %v5327 = vpop.f32.mrf.mxu0
  %v5328 = vadd.f32 0.0, %v5327
  %v5329 = vpop.f32.mrf.mxu0
  %5330 = vdwg.mxu0
  %v5331 = vadd.f32 %v5208, %v5325
  %v5332 = vadd.f32 %v5211, %v5328
  %s5333 = scalar_lea.vmem %s5, 216
  %v5334 = vld [vmem:[%s5333] sm:$0xf]
  %v5335 = vld [vmem:[%s5333 + $0x4] sm:$0xf]
  %v5336 = vld [vmem:[%s5333 + $0x8] sm:$0xf]
  %v5337 = vld [vmem:[%s5333 + $0xc] sm:$0xf]
  %v5338 = vld [vmem:[%s5333 + $0x10] sm:$0xf]
  %v5339 = vld [vmem:[%s5333 + $0x14] sm:$0xf]
  %v5340 = vld [vmem:[%s5333 + $0x18] sm:$0xf]
  %v5341 = vld [vmem:[%s5333 + $0x1c] sm:$0xf]
  %v5342 = vld [vmem:[%s5333 + $0x20] sm:$0xf]
  %v5343 = vld [vmem:[%s5333 + $0x24] sm:$0xf]
  %v5344 = vld [vmem:[%s5333 + $0x28] sm:$0xf]
  %v5345 = vld [vmem:[%s5333 + $0x2c] sm:$0xf]
  %v5346 = vld [vmem:[%s5333 + $0x30] sm:$0xf]
  %v5347 = vld [vmem:[%s5333 + $0x34] sm:$0xf]
  %v5348 = vld [vmem:[%s5333 + $0x38] sm:$0xf]
  %v5349 = vld [vmem:[%s5333 + $0x3c] sm:$0xf]
  %v5350 = vld [vmem:[%s5333 + $0x40] sm:$0xf]
  %v5351 = vld [vmem:[%s5333 + $0x44] sm:$0xf]
  %v5370 = vunpack.c.l.b16 %v5334
  %v5371 = vunpack.c.l.b16 %v5335
  %v5372 = vunpack.c.l.b16 %v5336
  %v5373 = vunpack.c.l.b16 %v5337
  %v5374 = vunpack.c.l.b16 %v5338
  %v5375 = vunpack.c.l.b16 %v5339
  %v5376 = vunpack.c.l.b16 %v5340
  %v5377 = vunpack.c.l.b16 %v5341
  %v5378 = vunpack.c.l.b16 %v5342
  %v5379 = vunpack.c.l.b16 %v5343
  %v5380 = vunpack.c.l.b16 %v5344
  %v5381 = vunpack.c.l.b16 %v5345
  %v5382 = vunpack.c.l.b16 %v5346
  %v5383 = vunpack.c.l.b16 %v5347
  %v5384 = vunpack.c.l.b16 %v5348
  %v5385 = vunpack.c.l.b16 %v5349
  %v5386 = vunpack.c.l.b16 %v5350
  %v5387 = vunpack.c.l.b16 %v5351
  %v5388 = vpack.c.b16 %v5371, %v5370
  %v5389 = vpack.c.b16 %v5373, %v5372
  %v5390 = vpack.c.b16 %v5375, %v5374
  %v5391 = vpack.c.b16 %v5377, %v5376
  %v5392 = vpack.c.b16 %v5379, %v5378
  %v5393 = vpack.c.b16 %v5381, %v5380
  %v5394 = vpack.c.b16 %v5383, %v5382
  %v5395 = vpack.c.b16 %v5385, %v5384
  %v5396 = vpack.c.b16 %v5387, %v5386
  %v5407 = vsel %vm5071, %v4977, 0
  %5409 = vmatprep.subr.bf16.mxu0 0
  %5410 = vmatpush1.bf16.msra.mxu0 %v5395
  %5411 = vmatprep.subr.bf16.mxu0 0
  %5412 = vmatpush1.bf16.msra.mxu0 %v5394
  %5413 = vmatprep.subr.bf16.mxu0 0
  %5414 = vmatpush1.bf16.msra.mxu0 %v5393
  %5415 = vmatprep.subr.bf16.mxu0 0
  %5416 = vmatpush1.bf16.msra.mxu0 %v5392
  %5417 = vmatprep.subr.bf16.mxu0 0
  %5418 = vmatpush1.bf16.msra.mxu0 %v5391
  %5419 = vmatprep.subr.bf16.mxu0 0
  %5420 = vmatpush1.bf16.msra.mxu0 %v5390
  %5421 = vmatprep.subr.bf16.mxu0 0
  %5422 = vmatpush1.bf16.msra.mxu0 %v5389
  %5423 = vmatprep.subr.bf16.mxu0 0
  %5424 = vmatpush1.bf16.msra.mxu0 %v5388
  %5425 = vmatprep.subr.bf16.mxu0 0
  %5426 = vmatpush2.bf16.msra.mxu0 0
  %5427 = vmatprep.subr.bf16.mxu0 0
  %5428 = vmatpush2.bf16.msra.mxu0 0
  %5429 = vmatprep.subr.bf16.mxu0 0
  %5430 = vmatpush2.bf16.msra.mxu0 0
  %5431 = vmatprep.subr.bf16.mxu0 0
  %5432 = vmatpush2.bf16.msra.mxu0 0
  %5433 = vmatprep.subr.bf16.mxu0 0
  %5434 = vmatpush2.bf16.msra.mxu0 0
  %5435 = vmatprep.subr.bf16.mxu0 0
  %5436 = vmatpush2.bf16.msra.mxu0 0
  %5437 = vmatprep.subr.bf16.mxu0 0
  %5438 = vmatpush2.bf16.msra.mxu0 0
  %5439 = vmatprep.subr.bf16.mxu0 0
  %5440 = vmatpush2.bf16.msra.mxu0 %v5396
  %5441 = vmatprep.mubr.bf16.mxu0 %v5407
  %5442 = vmatmul.mubr.bf16.gmra.mxu0 %v4976
  %v5443 = vpop.f32.mrf.mxu0
  %v5444 = vadd.f32 0.0, %v5443
  %v5445 = vpop.f32.mrf.mxu0
  %v5446 = vpop.f32.mrf.mxu0
  %v5447 = vadd.f32 0.0, %v5446
  %v5448 = vpop.f32.mrf.mxu0
  %5449 = vdwg.mxu0
  %v5450 = vadd.f32 %v5331, %v5444
  %v5451 = vadd.f32 %v5332, %v5447
  %s5452 = scalar_lea.vmem %s5, 288
  %v5453 = vld [vmem:[%s5452] sm:$0xf]
  %v5454 = vld [vmem:[%s5452 + $0x4] sm:$0xf]
  %v5455 = vld [vmem:[%s5452 + $0x8] sm:$0xf]
  %v5456 = vld [vmem:[%s5452 + $0xc] sm:$0xf]
  %v5457 = vld [vmem:[%s5452 + $0x10] sm:$0xf]
  %v5458 = vld [vmem:[%s5452 + $0x14] sm:$0xf]
  %v5459 = vld [vmem:[%s5452 + $0x18] sm:$0xf]
  %v5460 = vld [vmem:[%s5452 + $0x1c] sm:$0xf]
  %v5461 = vld [vmem:[%s5452 + $0x20] sm:$0xf]
  %v5462 = vld [vmem:[%s5452 + $0x24] sm:$0xf]
  %v5463 = vld [vmem:[%s5452 + $0x28] sm:$0xf]
  %v5464 = vld [vmem:[%s5452 + $0x2c] sm:$0xf]
  %v5465 = vld [vmem:[%s5452 + $0x30] sm:$0xf]
  %v5466 = vld [vmem:[%s5452 + $0x34] sm:$0xf]
  %v5467 = vld [vmem:[%s5452 + $0x38] sm:$0xf]
  %v5468 = vld [vmem:[%s5452 + $0x3c] sm:$0xf]
  %v5469 = vld [vmem:[%s5452 + $0x40] sm:$0xf]
  %v5470 = vld [vmem:[%s5452 + $0x44] sm:$0xf]
  %v5489 = vunpack.c.l.b16 %v5453
  %v5490 = vunpack.c.l.b16 %v5454
  %v5491 = vunpack.c.l.b16 %v5455
  %v5492 = vunpack.c.l.b16 %v5456
  %v5493 = vunpack.c.l.b16 %v5457
  %v5494 = vunpack.c.l.b16 %v5458
  %v5495 = vunpack.c.l.b16 %v5459
  %v5496 = vunpack.c.l.b16 %v5460
  %v5497 = vunpack.c.l.b16 %v5461
  %v5498 = vunpack.c.l.b16 %v5462
  %v5499 = vunpack.c.l.b16 %v5463
  %v5500 = vunpack.c.l.b16 %v5464
  %v5501 = vunpack.c.l.b16 %v5465
  %v5502 = vunpack.c.l.b16 %v5466
  %v5503 = vunpack.c.l.b16 %v5467
  %v5504 = vunpack.c.l.b16 %v5468
  %v5505 = vunpack.c.l.b16 %v5469
  %v5506 = vunpack.c.l.b16 %v5470
  %v5507 = vpack.c.b16 %v5490, %v5489
  %v5508 = vpack.c.b16 %v5492, %v5491
  %v5509 = vpack.c.b16 %v5494, %v5493
  %v5510 = vpack.c.b16 %v5496, %v5495
  %v5511 = vpack.c.b16 %v5498, %v5497
  %v5512 = vpack.c.b16 %v5500, %v5499
  %v5513 = vpack.c.b16 %v5502, %v5501
  %v5514 = vpack.c.b16 %v5504, %v5503
  %v5515 = vpack.c.b16 %v5506, %v5505
  %v5526 = vsel %vm5071, %v4979, 0
  %5528 = vmatprep.subr.bf16.mxu0 0
  %5529 = vmatpush1.bf16.msra.mxu0 %v5514
  %5530 = vmatprep.subr.bf16.mxu0 0
  %5531 = vmatpush1.bf16.msra.mxu0 %v5513
  %5532 = vmatprep.subr.bf16.mxu0 0
  %5533 = vmatpush1.bf16.msra.mxu0 %v5512
  %5534 = vmatprep.subr.bf16.mxu0 0
  %5535 = vmatpush1.bf16.msra.mxu0 %v5511
  %5536 = vmatprep.subr.bf16.mxu0 0
  %5537 = vmatpush1.bf16.msra.mxu0 %v5510
  %5538 = vmatprep.subr.bf16.mxu0 0
  %5539 = vmatpush1.bf16.msra.mxu0 %v5509
  %5540 = vmatprep.subr.bf16.mxu0 0
  %5541 = vmatpush1.bf16.msra.mxu0 %v5508
  %5542 = vmatprep.subr.bf16.mxu0 0
  %5543 = vmatpush1.bf16.msra.mxu0 %v5507
  %5544 = vmatprep.subr.bf16.mxu0 0
  %5545 = vmatpush2.bf16.msra.mxu0 0
  %5546 = vmatprep.subr.bf16.mxu0 0
  %5547 = vmatpush2.bf16.msra.mxu0 0
  %5548 = vmatprep.subr.bf16.mxu0 0
  %5549 = vmatpush2.bf16.msra.mxu0 0
  %5550 = vmatprep.subr.bf16.mxu0 0
  %5551 = vmatpush2.bf16.msra.mxu0 0
  %5552 = vmatprep.subr.bf16.mxu0 0
  %5553 = vmatpush2.bf16.msra.mxu0 0
  %5554 = vmatprep.subr.bf16.mxu0 0
  %5555 = vmatpush2.bf16.msra.mxu0 0
  %5556 = vmatprep.subr.bf16.mxu0 0
  %5557 = vmatpush2.bf16.msra.mxu0 0
  %5558 = vmatprep.subr.bf16.mxu0 0
  %5559 = vmatpush2.bf16.msra.mxu0 %v5515
  %5560 = vmatprep.mubr.bf16.mxu0 %v5526
  %5561 = vmatmul.mubr.bf16.gmra.mxu0 %v4978
  %v5562 = vpop.f32.mrf.mxu0
  %v5563 = vadd.f32 0.0, %v5562
  %v5564 = vpop.f32.mrf.mxu0
  %v5565 = vpop.f32.mrf.mxu0
  %v5566 = vadd.f32 0.0, %v5565
  %v5567 = vpop.f32.mrf.mxu0
  %5568 = vdwg.mxu0
  %v5569 = vadd.f32 %v5450, %v5563
  %v5570 = vadd.f32 %v5451, %v5566
  %v5571 = vld [vmem:[%s6] sm:$0x1]
  %v5573 = vlaneseq
  %v5574 = vshrl.u32 %v5573, 7
  %v5575 = vsub.s32 0, %v5574
  %v5576 = vrot.slane %v5571, %v5575
  %v5578 = vadd.f32 %v5569, %v5576
  %v5579 = vadd.f32 %v5570, %v5576
  %v5580 = vmax.f32 %v5578, 0.0
  %v5581 = vmax.f32 %v5579, 0.0
  %v5582 = vpack.c.bf16 %v5581, %v5580
  %v5583 = vld [vmem:[%s7] sm:$0xf]
  %v5584 = vld [vmem:[%s7 + $0x4] sm:$0xf]
  %v5585 = vld [vmem:[%s7 + $0x8] sm:$0xf]
  %v5586 = vld [vmem:[%s7 + $0xc] sm:$0xf]
  %v5587 = vld [vmem:[%s7 + $0x10] sm:$0xf]
  %v5588 = vld [vmem:[%s7 + $0x14] sm:$0xf]
  %v5589 = vld [vmem:[%s7 + $0x18] sm:$0xf]
  %v5590 = vld [vmem:[%s7 + $0x1c] sm:$0xf]
  %v5591 = vld [vmem:[%s7 + $0x20] sm:$0xf]
  %v5592 = vld [vmem:[%s7 + $0x24] sm:$0xf]
  %v5593 = vld [vmem:[%s7 + $0x28] sm:$0xf]
  %v5594 = vld [vmem:[%s7 + $0x2c] sm:$0xf]
  %v5595 = vld [vmem:[%s7 + $0x30] sm:$0xf]
  %v5596 = vld [vmem:[%s7 + $0x34] sm:$0xf]
  %v5597 = vld [vmem:[%s7 + $0x38] sm:$0xf]
  %v5598 = vld [vmem:[%s8] sm:$0x1]
  %v5600 = vlaneseq
  %v5601 = vshrl.u32 %v5600, 7
  %v5602 = vsub.s32 0, %v5601
  %v5603 = vrot.slane %v5598, %v5602
  %v5620 = vunpack.c.l.b16 %v5583
  %v5621 = vunpack.c.l.b16 %v5584
  %v5622 = vunpack.c.l.b16 %v5585
  %v5623 = vunpack.c.l.b16 %v5586
  %v5624 = vunpack.c.l.b16 %v5587
  %v5625 = vunpack.c.l.b16 %v5588
  %v5626 = vunpack.c.l.b16 %v5589
  %v5627 = vunpack.c.l.b16 %v5590
  %v5628 = vunpack.c.l.b16 %v5591
  %v5629 = vunpack.c.l.b16 %v5592
  %v5630 = vunpack.c.l.b16 %v5593
  %v5631 = vunpack.c.l.b16 %v5594
  %v5632 = vunpack.c.l.b16 %v5595
  %v5633 = vunpack.c.l.b16 %v5596
  %v5634 = vunpack.c.l.b16 %v5597
  %v5635 = vpack.c.b16 %v5621, %v5620
  %v5636 = vpack.c.b16 %v5623, %v5622
  %v5637 = vpack.c.b16 %v5625, %v5624
  %v5638 = vpack.c.b16 %v5627, %v5626
  %v5639 = vpack.c.b16 %v5629, %v5628
  %v5640 = vpack.c.b16 %v5631, %v5630
  %v5641 = vpack.c.b16 %v5633, %v5632
  %v5642 = vpack.c.b16 %v5634, %v5634
  %vm5650 = vcmask 982016
  %v5652 = vsel %vm5650, %v5582, 0
  %vm5654 = vcmask 1043456
  %v5656 = vsel %vm5654, %v5642, 0
  %5658 = vmatprep.subr.bf16.mxu0 0
  %5659 = vmatpush1.bf16.msra.mxu0 %v5656
  %5660 = vmatprep.subr.bf16.mxu0 0
  %5661 = vmatpush1.bf16.msra.mxu0 %v5641
  %5662 = vmatprep.subr.bf16.mxu0 0
  %5663 = vmatpush1.bf16.msra.mxu0 %v5640
  %5664 = vmatprep.subr.bf16.mxu0 0
  %5665 = vmatpush1.bf16.msra.mxu0 %v5639
  %5666 = vmatprep.subr.bf16.mxu0 0
  %5667 = vmatpush1.bf16.msra.mxu0 %v5638
  %5668 = vmatprep.subr.bf16.mxu0 0
  %5669 = vmatpush1.bf16.msra.mxu0 %v5637
  %5670 = vmatprep.subr.bf16.mxu0 0
  %5671 = vmatpush1.bf16.msra.mxu0 %v5636
  %5672 = vmatprep.subr.bf16.mxu0 0
  %5673 = vmatpush1.bf16.msra.mxu0 %v5635
  %5674 = vmatprep.subr.bf16.mxu0 0
  %5675 = vmatpush2.bf16.msra.mxu0 0
  %5676 = vmatprep.subr.bf16.mxu0 0
  %5677 = vmatpush2.bf16.msra.mxu0 0
  %5678 = vmatprep.subr.bf16.mxu0 0
  %5679 = vmatpush2.bf16.msra.mxu0 0
  %5680 = vmatprep.subr.bf16.mxu0 0
  %5681 = vmatpush2.bf16.msra.mxu0 0
  %5682 = vmatprep.subr.bf16.mxu0 0
  %5683 = vmatpush2.bf16.msra.mxu0 0
  %5684 = vmatprep.subr.bf16.mxu0 0
  %5685 = vmatpush2.bf16.msra.mxu0 0
  %5686 = vmatprep.subr.bf16.mxu0 0
  %5687 = vmatpush2.bf16.msra.mxu0 0
  %5688 = vmatprep.subr.bf16.mxu0 0
  %5689 = vmatpush2.bf16.msra.mxu0 0
  %5690 = vmatprep.mubr.bf16.mxu0 0
  %5691 = vmatmul.mubr.bf16.gmra.mxu0 %v5652
  %v5692 = vpop.f32.mrf.mxu0
  %v5693 = vadd.f32 %v5603, %v5692
  %v5694 = vpop.f32.mrf.mxu0
  %v5695 = vpop.f32.mrf.mxu0
  %v5696 = vadd.f32 %v5603, %v5695
  %v5697 = vpop.f32.mrf.mxu0
  %5698 = vdwg.mxu0
  %v5699 = vmax.f32 %v5693, 0.0
  %v5700 = vmax.f32 %v5696, 0.0
  %v5701 = vpack.c.bf16 %v5700, %v5699
  %v5702 = vld [vmem:[%s9] sm:$0xf]
  %v5703 = vld [vmem:[%s9 + $0x4] sm:$0xf]
  %v5704 = vld [vmem:[%s9 + $0x8] sm:$0xf]
  %v5705 = vld [vmem:[%s9 + $0xc] sm:$0xf]
  %v5706 = vld [vmem:[%s9 + $0x10] sm:$0xf]
  %v5707 = vld [vmem:[%s9 + $0x14] sm:$0xf]
  %v5708 = vld [vmem:[%s9 + $0x18] sm:$0xf]
  %v5709 = vld [vmem:[%s9 + $0x1c] sm:$0xf]
  %v5710 = vld [vmem:[%s9 + $0x20] sm:$0xf]
  %v5711 = vld [vmem:[%s9 + $0x24] sm:$0xf]
  %v5712 = vld [vmem:[%s9 + $0x28] sm:$0x3]
  %v5713 = vld [vmem:[%s10] sm:$0x1]
  %v5715 = vlaneseq
  %v5716 = vshrl.u32 %v5715, 7
  %v5717 = vsub.s32 0, %v5716
  %v5718 = vrot.slane %v5713, %v5717
  %v5731 = vunpack.c.l.b16 %v5702
  %v5732 = vunpack.c.l.b16 %v5703
  %v5733 = vunpack.c.l.b16 %v5704
  %v5734 = vunpack.c.l.b16 %v5705
  %v5735 = vunpack.c.l.b16 %v5706
  %v5736 = vunpack.c.l.b16 %v5707
  %v5737 = vunpack.c.l.b16 %v5708
  %v5738 = vunpack.c.l.b16 %v5709
  %v5739 = vunpack.c.l.b16 %v5710
  %v5740 = vunpack.c.l.b16 %v5711
  %v5741 = vunpack.c.l.b16 %v5712
  %v5742 = vpack.c.b16 %v5732, %v5731
  %v5743 = vpack.c.b16 %v5734, %v5733
  %v5744 = vpack.c.b16 %v5736, %v5735
  %v5745 = vpack.c.b16 %v5738, %v5737
  %v5746 = vpack.c.b16 %v5740, %v5739
  %v5747 = vpack.c.b16 %v5741, %v5741
  %vm5753 = vcmask 687104
  %v5755 = vsel %vm5753, %v5701, 0
  %vm5757 = vcmask 1041408
  %v5759 = vsel %vm5757, %v5747, 0
  %5761 = vmatprep.subr.bf16.mxu0 0
  %5762 = vmatpush1.bf16.msra.mxu0 0
  %5763 = vmatprep.subr.bf16.mxu0 0
  %5764 = vmatpush1.bf16.msra.mxu0 0
  %5765 = vmatprep.subr.bf16.mxu0 0
  %5766 = vmatpush1.bf16.msra.mxu0 %v5759
  %5767 = vmatprep.subr.bf16.mxu0 0
  %5768 = vmatpush1.bf16.msra.mxu0 %v5746
  %5769 = vmatprep.subr.bf16.mxu0 0
  %5770 = vmatpush1.bf16.msra.mxu0 %v5745
  %5771 = vmatprep.subr.bf16.mxu0 0
  %5772 = vmatpush1.bf16.msra.mxu0 %v5744
  %5773 = vmatprep.subr.bf16.mxu0 0
  %5774 = vmatpush1.bf16.msra.mxu0 %v5743
  %5775 = vmatprep.subr.bf16.mxu0 0
  %5776 = vmatpush1.bf16.msra.mxu0 %v5742
  %5777 = vmatprep.subr.bf16.mxu0 0
  %5778 = vmatpush2.bf16.msra.mxu0 0
  %5779 = vmatprep.subr.bf16.mxu0 0
  %5780 = vmatpush2.bf16.msra.mxu0 0
  %5781 = vmatprep.subr.bf16.mxu0 0
  %5782 = vmatpush2.bf16.msra.mxu0 0
  %5783 = vmatprep.subr.bf16.mxu0 0
  %5784 = vmatpush2.bf16.msra.mxu0 0
  %5785 = vmatprep.subr.bf16.mxu0 0
  %5786 = vmatpush2.bf16.msra.mxu0 0
  %5787 = vmatprep.subr.bf16.mxu0 0
  %5788 = vmatpush2.bf16.msra.mxu0 0
  %5789 = vmatprep.subr.bf16.mxu0 0
  %5790 = vmatpush2.bf16.msra.mxu0 0
  %5791 = vmatprep.subr.bf16.mxu0 0
  %5792 = vmatpush2.bf16.msra.mxu0 0
  %5793 = vmatprep.mubr.bf16.mxu0 0
  %5794 = vmatmul.mubr.bf16.gmra.mxu0 %v5755
  %v5795 = vpop.f32.mrf.mxu0
  %v5796 = vadd.f32 %v5718, %v5795
  %v5797 = vpop.f32.mrf.mxu0
  %v5798 = vpop.f32.mrf.mxu0
  %v5799 = vadd.f32 %v5718, %v5798
  %v5800 = vpop.f32.mrf.mxu0
  %5801 = vdwg.mxu0
  %vm5802 = vcmask 80896
  %5803 = vst.msk [vmem:[%s11] sm:$0xff] %vm5802, %v5796
  %5804 = vst.msk [vmem:[%s11 + $0x8] sm:$0xff] %vm5802, %v5799
  // Predicated region
  $region46: #{net_forward.1} parent=0 // pred_check
    _
  $region47: #{net_forward.1} parent=0 // pred_check_branch
    %5806 = sbr.rel (0) target = $region49
  $region48: #{net_forward.1} parent=0 // pred_region
    _
  $region49: #{net_forward.1} parent=0 // pred_fallthru
    _
  // Predicated region
  $region50: #{net_forward.1} parent=0 // pred_check
    _
  $region51: #{net_forward.1} parent=0 // pred_check_branch
    %5808 = sbr.rel (0) target = $region53
  $region52: #{net_forward.1} parent=0 // pred_region
    _
  $region53: #{net_forward.1} parent=0 // pred_fallthru
    _

</llo_original>
